<compile_context>
chip_gen: v5e
topology: v5e:2x2
jax: 0.10.0
libtpu: 0.0.40
codegen_flags: <defaults>
</compile_context>

<pallas_src>
import math

import jax
import jax.numpy as jnp
import numpy as np
from jax.experimental import pallas as pl
from jax.experimental.pallas import tpu as pltpu


# ----------------------------------------------------------------------------
# Packed-parameter layout (lane-aligned segment offsets shared by the
# offline packer and the kernel).
# ----------------------------------------------------------------------------
def _ceil128(n):
    return ((n + 127) // 128) * 128


def _pack_layout(H, H1, OUT):
    G = 4 * H
    w_off, o = {}, 0
    for name, width in (("w1hh", G), ("w2ih", G), ("w2hh", G),
                        ("lin2w", _ceil128(H1)), ("lin3w", _ceil128(OUT))):
        w_off[name] = o
        o += width
    w_tot = o
    b_off, o = {}, 0
    for name, width in (("bbig", _ceil128(G + H1)), ("lin2b", _ceil128(H1)),
                        ("b2", _ceil128(G)), ("lin3b", _ceil128(OUT))):
        b_off[name] = o
        o += width
    b_tot = o
    return w_off, w_tot, b_off, b_tot


# ----------------------------------------------------------------------------
# Fused kernel builder (Bp, T, H, H1, OUT and pack offsets are static ints)
# ----------------------------------------------------------------------------
def _build_kernel(Bp, T, H, H1, OUT, w_off, b_off):
    G = 4 * H       # gate width
    N = T * Bp      # time-major rows (row = t*Bp + b)

    def kernel(len_ref, x_ref, wbig_ref, wpack_ref, bpack_ref, y_ref,
               big_acc, gx2_buf):
        k = pl.program_id(0)
        nk = pl.num_programs(0)

        # ---- K-streamed shared projection: [x @ W_ih1 + b1 | linear1(x)] ----
        @pl.when(k == 0)
        def _init():
            bbig = bpack_ref[:, b_off["bbig"]:b_off["bbig"] + G + H1]  # (1,G+H1)
            big_acc[...] = jnp.broadcast_to(bbig, (N, G + H1))

        big_acc[...] += jnp.dot(x_ref[...], wbig_ref[...],
                                preferred_element_type=jnp.float32)

        # ---- everything else runs once, after the last K chunk --------------
        @pl.when(k == nk - 1)
        def _finish():
            lin2w = wpack_ref[:, w_off["lin2w"]:w_off["lin2w"] + H1]
            lin3w = wpack_ref[:, w_off["lin3w"]:w_off["lin3w"] + OUT]
            lin2b = bpack_ref[:, b_off["lin2b"]:b_off["lin2b"] + H1]
            b2 = bpack_ref[:, b_off["b2"]:b_off["b2"] + G]
            lin3b = bpack_ref[:, b_off["lin3b"]:b_off["lin3b"] + OUT]

            # attention path (dropout1 identity in eval mode)
            x1 = big_acc[:, G:G + H1]                              # linear1(x)
            z = jnp.dot(jax.nn.relu(x1), lin2w,
                        preferred_element_type=jnp.float32) + lin2b
            z = z - jnp.max(z, axis=-1, keepdims=True)
            e = jnp.exp(z)
            attn = e * pl.reciprocal(jnp.sum(e, axis=-1, keepdims=True),
                                     approx=True)
            attended = attn * x1                                   # (N, H1)

            # hoisted rnn2 input projection for timesteps 1..T
            w2ih = wpack_ref[:, w_off["w2ih"]:w_off["w2ih"] + G]
            gx2_buf[...] = jnp.dot(attended, w2ih,
                                   preferred_element_type=jnp.float32) + b2

            lens = len_ref[...]                                    # (Bp,1) i32

            # gates arrive in reordered [i | f | o | g] layout:
            # one sigmoid over (Bp,3H), one tanh over (Bp,H).
            def cell(gates, h, c, valid):
                ifo = jax.nn.sigmoid(gates[:, :3 * H])
                g = jnp.tanh(gates[:, 3 * H:])
                c_new = ifo[:, H:2 * H] * c + ifo[:, :H] * g
                h_new = ifo[:, 2 * H:3 * H] * jnp.tanh(c_new)
                return jnp.where(valid, h_new, h), jnp.where(valid, c_new, c)

            # rnn1 recurrence (fully unrolled; only h @ W_hh is serial)
            w1hh = wpack_ref[:, w_off["w1hh"]:w_off["w1hh"] + G]
            h = jnp.zeros((Bp, H), jnp.float32)
            c = jnp.zeros((Bp, H), jnp.float32)
            for t in range(T):
                gates = big_acc[t * Bp:(t + 1) * Bp, :G] + jnp.dot(
                    h, w1hh, preferred_element_type=jnp.float32)
                h, c = cell(gates, h, c, t < lens)
            h0 = h                                                 # (Bp, H)

            # rnn2 over cat([h0, attended], dim=1) with lengths + 1
            g2_first = jnp.dot(
                h0, wpack_ref[:, w_off["w2ih"]:w_off["w2ih"] + G],
                preferred_element_type=jnp.float32) + b2
            w2hh = wpack_ref[:, w_off["w2hh"]:w_off["w2hh"] + G]
            lens2 = lens + 1
            h = jnp.zeros((Bp, H), jnp.float32)
            c = jnp.zeros((Bp, H), jnp.float32)
            for t in range(T + 1):
                gin = g2_first if t == 0 else gx2_buf[(t - 1) * Bp:t * Bp, :]
                gates = gin + jnp.dot(h, w2hh,
                                      preferred_element_type=jnp.float32)
                h, c = cell(gates, h, c, t < lens2)
            h3 = h

            # head: linear3(h3 + h0)  (dropout2 identity in eval mode)
            y_ref[...] = jnp.dot(h3 + h0, lin3w,
                                 preferred_element_type=jnp.float32) + lin3b

    return kernel


# ----------------------------------------------------------------------------
# Forward wrapper: batch pad + one transpose/cast + one pallas_call
# ----------------------------------------------------------------------------
def video_subnet_forward(prepped, x, lengths, dims, tk=512):
    """x: (B, T, 2048) f32, lengths: (B,) int -> (B, out_size) f32."""
    B, T, D = x.shape
    H, H1, OUT = dims["H"], dims["H1"], dims["OUT"]
    G = 4 * H
    assert D % tk == 0
    nk = D // tk

    # pad batch to one sublane tile; padded rows get length 0 (fully masked)
    Bp = ((B + 7) // 8) * 8
    N = T * Bp
    x_p = jnp.pad(x, ((0, Bp - B), (0, 0), (0, 0)))
    lens_p = jnp.pad(lengths.astype(jnp.int32), (0, Bp - B)).reshape(Bp, 1)

    # time-major flattened rows (row = t*Bp + b); bf16 cast fused into the copy
    x_tm = jnp.transpose(x_p, (1, 0, 2)).reshape(N, D).astype(jnp.bfloat16)

    w_off, w_tot, b_off, b_tot = _pack_layout(H, H1, OUT)
    kernel = _build_kernel(Bp, T, H, H1, OUT, w_off, b_off)

    y = pl.pallas_call(
        kernel,
        out_shape=jax.ShapeDtypeStruct((Bp, OUT), jnp.float32),
        grid=(nk,),
        in_specs=[
            pl.BlockSpec((Bp, 1), lambda k: (0, 0)),       # lengths (resident)
            pl.BlockSpec((N, tk), lambda k: (0, k)),       # x, time-major bf16
            pl.BlockSpec((tk, G + H1), lambda k: (k, 0)),  # fused big weight bf16
            pl.BlockSpec((H, w_tot), lambda k: (0, 0)),    # packed small weights
            pl.BlockSpec((1, b_tot), lambda k: (0, 0)),    # packed biases
        ],
        out_specs=pl.BlockSpec((Bp, OUT), lambda k: (0, 0)),
        scratch_shapes=[
            pltpu.VMEM((N, G + H1), jnp.float32),          # shared projection acc
            pltpu.VMEM((N, G), jnp.float32),               # rnn2 input gates
        ],
        compiler_params=pltpu.CompilerParams(
            dimension_semantics=("arbitrary",)),
    )(lens_p, x_tm, prepped["wbig"], prepped["wpack"], prepped["bpack"])

    return y[:B]


# ----------------------------------------------------------------------------
# One-time parameter preprocessing: gate reorder, weight fusion, packing
# ----------------------------------------------------------------------------
def _reorder_gates(w, axis=-1):
    """PyTorch LSTM gate order [i, f, g, o] -> kernel order [i, f, o, g]."""
    i, f, g, o = jnp.split(w, 4, axis=axis)
    return jnp.concatenate([i, f, o, g], axis=axis)


def prepare_fused_params(p):
    H = p["rnn1_whh_t"].shape[0]
    G = 4 * H
    H1 = p["lin1_w_t"].shape[1]
    OUT = p["lin3_w_t"].shape[1]

    wih1 = _reorder_gates(p["rnn1_wih_t"])
    b1 = _reorder_gates(p["rnn1_b"])
    w1hh = _reorder_gates(p["rnn1_whh_t"])
    w2ih = _reorder_gates(p["rnn2_wih_t"])
    w2hh = _reorder_gates(p["rnn2_whh_t"])
    b2 = _reorder_gates(p["rnn2_b"])

    # shared 2048-wide projection: [rnn1 W_ih | linear1 W], stored bf16
    wbig = jnp.concatenate([wih1, p["lin1_w_t"]], axis=1).astype(jnp.bfloat16)

    w_off, w_tot, b_off, b_tot = _pack_layout(H, H1, OUT)

    wpack = jnp.zeros((H, w_tot), jnp.float32)
    wpack = wpack.at[:, w_off["w1hh"]:w_off["w1hh"] + G].set(w1hh)
    wpack = wpack.at[:, w_off["w2ih"]:w_off["w2ih"] + G].set(w2ih)
    wpack = wpack.at[:, w_off["w2hh"]:w_off["w2hh"] + G].set(w2hh)
    wpack = wpack.at[:, w_off["lin2w"]:w_off["lin2w"] + H1].set(p["lin2_w_t"])
    wpack = wpack.at[:, w_off["lin3w"]:w_off["lin3w"] + OUT].set(p["lin3_w_t"])

    bbig = jnp.concatenate([b1, p["lin1_b"]], axis=0)
    bpack = jnp.zeros((1, b_tot), jnp.float32)
    bpack = bpack.at[:, b_off["bbig"]:b_off["bbig"] + G + H1].set(bbig[None, :])
    bpack = bpack.at[:, b_off["lin2b"]:b_off["lin2b"] + H1].set(p["lin2_b"][None, :])
    bpack = bpack.at[:, b_off["b2"]:b_off["b2"] + G].set(b2[None, :])
    bpack = bpack.at[:, b_off["lin3b"]:b_off["lin3b"] + OUT].set(p["lin3_b"][None, :])

    prepped = {"wbig": wbig, "wpack": wpack, "bpack": bpack}
    dims = {"H": H, "H1": H1, "OUT": OUT}
    return prepped, dims


# ----------------------------------------------------------------------------
# Pure-JAX reference (PyTorch eval-mode semantics, original gate order) for the
# correctness check.  The only intentional deviation from exact f32 semantics
# is that the shared 2048-wide input projection runs in bf16, as in the kernel.
# ----------------------------------------------------------------------------
def _ref_lstm_final_from_gates(gx, lengths, w_hh_t):
    B, T, G = gx.shape
    H = G // 4
    h = jnp.zeros((B, H), jnp.float32)
    c = jnp.zeros((B, H), jnp.float32)
    for t in range(T):
        gates = gx[:, t, :] + h @ w_hh_t
        i = jax.nn.sigmoid(gates[:, 0 * H:1 * H])
        f = jax.nn.sigmoid(gates[:, 1 * H:2 * H])
        g = jnp.tanh(gates[:, 2 * H:3 * H])
        o = jax.nn.sigmoid(gates[:, 3 * H:4 * H])
        c_new = f * c + i * g
        h_new = o * jnp.tanh(c_new)
        mask = (t < lengths)[:, None]
        h = jnp.where(mask, h_new, h)
        c = jnp.where(mask, c_new, c)
    return h


def _ref_forward(params, x, lengths):
    B, T, D = x.shape
    H = params["rnn1_whh_t"].shape[0]
    G = 4 * H
    wbig = jnp.concatenate([params["rnn1_wih_t"], params["lin1_w_t"]],
                           axis=1).astype(jnp.bfloat16)
    bbig = jnp.concatenate([params["rnn1_b"], params["lin1_b"]], axis=0)
    big = jnp.dot(x.reshape(B * T, D).astype(jnp.bfloat16), wbig,
                  preferred_element_type=jnp.float32).reshape(B, T, -1) + bbig
    gx1 = big[..., :G]          # x @ W_ih1 + b1
    x1 = big[..., G:]           # linear1(x)

    h0 = _ref_lstm_final_from_gates(gx1, lengths, params["rnn1_whh_t"])

    z = jax.nn.relu(x1) @ params["lin2_w_t"] + params["lin2_b"]
    attn = jax.nn.softmax(z, axis=-1)
    attended = attn * x1
    h2 = jnp.concatenate([h0[:, None, :], attended], axis=1)        # (B, T+1, 64)
    gx2 = h2 @ params["rnn2_wih_t"] + params["rnn2_b"]
    h3 = _ref_lstm_final_from_gates(gx2, lengths + 1, params["rnn2_whh_t"])
    return (h3 + h0) @ params["lin3_w_t"] + params["lin3_b"]


# ----------------------------------------------------------------------------
# Deterministic parameter construction (module shapes; no checkpoint loading)
# ----------------------------------------------------------------------------
def make_params(key, in_size=2048, hidden_size=64, out_size=32):
    def uniform(key, shape, bound):
        return jax.random.uniform(key, shape, jnp.float32, -bound, bound)

    ks = jax.random.split(key, 16)
    kH = 1.0 / math.sqrt(hidden_size)
    return {
        # rnn1: LSTM(in_size -> hidden_size); stored transposed (D, 4H), (H, 4H)
        "rnn1_wih_t": uniform(ks[0], (in_size, 4 * hidden_size), kH),
        "rnn1_whh_t": uniform(ks[1], (hidden_size, 4 * hidden_size), kH),
        "rnn1_b": uniform(ks[2], (4 * hidden_size,), kH)
        + uniform(ks[3], (4 * hidden_size,), kH),          # b_ih + b_hh
        # rnn2: LSTM(64 -> 64)
        "rnn2_wih_t": uniform(ks[4], (64, 256), 1.0 / 8.0),
        "rnn2_whh_t": uniform(ks[5], (64, 256), 1.0 / 8.0),
        "rnn2_b": uniform(ks[6], (256,), 1.0 / 8.0) + uniform(ks[7], (256,), 1.0 / 8.0),
        # linear1: 2048 -> 64 (stored transposed)
        "lin1_w_t": uniform(ks[8], (2048, 64), 1.0 / math.sqrt(2048)),
        "lin1_b": uniform(ks[9], (64,), 1.0 / math.sqrt(2048)),
        # linear2: 64 -> 64
        "lin2_w_t": uniform(ks[10], (64, 64), 1.0 / 8.0),
        "lin2_b": uniform(ks[11], (64,), 1.0 / 8.0),
        # linear3: hidden_size -> out_size
        "lin3_w_t": uniform(ks[12], (hidden_size, out_size), kH),
        "lin3_b": uniform(ks[13], (out_size,), kH),
    }


if __name__ == "__main__":
    # Shapes consistent with the module: linear1 forces in_size=2048 and the
    # concat / residual-add forces hidden_size=64; batch=2, seq=8, out=32.
    B, T, IN, HID, OUT = 2, 8, 2048, 64, 32
    key = jax.random.PRNGKey(0)
    k_params, k_x = jax.random.split(key)

    params = make_params(k_params, in_size=IN, hidden_size=HID, out_size=OUT)
    prepped, dims = prepare_fused_params(params)
    x = jax.random.normal(k_x, (B, T, IN), jnp.float32)
    lengths = jnp.array([T, 5], dtype=jnp.int32)   # valid lengths per sequence

    fwd = jax.jit(lambda pr, xx, ln: video_subnet_forward(pr, xx, ln, dims))
    y = jax.block_until_ready(fwd(prepped, x, lengths))

    y_ref = jax.block_until_ready(_ref_forward(params, x, lengths))
    assert y.shape == (B, OUT)
    np.testing.assert_allclose(np.asarray(y), np.asarray(y_ref), rtol=1e-2, atol=1e-2)

    print("KERNEL_OK")
</pallas_src>

<mosaic_0001>
module attributes {stable_mosaic.version = 11 : i64} {
  func.func @kernel(%arg0: i32, %arg1: memref<8x1xi32, #tpu.memory_space<vmem>>, %arg2: memref<64x512xbf16, #tpu.memory_space<vmem>>, %arg3: memref<512x320xbf16, #tpu.memory_space<vmem>>, %arg4: memref<64x1024xf32, #tpu.memory_space<vmem>>, %arg5: memref<1x896xf32, #tpu.memory_space<vmem>>, %arg6: memref<8x32xf32, #tpu.memory_space<vmem>>, %arg7: memref<64x320xf32, #tpu.memory_space<vmem>>, %arg8: memref<64x256xf32, #tpu.memory_space<vmem>>) attributes {dimension_semantics = [#tpu.dimension_semantics<arbitrary>], iteration_bounds = array<i64: 4>, scalar_prefetch = 0 : i64, scratch_operands = 2 : i64, tpu.core_type = #tpu.core_type<tc>, window_params = [{pipeline_mode = #tpu.pipeline_mode<synchronous>, transform_indices = @transform_0, window_bounds = array<i64: 8, 1>}, {transform_indices = @transform_1, window_bounds = array<i64: 64, 512>}, {transform_indices = @transform_2, window_bounds = array<i64: 512, 320>}, {pipeline_mode = #tpu.pipeline_mode<synchronous>, transform_indices = @transform_3, window_bounds = array<i64: 64, 1024>}, {pipeline_mode = #tpu.pipeline_mode<synchronous>, transform_indices = @transform_4, window_bounds = array<i64: 1, 896>}, {pipeline_mode = #tpu.pipeline_mode<synchronous>, transform_indices = @transform_5, window_bounds = array<i64: 8, 32>}]} {
    %c0_i32 = arith.constant 0 : i32
    %0 = arith.cmpi eq, %arg0, %c0_i32 : i32
    %1 = arith.extui %0 : i1 to i32
    %c0_i32_0 = arith.constant 0 : i32
    %2 = arith.cmpi ne, %1, %c0_i32_0 : i32
    scf.if %2 {
      %c0_9 = arith.constant 0 : index
      %c0_10 = arith.constant 0 : index
      %12 = vector.load %arg5[%c0_9, %c0_10] : memref<1x896xf32, #tpu.memory_space<vmem>>, vector<1x320xf32>
      %13 = vector.shape_cast %12 : vector<1x320xf32> to vector<1x320xf32>
      %14 = vector.broadcast %13 : vector<1x320xf32> to vector<64x320xf32>
      %c0_11 = arith.constant 0 : index
      %c0_12 = arith.constant 0 : index
      %15 = vector.load %arg7[%c0_11, %c0_12] : memref<64x320xf32, #tpu.memory_space<vmem>>, vector<64x320xf32>
      tpu.vector_store %arg7[%c0_11, %c0_12], %14 {strides = array<i32>} : memref<64x320xf32, #tpu.memory_space<vmem>>, vector<64x320xf32>,
    } else {
    }
    %c0 = arith.constant 0 : index
    %c0_1 = arith.constant 0 : index
    %3 = vector.load %arg7[%c0, %c0_1] : memref<64x320xf32, #tpu.memory_space<vmem>>, vector<64x320xf32>
    %c0_2 = arith.constant 0 : index
    %c0_3 = arith.constant 0 : index
    %4 = vector.load %arg2[%c0_2, %c0_3] : memref<64x512xbf16, #tpu.memory_space<vmem>>, vector<64x512xbf16>
    %c0_4 = arith.constant 0 : index
    %c0_5 = arith.constant 0 : index
    %5 = vector.load %arg3[%c0_4, %c0_5] : memref<512x320xbf16, #tpu.memory_space<vmem>>, vector<512x320xbf16>
    %cst = arith.constant dense<0.000000e+00> : vector<64x320xf32>
    %6 = tpu.matmul %4, %5, %cst {dimension_numbers = #tpu.dot_dimension_numbers<[1], [0], [0], [1], [0, 0, 1, 1], [], []>} : vector<64x512xbf16>, vector<512x320xbf16>, vector<64x320xf32> -> vector<64x320xf32>
    %7 = arith.addf %3, %6 : vector<64x320xf32>
    %c0_6 = arith.constant 0 : index
    %c0_7 = arith.constant 0 : index
    %8 = vector.load %arg7[%c0_6, %c0_7] : memref<64x320xf32, #tpu.memory_space<vmem>>, vector<64x320xf32>
    tpu.vector_store %arg7[%c0_6, %c0_7], %7 {strides = array<i32>} : memref<64x320xf32, #tpu.memory_space<vmem>>, vector<64x320xf32>,
    %c3_i32 = arith.constant 3 : i32
    %9 = arith.cmpi eq, %arg0, %c3_i32 : i32
    %10 = arith.extui %9 : i1 to i32
    %c0_i32_8 = arith.constant 0 : i32
    %11 = arith.cmpi ne, %10, %c0_i32_8 : i32
    scf.if %11 {
      %c0_9 = arith.constant 0 : index
      %c768 = arith.constant 768 : index
      %12 = vector.load %arg4[%c0_9, %c768] : memref<64x1024xf32, #tpu.memory_space<vmem>>, vector<64x64xf32>
      %c0_10 = arith.constant 0 : index
      %c896 = arith.constant 896 : index
      %13 = vector.load %arg4[%c0_10, %c896] : memref<64x1024xf32, #tpu.memory_space<vmem>>, vector<64x32xf32>
      %c0_11 = arith.constant 0 : index
      %c384 = arith.constant 384 : index
      %14 = vector.load %arg5[%c0_11, %c384] : memref<1x896xf32, #tpu.memory_space<vmem>>, vector<1x64xf32>
      %c0_12 = arith.constant 0 : index
      %c512 = arith.constant 512 : index
      %15 = vector.load %arg5[%c0_12, %c512] : memref<1x896xf32, #tpu.memory_space<vmem>>, vector<1x256xf32>
      %c0_13 = arith.constant 0 : index
      %c768_14 = arith.constant 768 : index
      %16 = vector.load %arg5[%c0_13, %c768_14] : memref<1x896xf32, #tpu.memory_space<vmem>>, vector<1x32xf32>
      %c0_15 = arith.constant 0 : index
      %c256 = arith.constant 256 : index
      %17 = vector.load %arg7[%c0_15, %c256] : memref<64x320xf32, #tpu.memory_space<vmem>>, vector<64x64xf32>
      %cst_16 = arith.constant 0.000000e+00 : f32
      %18 = vector.broadcast %cst_16 : f32 to vector<64x64xf32>
      %19 = arith.maximumf %17, %18 : vector<64x64xf32>
      %cst_17 = arith.constant dense<0.000000e+00> : vector<64x64xf32>
      %20 = tpu.matmul %19, %12, %cst_17 {dimension_numbers = #tpu.dot_dimension_numbers<[1], [0], [0], [1], [0, 0, 1, 1], [], []>} : vector<64x64xf32>, vector<64x64xf32>, vector<64x64xf32> -> vector<64x64xf32>
      %21 = vector.broadcast %14 : vector<1x64xf32> to vector<64x64xf32>
      %22 = arith.addf %20, %21 : vector<64x64xf32>
      %cst_18 = arith.constant dense<0xFF800000> : vector<64xf32>
      %23 = vector.multi_reduction <maximumf>, %22, %cst_18 [1] : vector<64x64xf32> to vector<64xf32>
      %24 = vector.shape_cast %23 : vector<64xf32> to vector<64x1xf32>
      %25 = vector.broadcast %24 : vector<64x1xf32> to vector<64x64xf32>
      %26 = arith.subf %22, %25 : vector<64x64xf32>
      %27 = math.exp %26 : vector<64x64xf32>
      %cst_19 = arith.constant dense<0.000000e+00> : vector<64xf32>
      %28 = vector.multi_reduction <add>, %27, %cst_19 [1] : vector<64x64xf32> to vector<64xf32>
      %29 = vector.shape_cast %28 : vector<64xf32> to vector<64x1xf32>
      %30 = tpu.reciprocal %29 {approx = true} : vector<64x1xf32> -> vector<64x1xf32>
      %31 = vector.broadcast %30 : vector<64x1xf32> to vector<64x64xf32>
      %32 = arith.mulf %27, %31 : vector<64x64xf32>
      %33 = arith.mulf %32, %17 : vector<64x64xf32>
      %c0_20 = arith.constant 0 : index
      %c256_21 = arith.constant 256 : index
      %34 = vector.load %arg4[%c0_20, %c256_21] : memref<64x1024xf32, #tpu.memory_space<vmem>>, vector<64x256xf32>
      %cst_22 = arith.constant dense<0.000000e+00> : vector<64x256xf32>
      %35 = tpu.matmul %33, %34, %cst_22 {dimension_numbers = #tpu.dot_dimension_numbers<[1], [0], [0], [1], [0, 0, 1, 1], [], []>} : vector<64x64xf32>, vector<64x256xf32>, vector<64x256xf32> -> vector<64x256xf32>
      %36 = vector.broadcast %15 : vector<1x256xf32> to vector<64x256xf32>
      %37 = arith.addf %35, %36 : vector<64x256xf32>
      %c0_23 = arith.constant 0 : index
      %c0_24 = arith.constant 0 : index
      %38 = vector.load %arg8[%c0_23, %c0_24] : memref<64x256xf32, #tpu.memory_space<vmem>>, vector<64x256xf32>
      tpu.vector_store %arg8[%c0_23, %c0_24], %37 {strides = array<i32>} : memref<64x256xf32, #tpu.memory_space<vmem>>, vector<64x256xf32>,
      %c0_25 = arith.constant 0 : index
      %c0_26 = arith.constant 0 : index
      %39 = vector.load %arg1[%c0_25, %c0_26] : memref<8x1xi32, #tpu.memory_space<vmem>>, vector<8x1xi32>
      %c0_27 = arith.constant 0 : index
      %c0_28 = arith.constant 0 : index
      %40 = vector.load %arg4[%c0_27, %c0_28] : memref<64x1024xf32, #tpu.memory_space<vmem>>, vector<64x256xf32>
      %cst_29 = arith.constant 0.000000e+00 : f32
      %41 = vector.broadcast %cst_29 : f32 to vector<8x64xf32>
      %cst_30 = arith.constant 0.000000e+00 : f32
      %42 = vector.broadcast %cst_30 : f32 to vector<8x64xf32>
      %c0_31 = arith.constant 0 : index
      %c0_32 = arith.constant 0 : index
      %43 = vector.load %arg7[%c0_31, %c0_32] : memref<64x320xf32, #tpu.memory_space<vmem>>, vector<8x256xf32>
      %cst_33 = arith.constant dense<0.000000e+00> : vector<8x256xf32>
      %44 = tpu.matmul %41, %40, %cst_33 {dimension_numbers = #tpu.dot_dimension_numbers<[1], [0], [0], [1], [0, 0, 1, 1], [], []>} : vector<8x64xf32>, vector<64x256xf32>, vector<8x256xf32> -> vector<8x256xf32>
      %45 = arith.addf %43, %44 : vector<8x256xf32>
      %c0_i32_34 = arith.constant 0 : i32
      %46 = vector.broadcast %c0_i32_34 : i32 to vector<8x1xi32>
      %47 = arith.cmpi sgt, %39, %46 : vector<8x1xi32>
      %48 = vector.extract_strided_slice %45 {offsets = [0, 0], sizes = [8, 192], strides = [1, 1]} : vector<8x256xf32> to vector<8x192xf32>
      %49 = arith.negf %48 : vector<8x192xf32>
      %50 = math.exp %49 : vector<8x192xf32>
      %cst_35 = arith.constant 1.000000e+00 : f32
      %51 = vector.broadcast %cst_35 : f32 to vector<8x192xf32>
      %52 = arith.addf %51, %50 : vector<8x192xf32>
      %53 = arith.divf %51, %52 : vector<8x192xf32>
      %54 = vector.extract_strided_slice %45 {offsets = [0, 192], sizes = [8, 64], strides = [1, 1]} : vector<8x256xf32> to vector<8x64xf32>
      %55 = math.tanh %54 : vector<8x64xf32>
      %56 = vector.extract_strided_slice %53 {offsets = [0, 64], sizes = [8, 64], strides = [1, 1]} : vector<8x192xf32> to vector<8x64xf32>
      %57 = arith.mulf %56, %42 : vector<8x64xf32>
      %58 = vector.extract_strided_slice %53 {offsets = [0, 0], sizes = [8, 64], strides = [1, 1]} : vector<8x192xf32> to vector<8x64xf32>
      %59 = arith.mulf %58, %55 : vector<8x64xf32>
      %60 = arith.addf %57, %59 : vector<8x64xf32>
      %61 = vector.extract_strided_slice %53 {offsets = [0, 128], sizes = [8, 64], strides = [1, 1]} : vector<8x192xf32> to vector<8x64xf32>
      %62 = math.tanh %60 : vector<8x64xf32>
      %63 = arith.mulf %61, %62 : vector<8x64xf32>
      %64 = vector.shape_cast %47 : vector<8x1xi1> to vector<8x1xi1>
      %65 = vector.broadcast %64 : vector<8x1xi1> to vector<8x64xi1>
      %66 = arith.select %65, %63, %41 : vector<8x64xi1>, vector<8x64xf32>
      %67 = vector.shape_cast %47 : vector<8x1xi1> to vector<8x1xi1>
      %68 = vector.broadcast %67 : vector<8x1xi1> to vector<8x64xi1>
      %69 = arith.select %68, %60, %42 : vector<8x64xi1>, vector<8x64xf32>
      %c8 = arith.constant 8 : index
      %c0_36 = arith.constant 0 : index
      %70 = vector.load %arg7[%c8, %c0_36] : memref<64x320xf32, #tpu.memory_space<vmem>>, vector<8x256xf32>
      %cst_37 = arith.constant dense<0.000000e+00> : vector<8x256xf32>
      %71 = tpu.matmul %66, %40, %cst_37 {dimension_numbers = #tpu.dot_dimension_numbers<[1], [0], [0], [1], [0, 0, 1, 1], [], []>} : vector<8x64xf32>, vector<64x256xf32>, vector<8x256xf32> -> vector<8x256xf32>
      %72 = arith.addf %70, %71 : vector<8x256xf32>
      %c1_i32 = arith.constant 1 : i32
      %73 = vector.broadcast %c1_i32 : i32 to vector<8x1xi32>
      %74 = arith.cmpi sgt, %39, %73 : vector<8x1xi32>
      %75 = vector.extract_strided_slice %72 {offsets = [0, 0], sizes = [8, 192], strides = [1, 1]} : vector<8x256xf32> to vector<8x192xf32>
      %76 = arith.negf %75 : vector<8x192xf32>
      %77 = math.exp %76 : vector<8x192xf32>
      %cst_38 = arith.constant 1.000000e+00 : f32
      %78 = vector.broadcast %cst_38 : f32 to vector<8x192xf32>
      %79 = arith.addf %78, %77 : vector<8x192xf32>
      %80 = arith.divf %78, %79 : vector<8x192xf32>
      %81 = vector.extract_strided_slice %72 {offsets = [0, 192], sizes = [8, 64], strides = [1, 1]} : vector<8x256xf32> to vector<8x64xf32>
      %82 = math.tanh %81 : vector<8x64xf32>
      %83 = vector.extract_strided_slice %80 {offsets = [0, 64], sizes = [8, 64], strides = [1, 1]} : vector<8x192xf32> to vector<8x64xf32>
      %84 = arith.mulf %83, %69 : vector<8x64xf32>
      %85 = vector.extract_strided_slice %80 {offsets = [0, 0], sizes = [8, 64], strides = [1, 1]} : vector<8x192xf32> to vector<8x64xf32>
      %86 = arith.mulf %85, %82 : vector<8x64xf32>
      %87 = arith.addf %84, %86 : vector<8x64xf32>
      %88 = vector.extract_strided_slice %80 {offsets = [0, 128], sizes = [8, 64], strides = [1, 1]} : vector<8x192xf32> to vector<8x64xf32>
      %89 = math.tanh %87 : vector<8x64xf32>
      %90 = arith.mulf %88, %89 : vector<8x64xf32>
      %91 = vector.shape_cast %74 : vector<8x1xi1> to vector<8x1xi1>
      %92 = vector.broadcast %91 : vector<8x1xi1> to vector<8x64xi1>
      %93 = arith.select %92, %90, %66 : vector<8x64xi1>, vector<8x64xf32>
      %94 = vector.shape_cast %74 : vector<8x1xi1> to vector<8x1xi1>
      %95 = vector.broadcast %94 : vector<8x1xi1> to vector<8x64xi1>
      %96 = arith.select %95, %87, %69 : vector<8x64xi1>, vector<8x64xf32>
      %c16 = arith.constant 16 : index
      %c0_39 = arith.constant 0 : index
      %97 = vector.load %arg7[%c16, %c0_39] : memref<64x320xf32, #tpu.memory_space<vmem>>, vector<8x256xf32>
      %cst_40 = arith.constant dense<0.000000e+00> : vector<8x256xf32>
      %98 = tpu.matmul %93, %40, %cst_40 {dimension_numbers = #tpu.dot_dimension_numbers<[1], [0], [0], [1], [0, 0, 1, 1], [], []>} : vector<8x64xf32>, vector<64x256xf32>, vector<8x256xf32> -> vector<8x256xf32>
      %99 = arith.addf %97, %98 : vector<8x256xf32>
      %c2_i32 = arith.constant 2 : i32
      %100 = vector.broadcast %c2_i32 : i32 to vector<8x1xi32>
      %101 = arith.cmpi sgt, %39, %100 : vector<8x1xi32>
      %102 = vector.extract_strided_slice %99 {offsets = [0, 0], sizes = [8, 192], strides = [1, 1]} : vector<8x256xf32> to vector<8x192xf32>
      %103 = arith.negf %102 : vector<8x192xf32>
      %104 = math.exp %103 : vector<8x192xf32>
      %cst_41 = arith.constant 1.000000e+00 : f32
      %105 = vector.broadcast %cst_41 : f32 to vector<8x192xf32>
      %106 = arith.addf %105, %104 : vector<8x192xf32>
      %107 = arith.divf %105, %106 : vector<8x192xf32>
      %108 = vector.extract_strided_slice %99 {offsets = [0, 192], sizes = [8, 64], strides = [1, 1]} : vector<8x256xf32> to vector<8x64xf32>
      %109 = math.tanh %108 : vector<8x64xf32>
      %110 = vector.extract_strided_slice %107 {offsets = [0, 64], sizes = [8, 64], strides = [1, 1]} : vector<8x192xf32> to vector<8x64xf32>
      %111 = arith.mulf %110, %96 : vector<8x64xf32>
      %112 = vector.extract_strided_slice %107 {offsets = [0, 0], sizes = [8, 64], strides = [1, 1]} : vector<8x192xf32> to vector<8x64xf32>
      %113 = arith.mulf %112, %109 : vector<8x64xf32>
      %114 = arith.addf %111, %113 : vector<8x64xf32>
      %115 = vector.extract_strided_slice %107 {offsets = [0, 128], sizes = [8, 64], strides = [1, 1]} : vector<8x192xf32> to vector<8x64xf32>
      %116 = math.tanh %114 : vector<8x64xf32>
      %117 = arith.mulf %115, %116 : vector<8x64xf32>
      %118 = vector.shape_cast %101 : vector<8x1xi1> to vector<8x1xi1>
      %119 = vector.broadcast %118 : vector<8x1xi1> to vector<8x64xi1>
      %120 = arith.select %119, %117, %93 : vector<8x64xi1>, vector<8x64xf32>
      %121 = vector.shape_cast %101 : vector<8x1xi1> to vector<8x1xi1>
      %122 = vector.broadcast %121 : vector<8x1xi1> to vector<8x64xi1>
      %123 = arith.select %122, %114, %96 : vector<8x64xi1>, vector<8x64xf32>
      %c24 = arith.constant 24 : index
      %c0_42 = arith.constant 0 : index
      %124 = vector.load %arg7[%c24, %c0_42] : memref<64x320xf32, #tpu.memory_space<vmem>>, vector<8x256xf32>
      %cst_43 = arith.constant dense<0.000000e+00> : vector<8x256xf32>
      %125 = tpu.matmul %120, %40, %cst_43 {dimension_numbers = #tpu.dot_dimension_numbers<[1], [0], [0], [1], [0, 0, 1, 1], [], []>} : vector<8x64xf32>, vector<64x256xf32>, vector<8x256xf32> -> vector<8x256xf32>
      %126 = arith.addf %124, %125 : vector<8x256xf32>
      %c3_i32_44 = arith.constant 3 : i32
      %127 = vector.broadcast %c3_i32_44 : i32 to vector<8x1xi32>
      %128 = arith.cmpi sgt, %39, %127 : vector<8x1xi32>
      %129 = vector.extract_strided_slice %126 {offsets = [0, 0], sizes = [8, 192], strides = [1, 1]} : vector<8x256xf32> to vector<8x192xf32>
      %130 = arith.negf %129 : vector<8x192xf32>
      %131 = math.exp %130 : vector<8x192xf32>
      %cst_45 = arith.constant 1.000000e+00 : f32
      %132 = vector.broadcast %cst_45 : f32 to vector<8x192xf32>
      %133 = arith.addf %132, %131 : vector<8x192xf32>
      %134 = arith.divf %132, %133 : vector<8x192xf32>
      %135 = vector.extract_strided_slice %126 {offsets = [0, 192], sizes = [8, 64], strides = [1, 1]} : vector<8x256xf32> to vector<8x64xf32>
      %136 = math.tanh %135 : vector<8x64xf32>
      %137 = vector.extract_strided_slice %134 {offsets = [0, 64], sizes = [8, 64], strides = [1, 1]} : vector<8x192xf32> to vector<8x64xf32>
      %138 = arith.mulf %137, %123 : vector<8x64xf32>
      %139 = vector.extract_strided_slice %134 {offsets = [0, 0], sizes = [8, 64], strides = [1, 1]} : vector<8x192xf32> to vector<8x64xf32>
      %140 = arith.mulf %139, %136 : vector<8x64xf32>
      %141 = arith.addf %138, %140 : vector<8x64xf32>
      %142 = vector.extract_strided_slice %134 {offsets = [0, 128], sizes = [8, 64], strides = [1, 1]} : vector<8x192xf32> to vector<8x64xf32>
      %143 = math.tanh %141 : vector<8x64xf32>
      %144 = arith.mulf %142, %143 : vector<8x64xf32>
      %145 = vector.shape_cast %128 : vector<8x1xi1> to vector<8x1xi1>
      %146 = vector.broadcast %145 : vector<8x1xi1> to vector<8x64xi1>
      %147 = arith.select %146, %144, %120 : vector<8x64xi1>, vector<8x64xf32>
      %148 = vector.shape_cast %128 : vector<8x1xi1> to vector<8x1xi1>
      %149 = vector.broadcast %148 : vector<8x1xi1> to vector<8x64xi1>
      %150 = arith.select %149, %141, %123 : vector<8x64xi1>, vector<8x64xf32>
      %c32 = arith.constant 32 : index
      %c0_46 = arith.constant 0 : index
      %151 = vector.load %arg7[%c32, %c0_46] : memref<64x320xf32, #tpu.memory_space<vmem>>, vector<8x256xf32>
      %cst_47 = arith.constant dense<0.000000e+00> : vector<8x256xf32>
      %152 = tpu.matmul %147, %40, %cst_47 {dimension_numbers = #tpu.dot_dimension_numbers<[1], [0], [0], [1], [0, 0, 1, 1], [], []>} : vector<8x64xf32>, vector<64x256xf32>, vector<8x256xf32> -> vector<8x256xf32>
      %153 = arith.addf %151, %152 : vector<8x256xf32>
      %c4_i32 = arith.constant 4 : i32
      %154 = vector.broadcast %c4_i32 : i32 to vector<8x1xi32>
      %155 = arith.cmpi sgt, %39, %154 : vector<8x1xi32>
      %156 = vector.extract_strided_slice %153 {offsets = [0, 0], sizes = [8, 192], strides = [1, 1]} : vector<8x256xf32> to vector<8x192xf32>
      %157 = arith.negf %156 : vector<8x192xf32>
      %158 = math.exp %157 : vector<8x192xf32>
      %cst_48 = arith.constant 1.000000e+00 : f32
      %159 = vector.broadcast %cst_48 : f32 to vector<8x192xf32>
      %160 = arith.addf %159, %158 : vector<8x192xf32>
      %161 = arith.divf %159, %160 : vector<8x192xf32>
      %162 = vector.extract_strided_slice %153 {offsets = [0, 192], sizes = [8, 64], strides = [1, 1]} : vector<8x256xf32> to vector<8x64xf32>
      %163 = math.tanh %162 : vector<8x64xf32>
      %164 = vector.extract_strided_slice %161 {offsets = [0, 64], sizes = [8, 64], strides = [1, 1]} : vector<8x192xf32> to vector<8x64xf32>
      %165 = arith.mulf %164, %150 : vector<8x64xf32>
      %166 = vector.extract_strided_slice %161 {offsets = [0, 0], sizes = [8, 64], strides = [1, 1]} : vector<8x192xf32> to vector<8x64xf32>
      %167 = arith.mulf %166, %163 : vector<8x64xf32>
      %168 = arith.addf %165, %167 : vector<8x64xf32>
      %169 = vector.extract_strided_slice %161 {offsets = [0, 128], sizes = [8, 64], strides = [1, 1]} : vector<8x192xf32> to vector<8x64xf32>
      %170 = math.tanh %168 : vector<8x64xf32>
      %171 = arith.mulf %169, %170 : vector<8x64xf32>
      %172 = vector.shape_cast %155 : vector<8x1xi1> to vector<8x1xi1>
      %173 = vector.broadcast %172 : vector<8x1xi1> to vector<8x64xi1>
      %174 = arith.select %173, %171, %147 : vector<8x64xi1>, vector<8x64xf32>
      %175 = vector.shape_cast %155 : vector<8x1xi1> to vector<8x1xi1>
      %176 = vector.broadcast %175 : vector<8x1xi1> to vector<8x64xi1>
      %177 = arith.select %176, %168, %150 : vector<8x64xi1>, vector<8x64xf32>
      %c40 = arith.constant 40 : index
      %c0_49 = arith.constant 0 : index
      %178 = vector.load %arg7[%c40, %c0_49] : memref<64x320xf32, #tpu.memory_space<vmem>>, vector<8x256xf32>
      %cst_50 = arith.constant dense<0.000000e+00> : vector<8x256xf32>
      %179 = tpu.matmul %174, %40, %cst_50 {dimension_numbers = #tpu.dot_dimension_numbers<[1], [0], [0], [1], [0, 0, 1, 1], [], []>} : vector<8x64xf32>, vector<64x256xf32>, vector<8x256xf32> -> vector<8x256xf32>
      %180 = arith.addf %178, %179 : vector<8x256xf32>
      %c5_i32 = arith.constant 5 : i32
      %181 = vector.broadcast %c5_i32 : i32 to vector<8x1xi32>
      %182 = arith.cmpi sgt, %39, %181 : vector<8x1xi32>
      %183 = vector.extract_strided_slice %180 {offsets = [0, 0], sizes = [8, 192], strides = [1, 1]} : vector<8x256xf32> to vector<8x192xf32>
      %184 = arith.negf %183 : vector<8x192xf32>
      %185 = math.exp %184 : vector<8x192xf32>
      %cst_51 = arith.constant 1.000000e+00 : f32
      %186 = vector.broadcast %cst_51 : f32 to vector<8x192xf32>
      %187 = arith.addf %186, %185 : vector<8x192xf32>
      %188 = arith.divf %186, %187 : vector<8x192xf32>
      %189 = vector.extract_strided_slice %180 {offsets = [0, 192], sizes = [8, 64], strides = [1, 1]} : vector<8x256xf32> to vector<8x64xf32>
      %190 = math.tanh %189 : vector<8x64xf32>
      %191 = vector.extract_strided_slice %188 {offsets = [0, 64], sizes = [8, 64], strides = [1, 1]} : vector<8x192xf32> to vector<8x64xf32>
      %192 = arith.mulf %191, %177 : vector<8x64xf32>
      %193 = vector.extract_strided_slice %188 {offsets = [0, 0], sizes = [8, 64], strides = [1, 1]} : vector<8x192xf32> to vector<8x64xf32>
      %194 = arith.mulf %193, %190 : vector<8x64xf32>
      %195 = arith.addf %192, %194 : vector<8x64xf32>
      %196 = vector.extract_strided_slice %188 {offsets = [0, 128], sizes = [8, 64], strides = [1, 1]} : vector<8x192xf32> to vector<8x64xf32>
      %197 = math.tanh %195 : vector<8x64xf32>
      %198 = arith.mulf %196, %197 : vector<8x64xf32>
      %199 = vector.shape_cast %182 : vector<8x1xi1> to vector<8x1xi1>
      %200 = vector.broadcast %199 : vector<8x1xi1> to vector<8x64xi1>
      %201 = arith.select %200, %198, %174 : vector<8x64xi1>, vector<8x64xf32>
      %202 = vector.shape_cast %182 : vector<8x1xi1> to vector<8x1xi1>
      %203 = vector.broadcast %202 : vector<8x1xi1> to vector<8x64xi1>
      %204 = arith.select %203, %195, %177 : vector<8x64xi1>, vector<8x64xf32>
      %c48 = arith.constant 48 : index
      %c0_52 = arith.constant 0 : index
      %205 = vector.load %arg7[%c48, %c0_52] : memref<64x320xf32, #tpu.memory_space<vmem>>, vector<8x256xf32>
      %cst_53 = arith.constant dense<0.000000e+00> : vector<8x256xf32>
      %206 = tpu.matmul %201, %40, %cst_53 {dimension_numbers = #tpu.dot_dimension_numbers<[1], [0], [0], [1], [0, 0, 1, 1], [], []>} : vector<8x64xf32>, vector<64x256xf32>, vector<8x256xf32> -> vector<8x256xf32>
      %207 = arith.addf %205, %206 : vector<8x256xf32>
      %c6_i32 = arith.constant 6 : i32
      %208 = vector.broadcast %c6_i32 : i32 to vector<8x1xi32>
      %209 = arith.cmpi sgt, %39, %208 : vector<8x1xi32>
      %210 = vector.extract_strided_slice %207 {offsets = [0, 0], sizes = [8, 192], strides = [1, 1]} : vector<8x256xf32> to vector<8x192xf32>
      %211 = arith.negf %210 : vector<8x192xf32>
      %212 = math.exp %211 : vector<8x192xf32>
      %cst_54 = arith.constant 1.000000e+00 : f32
      %213 = vector.broadcast %cst_54 : f32 to vector<8x192xf32>
      %214 = arith.addf %213, %212 : vector<8x192xf32>
      %215 = arith.divf %213, %214 : vector<8x192xf32>
      %216 = vector.extract_strided_slice %207 {offsets = [0, 192], sizes = [8, 64], strides = [1, 1]} : vector<8x256xf32> to vector<8x64xf32>
      %217 = math.tanh %216 : vector<8x64xf32>
      %218 = vector.extract_strided_slice %215 {offsets = [0, 64], sizes = [8, 64], strides = [1, 1]} : vector<8x192xf32> to vector<8x64xf32>
      %219 = arith.mulf %218, %204 : vector<8x64xf32>
      %220 = vector.extract_strided_slice %215 {offsets = [0, 0], sizes = [8, 64], strides = [1, 1]} : vector<8x192xf32> to vector<8x64xf32>
      %221 = arith.mulf %220, %217 : vector<8x64xf32>
      %222 = arith.addf %219, %221 : vector<8x64xf32>
      %223 = vector.extract_strided_slice %215 {offsets = [0, 128], sizes = [8, 64], strides = [1, 1]} : vector<8x192xf32> to vector<8x64xf32>
      %224 = math.tanh %222 : vector<8x64xf32>
      %225 = arith.mulf %223, %224 : vector<8x64xf32>
      %226 = vector.shape_cast %209 : vector<8x1xi1> to vector<8x1xi1>
      %227 = vector.broadcast %226 : vector<8x1xi1> to vector<8x64xi1>
      %228 = arith.select %227, %225, %201 : vector<8x64xi1>, vector<8x64xf32>
      %229 = vector.shape_cast %209 : vector<8x1xi1> to vector<8x1xi1>
      %230 = vector.broadcast %229 : vector<8x1xi1> to vector<8x64xi1>
      %231 = arith.select %230, %222, %204 : vector<8x64xi1>, vector<8x64xf32>
      %c56 = arith.constant 56 : index
      %c0_55 = arith.constant 0 : index
      %232 = vector.load %arg7[%c56, %c0_55] : memref<64x320xf32, #tpu.memory_space<vmem>>, vector<8x256xf32>
      %cst_56 = arith.constant dense<0.000000e+00> : vector<8x256xf32>
      %233 = tpu.matmul %228, %40, %cst_56 {dimension_numbers = #tpu.dot_dimension_numbers<[1], [0], [0], [1], [0, 0, 1, 1], [], []>} : vector<8x64xf32>, vector<64x256xf32>, vector<8x256xf32> -> vector<8x256xf32>
      %234 = arith.addf %232, %233 : vector<8x256xf32>
      %c7_i32 = arith.constant 7 : i32
      %235 = vector.broadcast %c7_i32 : i32 to vector<8x1xi32>
      %236 = arith.cmpi sgt, %39, %235 : vector<8x1xi32>
      %237 = vector.extract_strided_slice %234 {offsets = [0, 0], sizes = [8, 192], strides = [1, 1]} : vector<8x256xf32> to vector<8x192xf32>
      %238 = arith.negf %237 : vector<8x192xf32>
      %239 = math.exp %238 : vector<8x192xf32>
      %cst_57 = arith.constant 1.000000e+00 : f32
      %240 = vector.broadcast %cst_57 : f32 to vector<8x192xf32>
      %241 = arith.addf %240, %239 : vector<8x192xf32>
      %242 = arith.divf %240, %241 : vector<8x192xf32>
      %243 = vector.extract_strided_slice %234 {offsets = [0, 192], sizes = [8, 64], strides = [1, 1]} : vector<8x256xf32> to vector<8x64xf32>
      %244 = math.tanh %243 : vector<8x64xf32>
      %245 = vector.extract_strided_slice %242 {offsets = [0, 64], sizes = [8, 64], strides = [1, 1]} : vector<8x192xf32> to vector<8x64xf32>
      %246 = arith.mulf %245, %231 : vector<8x64xf32>
      %247 = vector.extract_strided_slice %242 {offsets = [0, 0], sizes = [8, 64], strides = [1, 1]} : vector<8x192xf32> to vector<8x64xf32>
      %248 = arith.mulf %247, %244 : vector<8x64xf32>
      %249 = arith.addf %246, %248 : vector<8x64xf32>
      %250 = vector.extract_strided_slice %242 {offsets = [0, 128], sizes = [8, 64], strides = [1, 1]} : vector<8x192xf32> to vector<8x64xf32>
      %251 = math.tanh %249 : vector<8x64xf32>
      %252 = arith.mulf %250, %251 : vector<8x64xf32>
      %253 = vector.shape_cast %236 : vector<8x1xi1> to vector<8x1xi1>
      %254 = vector.broadcast %253 : vector<8x1xi1> to vector<8x64xi1>
      %255 = arith.select %254, %252, %228 : vector<8x64xi1>, vector<8x64xf32>
      %c0_58 = arith.constant 0 : index
      %c256_59 = arith.constant 256 : index
      %256 = vector.load %arg4[%c0_58, %c256_59] : memref<64x1024xf32, #tpu.memory_space<vmem>>, vector<64x256xf32>
      %cst_60 = arith.constant dense<0.000000e+00> : vector<8x256xf32>
      %257 = tpu.matmul %255, %256, %cst_60 {dimension_numbers = #tpu.dot_dimension_numbers<[1], [0], [0], [1], [0, 0, 1, 1], [], []>} : vector<8x64xf32>, vector<64x256xf32>, vector<8x256xf32> -> vector<8x256xf32>
      %258 = vector.broadcast %15 : vector<1x256xf32> to vector<8x256xf32>
      %259 = arith.addf %257, %258 : vector<8x256xf32>
      %c0_61 = arith.constant 0 : index
      %c512_62 = arith.constant 512 : index
      %260 = vector.load %arg4[%c0_61, %c512_62] : memref<64x1024xf32, #tpu.memory_space<vmem>>, vector<64x256xf32>
      %c1_i32_63 = arith.constant 1 : i32
      %261 = vector.broadcast %c1_i32_63 : i32 to vector<8x1xi32>
      %262 = arith.addi %39, %261 : vector<8x1xi32>
      %cst_64 = arith.constant 0.000000e+00 : f32
      %263 = vector.broadcast %cst_64 : f32 to vector<8x64xf32>
      %cst_65 = arith.constant 0.000000e+00 : f32
      %264 = vector.broadcast %cst_65 : f32 to vector<8x64xf32>
      %cst_66 = arith.constant dense<0.000000e+00> : vector<8x256xf32>
      %265 = tpu.matmul %263, %260, %cst_66 {dimension_numbers = #tpu.dot_dimension_numbers<[1], [0], [0], [1], [0, 0, 1, 1], [], []>} : vector<8x64xf32>, vector<64x256xf32>, vector<8x256xf32> -> vector<8x256xf32>
      %266 = arith.addf %259, %265 : vector<8x256xf32>
      %c0_i32_67 = arith.constant 0 : i32
      %267 = vector.broadcast %c0_i32_67 : i32 to vector<8x1xi32>
      %268 = arith.cmpi sgt, %262, %267 : vector<8x1xi32>
      %269 = vector.extract_strided_slice %266 {offsets = [0, 0], sizes = [8, 192], strides = [1, 1]} : vector<8x256xf32> to vector<8x192xf32>
      %270 = arith.negf %269 : vector<8x192xf32>
      %271 = math.exp %270 : vector<8x192xf32>
      %cst_68 = arith.constant 1.000000e+00 : f32
      %272 = vector.broadcast %cst_68 : f32 to vector<8x192xf32>
      %273 = arith.addf %272, %271 : vector<8x192xf32>
      %274 = arith.divf %272, %273 : vector<8x192xf32>
      %275 = vector.extract_strided_slice %266 {offsets = [0, 192], sizes = [8, 64], strides = [1, 1]} : vector<8x256xf32> to vector<8x64xf32>
      %276 = math.tanh %275 : vector<8x64xf32>
      %277 = vector.extract_strided_slice %274 {offsets = [0, 64], sizes = [8, 64], strides = [1, 1]} : vector<8x192xf32> to vector<8x64xf32>
      %278 = arith.mulf %277, %264 : vector<8x64xf32>
      %279 = vector.extract_strided_slice %274 {offsets = [0, 0], sizes = [8, 64], strides = [1, 1]} : vector<8x192xf32> to vector<8x64xf32>
      %280 = arith.mulf %279, %276 : vector<8x64xf32>
      %281 = arith.addf %278, %280 : vector<8x64xf32>
      %282 = vector.extract_strided_slice %274 {offsets = [0, 128], sizes = [8, 64], strides = [1, 1]} : vector<8x192xf32> to vector<8x64xf32>
      %283 = math.tanh %281 : vector<8x64xf32>
      %284 = arith.mulf %282, %283 : vector<8x64xf32>
      %285 = vector.shape_cast %268 : vector<8x1xi1> to vector<8x1xi1>
      %286 = vector.broadcast %285 : vector<8x1xi1> to vector<8x64xi1>
      %287 = arith.select %286, %284, %263 : vector<8x64xi1>, vector<8x64xf32>
      %288 = vector.shape_cast %268 : vector<8x1xi1> to vector<8x1xi1>
      %289 = vector.broadcast %288 : vector<8x1xi1> to vector<8x64xi1>
      %290 = arith.select %289, %281, %264 : vector<8x64xi1>, vector<8x64xf32>
      %c0_69 = arith.constant 0 : index
      %c0_70 = arith.constant 0 : index
      %291 = vector.load %arg8[%c0_69, %c0_70] : memref<64x256xf32, #tpu.memory_space<vmem>>, vector<8x256xf32>
      %cst_71 = arith.constant dense<0.000000e+00> : vector<8x256xf32>
      %292 = tpu.matmul %287, %260, %cst_71 {dimension_numbers = #tpu.dot_dimension_numbers<[1], [0], [0], [1], [0, 0, 1, 1], [], []>} : vector<8x64xf32>, vector<64x256xf32>, vector<8x256xf32> -> vector<8x256xf32>
      %293 = arith.addf %291, %292 : vector<8x256xf32>
      %c1_i32_72 = arith.constant 1 : i32
      %294 = vector.broadcast %c1_i32_72 : i32 to vector<8x1xi32>
      %295 = arith.cmpi sgt, %262, %294 : vector<8x1xi32>
      %296 = vector.extract_strided_slice %293 {offsets = [0, 0], sizes = [8, 192], strides = [1, 1]} : vector<8x256xf32> to vector<8x192xf32>
      %297 = arith.negf %296 : vector<8x192xf32>
      %298 = math.exp %297 : vector<8x192xf32>
      %cst_73 = arith.constant 1.000000e+00 : f32
      %299 = vector.broadcast %cst_73 : f32 to vector<8x192xf32>
      %300 = arith.addf %299, %298 : vector<8x192xf32>
      %301 = arith.divf %299, %300 : vector<8x192xf32>
      %302 = vector.extract_strided_slice %293 {offsets = [0, 192], sizes = [8, 64], strides = [1, 1]} : vector<8x256xf32> to vector<8x64xf32>
      %303 = math.tanh %302 : vector<8x64xf32>
      %304 = vector.extract_strided_slice %301 {offsets = [0, 64], sizes = [8, 64], strides = [1, 1]} : vector<8x192xf32> to vector<8x64xf32>
      %305 = arith.mulf %304, %290 : vector<8x64xf32>
      %306 = vector.extract_strided_slice %301 {offsets = [0, 0], sizes = [8, 64], strides = [1, 1]} : vector<8x192xf32> to vector<8x64xf32>
      %307 = arith.mulf %306, %303 : vector<8x64xf32>
      %308 = arith.addf %305, %307 : vector<8x64xf32>
      %309 = vector.extract_strided_slice %301 {offsets = [0, 128], sizes = [8, 64], strides = [1, 1]} : vector<8x192xf32> to vector<8x64xf32>
      %310 = math.tanh %308 : vector<8x64xf32>
      %311 = arith.mulf %309, %310 : vector<8x64xf32>
      %312 = vector.shape_cast %295 : vector<8x1xi1> to vector<8x1xi1>
      %313 = vector.broadcast %312 : vector<8x1xi1> to vector<8x64xi1>
      %314 = arith.select %313, %311, %287 : vector<8x64xi1>, vector<8x64xf32>
      %315 = vector.shape_cast %295 : vector<8x1xi1> to vector<8x1xi1>
      %316 = vector.broadcast %315 : vector<8x1xi1> to vector<8x64xi1>
      %317 = arith.select %316, %308, %290 : vector<8x64xi1>, vector<8x64xf32>
      %c8_74 = arith.constant 8 : index
      %c0_75 = arith.constant 0 : index
      %318 = vector.load %arg8[%c8_74, %c0_75] : memref<64x256xf32, #tpu.memory_space<vmem>>, vector<8x256xf32>
      %cst_76 = arith.constant dense<0.000000e+00> : vector<8x256xf32>
      %319 = tpu.matmul %314, %260, %cst_76 {dimension_numbers = #tpu.dot_dimension_numbers<[1], [0], [0], [1], [0, 0, 1, 1], [], []>} : vector<8x64xf32>, vector<64x256xf32>, vector<8x256xf32> -> vector<8x256xf32>
      %320 = arith.addf %318, %319 : vector<8x256xf32>
      %c2_i32_77 = arith.constant 2 : i32
      %321 = vector.broadcast %c2_i32_77 : i32 to vector<8x1xi32>
      %322 = arith.cmpi sgt, %262, %321 : vector<8x1xi32>
      %323 = vector.extract_strided_slice %320 {offsets = [0, 0], sizes = [8, 192], strides = [1, 1]} : vector<8x256xf32> to vector<8x192xf32>
      %324 = arith.negf %323 : vector<8x192xf32>
      %325 = math.exp %324 : vector<8x192xf32>
      %cst_78 = arith.constant 1.000000e+00 : f32
      %326 = vector.broadcast %cst_78 : f32 to vector<8x192xf32>
      %327 = arith.addf %326, %325 : vector<8x192xf32>
      %328 = arith.divf %326, %327 : vector<8x192xf32>
      %329 = vector.extract_strided_slice %320 {offsets = [0, 192], sizes = [8, 64], strides = [1, 1]} : vector<8x256xf32> to vector<8x64xf32>
      %330 = math.tanh %329 : vector<8x64xf32>
      %331 = vector.extract_strided_slice %328 {offsets = [0, 64], sizes = [8, 64], strides = [1, 1]} : vector<8x192xf32> to vector<8x64xf32>
      %332 = arith.mulf %331, %317 : vector<8x64xf32>
      %333 = vector.extract_strided_slice %328 {offsets = [0, 0], sizes = [8, 64], strides = [1, 1]} : vector<8x192xf32> to vector<8x64xf32>
      %334 = arith.mulf %333, %330 : vector<8x64xf32>
      %335 = arith.addf %332, %334 : vector<8x64xf32>
      %336 = vector.extract_strided_slice %328 {offsets = [0, 128], sizes = [8, 64], strides = [1, 1]} : vector<8x192xf32> to vector<8x64xf32>
      %337 = math.tanh %335 : vector<8x64xf32>
      %338 = arith.mulf %336, %337 : vector<8x64xf32>
      %339 = vector.shape_cast %322 : vector<8x1xi1> to vector<8x1xi1>
      %340 = vector.broadcast %339 : vector<8x1xi1> to vector<8x64xi1>
      %341 = arith.select %340, %338, %314 : vector<8x64xi1>, vector<8x64xf32>
      %342 = vector.shape_cast %322 : vector<8x1xi1> to vector<8x1xi1>
      %343 = vector.broadcast %342 : vector<8x1xi1> to vector<8x64xi1>
      %344 = arith.select %343, %335, %317 : vector<8x64xi1>, vector<8x64xf32>
      %c16_79 = arith.constant 16 : index
      %c0_80 = arith.constant 0 : index
      %345 = vector.load %arg8[%c16_79, %c0_80] : memref<64x256xf32, #tpu.memory_space<vmem>>, vector<8x256xf32>
      %cst_81 = arith.constant dense<0.000000e+00> : vector<8x256xf32>
      %346 = tpu.matmul %341, %260, %cst_81 {dimension_numbers = #tpu.dot_dimension_numbers<[1], [0], [0], [1], [0, 0, 1, 1], [], []>} : vector<8x64xf32>, vector<64x256xf32>, vector<8x256xf32> -> vector<8x256xf32>
      %347 = arith.addf %345, %346 : vector<8x256xf32>
      %c3_i32_82 = arith.constant 3 : i32
      %348 = vector.broadcast %c3_i32_82 : i32 to vector<8x1xi32>
      %349 = arith.cmpi sgt, %262, %348 : vector<8x1xi32>
      %350 = vector.extract_strided_slice %347 {offsets = [0, 0], sizes = [8, 192], strides = [1, 1]} : vector<8x256xf32> to vector<8x192xf32>
      %351 = arith.negf %350 : vector<8x192xf32>
      %352 = math.exp %351 : vector<8x192xf32>
      %cst_83 = arith.constant 1.000000e+00 : f32
      %353 = vector.broadcast %cst_83 : f32 to vector<8x192xf32>
      %354 = arith.addf %353, %352 : vector<8x192xf32>
      %355 = arith.divf %353, %354 : vector<8x192xf32>
      %356 = vector.extract_strided_slice %347 {offsets = [0, 192], sizes = [8, 64], strides = [1, 1]} : vector<8x256xf32> to vector<8x64xf32>
      %357 = math.tanh %356 : vector<8x64xf32>
      %358 = vector.extract_strided_slice %355 {offsets = [0, 64], sizes = [8, 64], strides = [1, 1]} : vector<8x192xf32> to vector<8x64xf32>
      %359 = arith.mulf %358, %344 : vector<8x64xf32>
      %360 = vector.extract_strided_slice %355 {offsets = [0, 0], sizes = [8, 64], strides = [1, 1]} : vector<8x192xf32> to vector<8x64xf32>
      %361 = arith.mulf %360, %357 : vector<8x64xf32>
      %362 = arith.addf %359, %361 : vector<8x64xf32>
      %363 = vector.extract_strided_slice %355 {offsets = [0, 128], sizes = [8, 64], strides = [1, 1]} : vector<8x192xf32> to vector<8x64xf32>
      %364 = math.tanh %362 : vector<8x64xf32>
      %365 = arith.mulf %363, %364 : vector<8x64xf32>
      %366 = vector.shape_cast %349 : vector<8x1xi1> to vector<8x1xi1>
      %367 = vector.broadcast %366 : vector<8x1xi1> to vector<8x64xi1>
      %368 = arith.select %367, %365, %341 : vector<8x64xi1>, vector<8x64xf32>
      %369 = vector.shape_cast %349 : vector<8x1xi1> to vector<8x1xi1>
      %370 = vector.broadcast %369 : vector<8x1xi1> to vector<8x64xi1>
      %371 = arith.select %370, %362, %344 : vector<8x64xi1>, vector<8x64xf32>
      %c24_84 = arith.constant 24 : index
      %c0_85 = arith.constant 0 : index
      %372 = vector.load %arg8[%c24_84, %c0_85] : memref<64x256xf32, #tpu.memory_space<vmem>>, vector<8x256xf32>
      %cst_86 = arith.constant dense<0.000000e+00> : vector<8x256xf32>
      %373 = tpu.matmul %368, %260, %cst_86 {dimension_numbers = #tpu.dot_dimension_numbers<[1], [0], [0], [1], [0, 0, 1, 1], [], []>} : vector<8x64xf32>, vector<64x256xf32>, vector<8x256xf32> -> vector<8x256xf32>
      %374 = arith.addf %372, %373 : vector<8x256xf32>
      %c4_i32_87 = arith.constant 4 : i32
      %375 = vector.broadcast %c4_i32_87 : i32 to vector<8x1xi32>
      %376 = arith.cmpi sgt, %262, %375 : vector<8x1xi32>
      %377 = vector.extract_strided_slice %374 {offsets = [0, 0], sizes = [8, 192], strides = [1, 1]} : vector<8x256xf32> to vector<8x192xf32>
      %378 = arith.negf %377 : vector<8x192xf32>
      %379 = math.exp %378 : vector<8x192xf32>
      %cst_88 = arith.constant 1.000000e+00 : f32
      %380 = vector.broadcast %cst_88 : f32 to vector<8x192xf32>
      %381 = arith.addf %380, %379 : vector<8x192xf32>
      %382 = arith.divf %380, %381 : vector<8x192xf32>
      %383 = vector.extract_strided_slice %374 {offsets = [0, 192], sizes = [8, 64], strides = [1, 1]} : vector<8x256xf32> to vector<8x64xf32>
      %384 = math.tanh %383 : vector<8x64xf32>
      %385 = vector.extract_strided_slice %382 {offsets = [0, 64], sizes = [8, 64], strides = [1, 1]} : vector<8x192xf32> to vector<8x64xf32>
      %386 = arith.mulf %385, %371 : vector<8x64xf32>
      %387 = vector.extract_strided_slice %382 {offsets = [0, 0], sizes = [8, 64], strides = [1, 1]} : vector<8x192xf32> to vector<8x64xf32>
      %388 = arith.mulf %387, %384 : vector<8x64xf32>
      %389 = arith.addf %386, %388 : vector<8x64xf32>
      %390 = vector.extract_strided_slice %382 {offsets = [0, 128], sizes = [8, 64], strides = [1, 1]} : vector<8x192xf32> to vector<8x64xf32>
      %391 = math.tanh %389 : vector<8x64xf32>
      %392 = arith.mulf %390, %391 : vector<8x64xf32>
      %393 = vector.shape_cast %376 : vector<8x1xi1> to vector<8x1xi1>
      %394 = vector.broadcast %393 : vector<8x1xi1> to vector<8x64xi1>
      %395 = arith.select %394, %392, %368 : vector<8x64xi1>, vector<8x64xf32>
      %396 = vector.shape_cast %376 : vector<8x1xi1> to vector<8x1xi1>
      %397 = vector.broadcast %396 : vector<8x1xi1> to vector<8x64xi1>
      %398 = arith.select %397, %389, %371 : vector<8x64xi1>, vector<8x64xf32>
      %c32_89 = arith.constant 32 : index
      %c0_90 = arith.constant 0 : index
      %399 = vector.load %arg8[%c32_89, %c0_90] : memref<64x256xf32, #tpu.memory_space<vmem>>, vector<8x256xf32>
      %cst_91 = arith.constant dense<0.000000e+00> : vector<8x256xf32>
      %400 = tpu.matmul %395, %260, %cst_91 {dimension_numbers = #tpu.dot_dimension_numbers<[1], [0], [0], [1], [0, 0, 1, 1], [], []>} : vector<8x64xf32>, vector<64x256xf32>, vector<8x256xf32> -> vector<8x256xf32>
      %401 = arith.addf %399, %400 : vector<8x256xf32>
      %c5_i32_92 = arith.constant 5 : i32
      %402 = vector.broadcast %c5_i32_92 : i32 to vector<8x1xi32>
      %403 = arith.cmpi sgt, %262, %402 : vector<8x1xi32>
      %404 = vector.extract_strided_slice %401 {offsets = [0, 0], sizes = [8, 192], strides = [1, 1]} : vector<8x256xf32> to vector<8x192xf32>
      %405 = arith.negf %404 : vector<8x192xf32>
      %406 = math.exp %405 : vector<8x192xf32>
      %cst_93 = arith.constant 1.000000e+00 : f32
      %407 = vector.broadcast %cst_93 : f32 to vector<8x192xf32>
      %408 = arith.addf %407, %406 : vector<8x192xf32>
      %409 = arith.divf %407, %408 : vector<8x192xf32>
      %410 = vector.extract_strided_slice %401 {offsets = [0, 192], sizes = [8, 64], strides = [1, 1]} : vector<8x256xf32> to vector<8x64xf32>
      %411 = math.tanh %410 : vector<8x64xf32>
      %412 = vector.extract_strided_slice %409 {offsets = [0, 64], sizes = [8, 64], strides = [1, 1]} : vector<8x192xf32> to vector<8x64xf32>
      %413 = arith.mulf %412, %398 : vector<8x64xf32>
      %414 = vector.extract_strided_slice %409 {offsets = [0, 0], sizes = [8, 64], strides = [1, 1]} : vector<8x192xf32> to vector<8x64xf32>
      %415 = arith.mulf %414, %411 : vector<8x64xf32>
      %416 = arith.addf %413, %415 : vector<8x64xf32>
      %417 = vector.extract_strided_slice %409 {offsets = [0, 128], sizes = [8, 64], strides = [1, 1]} : vector<8x192xf32> to vector<8x64xf32>
      %418 = math.tanh %416 : vector<8x64xf32>
      %419 = arith.mulf %417, %418 : vector<8x64xf32>
      %420 = vector.shape_cast %403 : vector<8x1xi1> to vector<8x1xi1>
      %421 = vector.broadcast %420 : vector<8x1xi1> to vector<8x64xi1>
      %422 = arith.select %421, %419, %395 : vector<8x64xi1>, vector<8x64xf32>
      %423 = vector.shape_cast %403 : vector<8x1xi1> to vector<8x1xi1>
      %424 = vector.broadcast %423 : vector<8x1xi1> to vector<8x64xi1>
      %425 = arith.select %424, %416, %398 : vector<8x64xi1>, vector<8x64xf32>
      %c40_94 = arith.constant 40 : index
      %c0_95 = arith.constant 0 : index
      %426 = vector.load %arg8[%c40_94, %c0_95] : memref<64x256xf32, #tpu.memory_space<vmem>>, vector<8x256xf32>
      %cst_96 = arith.constant dense<0.000000e+00> : vector<8x256xf32>
      %427 = tpu.matmul %422, %260, %cst_96 {dimension_numbers = #tpu.dot_dimension_numbers<[1], [0], [0], [1], [0, 0, 1, 1], [], []>} : vector<8x64xf32>, vector<64x256xf32>, vector<8x256xf32> -> vector<8x256xf32>
      %428 = arith.addf %426, %427 : vector<8x256xf32>
      %c6_i32_97 = arith.constant 6 : i32
      %429 = vector.broadcast %c6_i32_97 : i32 to vector<8x1xi32>
      %430 = arith.cmpi sgt, %262, %429 : vector<8x1xi32>
      %431 = vector.extract_strided_slice %428 {offsets = [0, 0], sizes = [8, 192], strides = [1, 1]} : vector<8x256xf32> to vector<8x192xf32>
      %432 = arith.negf %431 : vector<8x192xf32>
      %433 = math.exp %432 : vector<8x192xf32>
      %cst_98 = arith.constant 1.000000e+00 : f32
      %434 = vector.broadcast %cst_98 : f32 to vector<8x192xf32>
      %435 = arith.addf %434, %433 : vector<8x192xf32>
      %436 = arith.divf %434, %435 : vector<8x192xf32>
      %437 = vector.extract_strided_slice %428 {offsets = [0, 192], sizes = [8, 64], strides = [1, 1]} : vector<8x256xf32> to vector<8x64xf32>
      %438 = math.tanh %437 : vector<8x64xf32>
      %439 = vector.extract_strided_slice %436 {offsets = [0, 64], sizes = [8, 64], strides = [1, 1]} : vector<8x192xf32> to vector<8x64xf32>
      %440 = arith.mulf %439, %425 : vector<8x64xf32>
      %441 = vector.extract_strided_slice %436 {offsets = [0, 0], sizes = [8, 64], strides = [1, 1]} : vector<8x192xf32> to vector<8x64xf32>
      %442 = arith.mulf %441, %438 : vector<8x64xf32>
      %443 = arith.addf %440, %442 : vector<8x64xf32>
      %444 = vector.extract_strided_slice %436 {offsets = [0, 128], sizes = [8, 64], strides = [1, 1]} : vector<8x192xf32> to vector<8x64xf32>
      %445 = math.tanh %443 : vector<8x64xf32>
      %446 = arith.mulf %444, %445 : vector<8x64xf32>
      %447 = vector.shape_cast %430 : vector<8x1xi1> to vector<8x1xi1>
      %448 = vector.broadcast %447 : vector<8x1xi1> to vector<8x64xi1>
      %449 = arith.select %448, %446, %422 : vector<8x64xi1>, vector<8x64xf32>
      %450 = vector.shape_cast %430 : vector<8x1xi1> to vector<8x1xi1>
      %451 = vector.broadcast %450 : vector<8x1xi1> to vector<8x64xi1>
      %452 = arith.select %451, %443, %425 : vector<8x64xi1>, vector<8x64xf32>
      %c48_99 = arith.constant 48 : index
      %c0_100 = arith.constant 0 : index
      %453 = vector.load %arg8[%c48_99, %c0_100] : memref<64x256xf32, #tpu.memory_space<vmem>>, vector<8x256xf32>
      %cst_101 = arith.constant dense<0.000000e+00> : vector<8x256xf32>
      %454 = tpu.matmul %449, %260, %cst_101 {dimension_numbers = #tpu.dot_dimension_numbers<[1], [0], [0], [1], [0, 0, 1, 1], [], []>} : vector<8x64xf32>, vector<64x256xf32>, vector<8x256xf32> -> vector<8x256xf32>
      %455 = arith.addf %453, %454 : vector<8x256xf32>
      %c7_i32_102 = arith.constant 7 : i32
      %456 = vector.broadcast %c7_i32_102 : i32 to vector<8x1xi32>
      %457 = arith.cmpi sgt, %262, %456 : vector<8x1xi32>
      %458 = vector.extract_strided_slice %455 {offsets = [0, 0], sizes = [8, 192], strides = [1, 1]} : vector<8x256xf32> to vector<8x192xf32>
      %459 = arith.negf %458 : vector<8x192xf32>
      %460 = math.exp %459 : vector<8x192xf32>
      %cst_103 = arith.constant 1.000000e+00 : f32
      %461 = vector.broadcast %cst_103 : f32 to vector<8x192xf32>
      %462 = arith.addf %461, %460 : vector<8x192xf32>
      %463 = arith.divf %461, %462 : vector<8x192xf32>
      %464 = vector.extract_strided_slice %455 {offsets = [0, 192], sizes = [8, 64], strides = [1, 1]} : vector<8x256xf32> to vector<8x64xf32>
      %465 = math.tanh %464 : vector<8x64xf32>
      %466 = vector.extract_strided_slice %463 {offsets = [0, 64], sizes = [8, 64], strides = [1, 1]} : vector<8x192xf32> to vector<8x64xf32>
      %467 = arith.mulf %466, %452 : vector<8x64xf32>
      %468 = vector.extract_strided_slice %463 {offsets = [0, 0], sizes = [8, 64], strides = [1, 1]} : vector<8x192xf32> to vector<8x64xf32>
      %469 = arith.mulf %468, %465 : vector<8x64xf32>
      %470 = arith.addf %467, %469 : vector<8x64xf32>
      %471 = vector.extract_strided_slice %463 {offsets = [0, 128], sizes = [8, 64], strides = [1, 1]} : vector<8x192xf32> to vector<8x64xf32>
      %472 = math.tanh %470 : vector<8x64xf32>
      %473 = arith.mulf %471, %472 : vector<8x64xf32>
      %474 = vector.shape_cast %457 : vector<8x1xi1> to vector<8x1xi1>
      %475 = vector.broadcast %474 : vector<8x1xi1> to vector<8x64xi1>
      %476 = arith.select %475, %473, %449 : vector<8x64xi1>, vector<8x64xf32>
      %477 = vector.shape_cast %457 : vector<8x1xi1> to vector<8x1xi1>
      %478 = vector.broadcast %477 : vector<8x1xi1> to vector<8x64xi1>
      %479 = arith.select %478, %470, %452 : vector<8x64xi1>, vector<8x64xf32>
      %c56_104 = arith.constant 56 : index
      %c0_105 = arith.constant 0 : index
      %480 = vector.load %arg8[%c56_104, %c0_105] : memref<64x256xf32, #tpu.memory_space<vmem>>, vector<8x256xf32>
      %cst_106 = arith.constant dense<0.000000e+00> : vector<8x256xf32>
      %481 = tpu.matmul %476, %260, %cst_106 {dimension_numbers = #tpu.dot_dimension_numbers<[1], [0], [0], [1], [0, 0, 1, 1], [], []>} : vector<8x64xf32>, vector<64x256xf32>, vector<8x256xf32> -> vector<8x256xf32>
      %482 = arith.addf %480, %481 : vector<8x256xf32>
      %c8_i32 = arith.constant 8 : i32
      %483 = vector.broadcast %c8_i32 : i32 to vector<8x1xi32>
      %484 = arith.cmpi sgt, %262, %483 : vector<8x1xi32>
      %485 = vector.extract_strided_slice %482 {offsets = [0, 0], sizes = [8, 192], strides = [1, 1]} : vector<8x256xf32> to vector<8x192xf32>
      %486 = arith.negf %485 : vector<8x192xf32>
      %487 = math.exp %486 : vector<8x192xf32>
      %cst_107 = arith.constant 1.000000e+00 : f32
      %488 = vector.broadcast %cst_107 : f32 to vector<8x192xf32>
      %489 = arith.addf %488, %487 : vector<8x192xf32>
      %490 = arith.divf %488, %489 : vector<8x192xf32>
      %491 = vector.extract_strided_slice %482 {offsets = [0, 192], sizes = [8, 64], strides = [1, 1]} : vector<8x256xf32> to vector<8x64xf32>
      %492 = math.tanh %491 : vector<8x64xf32>
      %493 = vector.extract_strided_slice %490 {offsets = [0, 64], sizes = [8, 64], strides = [1, 1]} : vector<8x192xf32> to vector<8x64xf32>
      %494 = arith.mulf %493, %479 : vector<8x64xf32>
      %495 = vector.extract_strided_slice %490 {offsets = [0, 0], sizes = [8, 64], strides = [1, 1]} : vector<8x192xf32> to vector<8x64xf32>
      %496 = arith.mulf %495, %492 : vector<8x64xf32>
      %497 = arith.addf %494, %496 : vector<8x64xf32>
      %498 = vector.extract_strided_slice %490 {offsets = [0, 128], sizes = [8, 64], strides = [1, 1]} : vector<8x192xf32> to vector<8x64xf32>
      %499 = math.tanh %497 : vector<8x64xf32>
      %500 = arith.mulf %498, %499 : vector<8x64xf32>
      %501 = vector.shape_cast %484 : vector<8x1xi1> to vector<8x1xi1>
      %502 = vector.broadcast %501 : vector<8x1xi1> to vector<8x64xi1>
      %503 = arith.select %502, %500, %476 : vector<8x64xi1>, vector<8x64xf32>
      %504 = arith.addf %503, %255 : vector<8x64xf32>
      %cst_108 = arith.constant dense<0.000000e+00> : vector<8x32xf32>
      %505 = tpu.matmul %504, %13, %cst_108 {dimension_numbers = #tpu.dot_dimension_numbers<[1], [0], [0], [1], [0, 0, 1, 1], [], []>} : vector<8x64xf32>, vector<64x32xf32>, vector<8x32xf32> -> vector<8x32xf32>
      %506 = vector.broadcast %16 : vector<1x32xf32> to vector<8x32xf32>
      %507 = arith.addf %505, %506 : vector<8x32xf32>
      %c0_109 = arith.constant 0 : index
      %c0_110 = arith.constant 0 : index
      %508 = vector.load %arg6[%c0_109, %c0_110] : memref<8x32xf32, #tpu.memory_space<vmem>>, vector<8x32xf32>
      tpu.vector_store %arg6[%c0_109, %c0_110], %507 {strides = array<i32>} : memref<8x32xf32, #tpu.memory_space<vmem>>, vector<8x32xf32>,
    } else {
    }
    return
  }
  func.func @transform_0(%arg0: i32) -> (i32, i32) {
    %c0_i32 = arith.constant 0 : i32
    %c0_i32_0 = arith.constant 0 : i32
    %c0_i32_1 = arith.constant 0 : i32
    return %c0_i32, %c0_i32_0 : i32, i32
  }
  func.func @transform_1(%arg0: i32) -> (i32, i32) {
    %c0_i32 = arith.constant 0 : i32
    %c0_i32_0 = arith.constant 0 : i32
    return %c0_i32, %arg0 : i32, i32
  }
  func.func @transform_2(%arg0: i32) -> (i32, i32) {
    %c0_i32 = arith.constant 0 : i32
    %c0_i32_0 = arith.constant 0 : i32
    return %arg0, %c0_i32 : i32, i32
  }
  func.func @transform_3(%arg0: i32) -> (i32, i32) {
    %c0_i32 = arith.constant 0 : i32
    %c0_i32_0 = arith.constant 0 : i32
    %c0_i32_1 = arith.constant 0 : i32
    return %c0_i32, %c0_i32_0 : i32, i32
  }
  func.func @transform_4(%arg0: i32) -> (i32, i32) {
    %c0_i32 = arith.constant 0 : i32
    %c0_i32_0 = arith.constant 0 : i32
    %c0_i32_1 = arith.constant 0 : i32
    return %c0_i32, %c0_i32_0 : i32, i32
  }
  func.func @transform_5(%arg0: i32) -> (i32, i32) {
    %c0_i32 = arith.constant 0 : i32
    %c0_i32_0 = arith.constant 0 : i32
    %c0_i32_1 = arith.constant 0 : i32
    return %c0_i32, %c0_i32_0 : i32, i32
  }
}

</mosaic_0001>

<llo_original>
// kernel: _lambda_.1
$region0: #{_lambda_.1}
  #allocation0 [shape = 'u32[]', space=smem, size = 0x4, offset = 0x4, fixed_abs, tag = 'smem constant byte address 0x4 - core index']
  #allocation1 [shape = 'u32[72,128]{1,0:T(1,128)}', space=vmem, size = 0x9000, scoped, tag = 'internal scratch']
  #allocation2 [shape = 'f32[64,320]{1,0:T(8,128)}', space=vmem, size = 0x18000, scoped, tag = 'scratch operand']
  #allocation3 [shape = 'f32[64,256]{1,0:T(8,128)}', space=vmem, size = 0x10000, scoped, tag = 'scratch operand']
  %s0 = inlined_call_operand.vmem [shape: s32[8,1], index: 0, kind: input, shape index: {}]
  %s1 = inlined_call_operand.vmem [shape: bf16[64,2048], index: 1, kind: input, shape index: {}]
  %s2 = inlined_call_operand.vmem [shape: bf16[2048,320], index: 2, kind: input, shape index: {}]
  %s3 = inlined_call_operand.vmem [shape: f32[64,1024], index: 3, kind: input, shape index: {}]
  %s4 = inlined_call_operand.vmem [shape: f32[1,896], index: 4, kind: input, shape index: {}]
  %s5 = inlined_call_operand.vmem [shape: f32[8,32], index: 5, kind: output, shape index: {}]
  %s6 = sld [smem:[#allocation0]]
  $region84: #{_lambda_.1} parent=0
    _
  %s8 = ssub.s32 1, %s6
  %s9 = scalar_select 0, %s8, %s6
  $region1: #{_lambda_.1} parent=0
    #allocation4 [shape = 'u8[131072]{0}', space=vmem, size = 0x20000, scoped, tag = 'input window, operand 1']
    loop: start=0, step=1, limit=6
    $region2: #{_lambda_.1} parent=1 // loop_pre_header
      _
    $region3: #{_lambda_.1} parent=1 // loop_header
      %s11 = sphi 0, %s15
      %p12 = scmp.ge.s32.totalorder %s11, 6
      %s19 = sphi 0, %s19
      %s21 = sphi 0, %s19
      %s22 = sphi 0, %s21
      %s36 = sphi 0, %s22
      %s42 = sphi 0, %s44
      %s45 = sphi 0, %s42
      %s46 = sphi 0, %s45
      %s62 = sphi 0, %s46
      %s68 = sphi 0, %s70
      %s71 = sphi 0, %s68
      %s72 = sphi 0, %s71
      %s88 = sphi 0, %s72
      %s92 = sphi 0, %s92
      %s94 = sphi 0, %s92
      %s95 = sphi 0, %s94
      %s109 = sphi 0, %s95
      %s113 = sphi 0, %s113
      %s115 = sphi 0, %s113
      %s116 = sphi 0, %s115
      %s130 = sphi 0, %s116
      %s134 = sphi 0, %s134
      %s136 = sphi 0, %s134
      %s137 = sphi 0, %s136
      %s151 = sphi 0, %s137
    $region4: #{_lambda_.1} parent=1 // loop_header_branch
      %14 = sbr.rel (%p12) target = $region8
    $region5: #{_lambda_.1} parent=1 // loop_body
      %s16 = ssub.s32 %s11, 1
      %s17 = ssub.s32 %s11, 2
      %s18 = sadd.s32 %s11, 1
      %s20 = sadd.s32 %s19, 1
      %p23 = scmp.eq.s32.totalorder %s11, 3
      %p24 = scmp.ne.s32.totalorder %s19, %s21
      %p25 = scmp.eq.s32.totalorder %s11, 0
      %p26 = por %p24, %p25
      %p27 = scmp.ne.s32.totalorder %s19, %s21
      %p28 = scmp.eq.s32.totalorder %s16, 3
      %p29 = por %p27, %p28
      %p30 = scmp.ne.s32.totalorder %s21, %s22
      %p31 = scmp.eq.s32.totalorder %s16, 0
      %p32 = por %p30, %p31
      %p33 = scmp.ne.s32.totalorder %s21, %s22
      %p34 = scmp.eq.s32.totalorder %s17, 3
      %p35 = por %p33, %p34
      %p37 = scmp.ne.s32.totalorder %s22, %s36
      %p38 = scmp.eq.s32.totalorder %s17, 0
      %p39 = por %p37, %p38
      %s40 = ssub.s32 %s11, %s18
      %p41 = scmp.eq.s32.totalorder %s40, 0
      %s43 = sadd.s32 %s42, 1
      %s44 = scalar_select %p41, %s42, %s43
      %p47 = pneg %p41
      %p48 = scmp.eq.s32.totalorder %s11, 3
      %p49 = por %p47, %p48
      %p50 = scmp.ne.s32.totalorder %s42, %s45
      %p51 = scmp.eq.s32.totalorder %s11, 0
      %p52 = por %p50, %p51
      %p53 = scmp.ne.s32.totalorder %s42, %s45
      %p54 = scmp.eq.s32.totalorder %s16, 3
      %p55 = por %p53, %p54
      %p56 = scmp.ne.s32.totalorder %s45, %s46
      %p57 = scmp.eq.s32.totalorder %s16, 0
      %p58 = por %p56, %p57
      %p59 = scmp.ne.s32.totalorder %s45, %s46
      %p60 = scmp.eq.s32.totalorder %s17, 3
      %p61 = por %p59, %p60
      %p63 = scmp.ne.s32.totalorder %s46, %s62
      %p64 = scmp.eq.s32.totalorder %s17, 0
      %p65 = por %p63, %p64
      %s66 = ssub.s32 %s11, %s18
      %p67 = scmp.eq.s32.totalorder %s66, 0
      %s69 = sadd.s32 %s68, 1
      %s70 = scalar_select %p67, %s68, %s69
      %p73 = pneg %p67
      %p74 = scmp.eq.s32.totalorder %s11, 3
      %p75 = por %p73, %p74
      %p76 = scmp.ne.s32.totalorder %s68, %s71
      %p77 = scmp.eq.s32.totalorder %s11, 0
      %p78 = por %p76, %p77
      %p79 = scmp.ne.s32.totalorder %s68, %s71
      %p80 = scmp.eq.s32.totalorder %s16, 3
      %p81 = por %p79, %p80
      %p82 = scmp.ne.s32.totalorder %s71, %s72
      %p83 = scmp.eq.s32.totalorder %s16, 0
      %p84 = por %p82, %p83
      %p85 = scmp.ne.s32.totalorder %s71, %s72
      %p86 = scmp.eq.s32.totalorder %s17, 3
      %p87 = por %p85, %p86
      %p89 = scmp.ne.s32.totalorder %s72, %s88
      %p90 = scmp.eq.s32.totalorder %s17, 0
      %p91 = por %p89, %p90
      %s93 = sadd.s32 %s92, 1
      %p96 = scmp.eq.s32.totalorder %s11, 3
      %p97 = scmp.ne.s32.totalorder %s92, %s94
      %p98 = scmp.eq.s32.totalorder %s11, 0
      %p99 = por %p97, %p98
      %p100 = scmp.ne.s32.totalorder %s92, %s94
      %p101 = scmp.eq.s32.totalorder %s16, 3
      %p102 = por %p100, %p101
      %p103 = scmp.ne.s32.totalorder %s94, %s95
      %p104 = scmp.eq.s32.totalorder %s16, 0
      %p105 = por %p103, %p104
      %p106 = scmp.ne.s32.totalorder %s94, %s95
      %p107 = scmp.eq.s32.totalorder %s17, 3
      %p108 = por %p106, %p107
      %p110 = scmp.ne.s32.totalorder %s95, %s109
      %p111 = scmp.eq.s32.totalorder %s17, 0
      %p112 = por %p110, %p111
      %s114 = sadd.s32 %s113, 1
      %p117 = scmp.eq.s32.totalorder %s11, 3
      %p118 = scmp.ne.s32.totalorder %s113, %s115
      %p119 = scmp.eq.s32.totalorder %s11, 0
      %p120 = por %p118, %p119
      %p121 = scmp.ne.s32.totalorder %s113, %s115
      %p122 = scmp.eq.s32.totalorder %s16, 3
      %p123 = por %p121, %p122
      %p124 = scmp.ne.s32.totalorder %s115, %s116
      %p125 = scmp.eq.s32.totalorder %s16, 0
      %p126 = por %p124, %p125
      %p127 = scmp.ne.s32.totalorder %s115, %s116
      %p128 = scmp.eq.s32.totalorder %s17, 3
      %p129 = por %p127, %p128
      %p131 = scmp.ne.s32.totalorder %s116, %s130
      %p132 = scmp.eq.s32.totalorder %s17, 0
      %p133 = por %p131, %p132
      %s135 = sadd.s32 %s134, 1
      %p138 = scmp.eq.s32.totalorder %s11, 3
      %p139 = scmp.ne.s32.totalorder %s134, %s136
      %p140 = scmp.eq.s32.totalorder %s11, 0
      %p141 = por %p139, %p140
      %p142 = scmp.ne.s32.totalorder %s134, %s136
      %p143 = scmp.eq.s32.totalorder %s16, 3
      %p144 = por %p142, %p143
      %p145 = scmp.ne.s32.totalorder %s136, %s137
      %p146 = scmp.eq.s32.totalorder %s16, 0
      %p147 = por %p145, %p146
      %p148 = scmp.ne.s32.totalorder %s136, %s137
      %p149 = scmp.eq.s32.totalorder %s17, 3
      %p150 = por %p148, %p149
      %p152 = scmp.ne.s32.totalorder %s137, %s151
      %p153 = scmp.eq.s32.totalorder %s17, 0
      %p154 = por %p152, %p153
      %p155 = scmp.le.s32.totalorder 1, %s11
      %p156 = scmp.lt.s32.totalorder %s11, 5
      %p157 = pnand %p155, %p156
      %p158 = pneg %p157
      // Predicated region
      $region9: #{_lambda_.1} parent=5 // pred_check
        _
      $region10: #{_lambda_.1} parent=5 // pred_check_branch
        %160 = sbr.rel (%p157) target = $region12
      $region11: #{_lambda_.1} parent=5 // pred_region
        %s161 = ssub.s32 %s11, 1
        // Predicated region
        $region13: #{_lambda_.1} parent=11 // pred_check
          %p162 = pneg %p32
        $region14: #{_lambda_.1} parent=11 // pred_check_branch
          %164 = sbr.rel (%p162) target = $region16
        $region15: #{_lambda_.1} parent=11 // pred_region
          _
        $region16: #{_lambda_.1} parent=11 // pred_fallthru
          _
        // Predicated region
        $region17: #{_lambda_.1} parent=11 // pred_check
          %p165 = pneg %p105
        $region18: #{_lambda_.1} parent=11 // pred_check_branch
          %167 = sbr.rel (%p165) target = $region20
        $region19: #{_lambda_.1} parent=11 // pred_region
          _
        $region20: #{_lambda_.1} parent=11 // pred_fallthru
          _
        // Predicated region
        $region21: #{_lambda_.1} parent=11 // pred_check
          %p168 = pneg %p126
        $region22: #{_lambda_.1} parent=11 // pred_check_branch
          %170 = sbr.rel (%p168) target = $region24
        $region23: #{_lambda_.1} parent=11 // pred_region
          _
        $region24: #{_lambda_.1} parent=11 // pred_fallthru
          _
      $region12: #{_lambda_.1} parent=5 // pred_fallthru
        _
      %p171 = scmp.lt.s32.totalorder %s11, 4
      // Predicated region
      $region25: #{_lambda_.1} parent=5 // pred_check
        %p172 = pneg %p171
      $region26: #{_lambda_.1} parent=5 // pred_check_branch
        %174 = sbr.rel (%p172) target = $region28
      $region27: #{_lambda_.1} parent=5 // pred_region
        // Predicated region
        $region29: #{_lambda_.1} parent=27 // pred_check
          %p175 = pneg %p52
        $region30: #{_lambda_.1} parent=27 // pred_check_branch
          %177 = sbr.rel (%p175) target = $region32
        $region31: #{_lambda_.1} parent=27 // pred_region
          %s178 = sand.u32 %s42, 1
          %s179 = sand.u32 %s42, 1
          %s180 = smul.addr %s179, 128
          %s181 = scalar_lea.vmem [#allocation4], %s180
          %s182 = smul.u32 4, %s11
          %s183 = smul.addr %s182, 4
          %s184 = scalar_lea.vmem %s1, %s183
          // Predicated region
          $region33: #{_lambda_.1} parent=31 // pred_check
            _
          $region34: #{_lambda_.1} parent=31 // pred_check_branch
            %186 = sbr.rel (0) target = $region36
          $region35: #{_lambda_.1} parent=31 // pred_region
            // Predicated region
            $region37: #{_lambda_.1} parent=35 // pred_check
              _
            $region38: #{_lambda_.1} parent=35 // pred_check_branch
              %188 = sbr.rel (0) target = $region40
            $region39: #{_lambda_.1} parent=35 // pred_region
              loop: start=0, step=1, limit=1
              $region41: #{_lambda_.1} parent=39 // loop_pre_header
                _
              $region42: #{_lambda_.1} parent=39 // loop_header
                %s190 = sphi 0, %s194
                %p191 = scmp.ge.s32.totalorder %s190, 1
                %s195 = sphi %s184, %s184
                %s196 = sphi %s181, %s181
              $region43: #{_lambda_.1} parent=39 // loop_header_branch
                %193 = sbr.rel (%p191) target = $region47
              $region44: #{_lambda_.1} parent=39 // loop_body
                %v197 = vld [vmem:[%s195] sm:$0xff]
                %198 = vst [vmem:[%s196] sm:$0xff] %v197
                %v199 = vld [vmem:[%s195 + $0x8] sm:$0xff]
                %200 = vst [vmem:[%s196 + $0x8] sm:$0xff] %v199
                %v201 = vld [vmem:[%s195 + $0x40] sm:$0xff]
                %202 = vst [vmem:[%s196 + $0x10] sm:$0xff] %v201
                %v203 = vld [vmem:[%s195 + $0x48] sm:$0xff]
                %204 = vst [vmem:[%s196 + $0x18] sm:$0xff] %v203
                %v205 = vld [vmem:[%s195 + $0x80] sm:$0xff]
                %206 = vst [vmem:[%s196 + $0x20] sm:$0xff] %v205
                %v207 = vld [vmem:[%s195 + $0x88] sm:$0xff]
                %208 = vst [vmem:[%s196 + $0x28] sm:$0xff] %v207
                %v209 = vld [vmem:[%s195 + $0xc0] sm:$0xff]
                %210 = vst [vmem:[%s196 + $0x30] sm:$0xff] %v209
                %v211 = vld [vmem:[%s195 + $0xc8] sm:$0xff]
                %212 = vst [vmem:[%s196 + $0x38] sm:$0xff] %v211
                %v213 = vld [vmem:[%s195 + $0x100] sm:$0xff]
                %214 = vst [vmem:[%s196 + $0x40] sm:$0xff] %v213
                %v215 = vld [vmem:[%s195 + $0x108] sm:$0xff]
                %216 = vst [vmem:[%s196 + $0x48] sm:$0xff] %v215
                %v217 = vld [vmem:[%s195 + $0x140] sm:$0xff]
                %218 = vst [vmem:[%s196 + $0x50] sm:$0xff] %v217
                %v219 = vld [vmem:[%s195 + $0x148] sm:$0xff]
                %220 = vst [vmem:[%s196 + $0x58] sm:$0xff] %v219
                %v221 = vld [vmem:[%s195 + $0x180] sm:$0xff]
                %222 = vst [vmem:[%s196 + $0x60] sm:$0xff] %v221
                %v223 = vld [vmem:[%s195 + $0x188] sm:$0xff]
                %224 = vst [vmem:[%s196 + $0x68] sm:$0xff] %v223
                %v225 = vld [vmem:[%s195 + $0x1c0] sm:$0xff]
                %226 = vst [vmem:[%s196 + $0x70] sm:$0xff] %v225
                %v227 = vld [vmem:[%s195 + $0x1c8] sm:$0xff]
                %228 = vst [vmem:[%s196 + $0x78] sm:$0xff] %v227
              $region45: #{_lambda_.1} parent=39 // loop_footer
                %s194 = sadd.s32 1, %s190
              $region46: #{_lambda_.1} parent=39 // loop_footer_branch
                %189 = sbr.rel target = $region42
              $region47: #{_lambda_.1} parent=39 // loop_exit
                _
            $region40: #{_lambda_.1} parent=35 // pred_fallthru
              _
            // Predicated region
            $region48: #{_lambda_.1} parent=35 // pred_check
              _
            $region49: #{_lambda_.1} parent=35 // pred_check_branch
              %230 = sbr.rel target = $region51
            $region50: #{_lambda_.1} parent=35 // pred_region
              _
            $region51: #{_lambda_.1} parent=35 // pred_fallthru
              _
          $region36: #{_lambda_.1} parent=31 // pred_fallthru
            _
          %231 = vnop
        $region32: #{_lambda_.1} parent=27 // pred_fallthru
          _
        // Predicated region
        $region52: #{_lambda_.1} parent=27 // pred_check
          %p232 = pneg %p78
        $region53: #{_lambda_.1} parent=27 // pred_check_branch
          %234 = sbr.rel (%p232) target = $region55
        $region54: #{_lambda_.1} parent=27 // pred_region
          %s235 = smul.u32 64, %s11
          %p236 = scmp.lt.s32.totalorder %s235, 255
          %s237 = scalar_select %p236, %s235, 255
          %s238 = smul.addr %s237, 3
          %s239 = smul.addr %s238, 4
          %s240 = scalar_lea.vmem %s2, %s239
          %s241 = smul.u32 64, %s11
        $region55: #{_lambda_.1} parent=27 // pred_fallthru
          _
      $region28: #{_lambda_.1} parent=5 // pred_fallthru
        _
      %p242 = scmp.le.s32.totalorder 1, %s11
      %p243 = scmp.lt.s32.totalorder %s11, 5
      %p244 = pnand %p242, %p243
      %p245 = pneg %p244
      // Predicated region
      $region56: #{_lambda_.1} parent=5 // pred_check
        _
      $region57: #{_lambda_.1} parent=5 // pred_check_branch
        %247 = sbr.rel (%p244) target = $region59
      $region58: #{_lambda_.1} parent=5 // pred_region
        %s248 = ssub.s32 %s11, 1
        %s249 = sand.u32 %s45, 1
        %s250 = sand.u32 %s45, 1
        %s251 = smul.addr %s250, 128
        %s252 = scalar_lea.vmem [#allocation4], %s251
        // Predicated region
        $region60: #{_lambda_.1} parent=58 // pred_check
          %p253 = pneg %p58
        $region61: #{_lambda_.1} parent=58 // pred_check_branch
          %255 = sbr.rel (%p253) target = $region63
        $region62: #{_lambda_.1} parent=58 // pred_region
          _
        $region63: #{_lambda_.1} parent=58 // pred_fallthru
          _
        %p256 = pneg %p32
        %p257 = pneg %p29
        %s258 = sand.u32 %s45, 1
        %s259 = sand.u32 %s45, 1
        %s260 = smul.addr %s259, 128
        %s261 = scalar_lea.vmem [#allocation4], %s260
        %p262 = pneg %p58
        %p263 = pneg %p55
        %s264 = smul.u32 64, %s16
        %p265 = scmp.lt.s32.totalorder %s264, 255
        %s266 = scalar_select %p265, %s264, 255
        %s267 = smul.addr %s266, 3
        %s268 = smul.addr %s267, 4
        %s269 = scalar_lea.vmem %s2, %s268
        %p270 = pneg %p84
        %p271 = pneg %p81
        %p272 = pneg %p105
        %p273 = pneg %p102
        %p274 = pneg %p126
        %p275 = pneg %p123
        %p276 = pneg %p147
        %p277 = pneg %p144
        %s278 = smul.u32 4, %s16
        %s279 = smul.u32 64, %s16
        %p280 = scmp.lt.s32.totalorder %s279, 255
        %s281 = scalar_select %p280, %s279, 255
        %s282 = smul.addr %s281, 3
        %s283 = smul.addr %s282, 4
        %s284 = scalar_lea.vmem %s2, %s283
        %s285 = smul.u32 64, %s16
        %p286 = scmp.eq.s32.totalorder %s16, 0
        // Predicated region
        $region64: #{_lambda_.1} parent=58 // pred_check
          %p287 = pneg %p286
        $region65: #{_lambda_.1} parent=58 // pred_check_branch
          %289 = sbr.rel (%p287) target = $region67
        $region66: #{_lambda_.1} parent=58 // pred_region
          %v290 = vld [vmem:[%s4] sm:$0x7]
          %v292 = vperm.slane %v290, 0
          %v293 = vperm.slane %v290, 1
          %v294 = vperm.slane %v290, 2
          %298 = vst [vmem:[#allocation2] sm:$0xff] %v292
          %299 = vst [vmem:[#allocation2 + $0x8] sm:$0xff] %v293
          %vm300 = vcmask 523264
          %301 = vst.msk [vmem:[#allocation2 + $0x10] sm:$0xff] %vm300, %v294
          %302 = vst [vmem:[#allocation2 + $0x18] sm:$0xff] %v292
          %303 = vst [vmem:[#allocation2 + $0x20] sm:$0xff] %v293
          %304 = vst.msk [vmem:[#allocation2 + $0x28] sm:$0xff] %vm300, %v294
          %305 = vst [vmem:[#allocation2 + $0x30] sm:$0xff] %v292
          %306 = vst [vmem:[#allocation2 + $0x38] sm:$0xff] %v293
          %307 = vst.msk [vmem:[#allocation2 + $0x40] sm:$0xff] %vm300, %v294
          %308 = vst [vmem:[#allocation2 + $0x48] sm:$0xff] %v292
          %309 = vst [vmem:[#allocation2 + $0x50] sm:$0xff] %v293
          %310 = vst.msk [vmem:[#allocation2 + $0x58] sm:$0xff] %vm300, %v294
          %311 = vst [vmem:[#allocation2 + $0x60] sm:$0xff] %v292
          %312 = vst [vmem:[#allocation2 + $0x68] sm:$0xff] %v293
          %313 = vst.msk [vmem:[#allocation2 + $0x70] sm:$0xff] %vm300, %v294
          %314 = vst [vmem:[#allocation2 + $0x78] sm:$0xff] %v292
          %315 = vst [vmem:[#allocation2 + $0x80] sm:$0xff] %v293
          %316 = vst.msk [vmem:[#allocation2 + $0x88] sm:$0xff] %vm300, %v294
          %317 = vst [vmem:[#allocation2 + $0x90] sm:$0xff] %v292
          %318 = vst [vmem:[#allocation2 + $0x98] sm:$0xff] %v293
          %319 = vst.msk [vmem:[#allocation2 + $0xa0] sm:$0xff] %vm300, %v294
          %320 = vst [vmem:[#allocation2 + $0xa8] sm:$0xff] %v292
          %321 = vst [vmem:[#allocation2 + $0xb0] sm:$0xff] %v293
          %322 = vst.msk [vmem:[#allocation2 + $0xb8] sm:$0xff] %vm300, %v294
        $region67: #{_lambda_.1} parent=58 // pred_fallthru
          _
        %v323 = vld [vmem:[#allocation2] sm:$0xff]
        %v324 = vld [vmem:[#allocation2 + $0x8] sm:$0xff]
        %v325 = vld [vmem:[#allocation2 + $0x10] sm:$0xff]
        %v326 = vld [vmem:[#allocation2 + $0x18] sm:$0xff]
        %v327 = vld [vmem:[#allocation2 + $0x20] sm:$0xff]
        %v328 = vld [vmem:[#allocation2 + $0x28] sm:$0xff]
        %v329 = vld [vmem:[#allocation2 + $0x30] sm:$0xff]
        %v330 = vld [vmem:[#allocation2 + $0x38] sm:$0xff]
        %v331 = vld [vmem:[#allocation2 + $0x40] sm:$0xff]
        %v332 = vld [vmem:[#allocation2 + $0x48] sm:$0xff]
        %v333 = vld [vmem:[#allocation2 + $0x50] sm:$0xff]
        %v334 = vld [vmem:[#allocation2 + $0x58] sm:$0xff]
        %v335 = vld [vmem:[#allocation2 + $0x60] sm:$0xff]
        %v336 = vld [vmem:[#allocation2 + $0x68] sm:$0xff]
        %v337 = vld [vmem:[#allocation2 + $0x70] sm:$0xff]
        %v338 = vld [vmem:[#allocation2 + $0x78] sm:$0xff]
        %v339 = vld [vmem:[#allocation2 + $0x80] sm:$0xff]
        %v340 = vld [vmem:[#allocation2 + $0x88] sm:$0xff]
        %v341 = vld [vmem:[#allocation2 + $0x90] sm:$0xff]
        %v342 = vld [vmem:[#allocation2 + $0x98] sm:$0xff]
        %v343 = vld [vmem:[#allocation2 + $0xa0] sm:$0xff]
        %v344 = vld [vmem:[#allocation2 + $0xa8] sm:$0xff]
        %v345 = vld [vmem:[#allocation2 + $0xb0] sm:$0xff]
        %v346 = vld [vmem:[#allocation2 + $0xb8] sm:$0xff]
        %v347 = vld [vmem:[%s252] sm:$0xff]
        %v348 = vld [vmem:[%s252 + $0x8] sm:$0xff]
        %v349 = vld [vmem:[%s252 + $0x10] sm:$0xff]
        %v350 = vld [vmem:[%s252 + $0x18] sm:$0xff]
        %v351 = vld [vmem:[%s252 + $0x20] sm:$0xff]
        %v352 = vld [vmem:[%s252 + $0x28] sm:$0xff]
        %v353 = vld [vmem:[%s252 + $0x30] sm:$0xff]
        %v354 = vld [vmem:[%s252 + $0x38] sm:$0xff]
        %v355 = vld [vmem:[%s252 + $0x40] sm:$0xff]
        %v356 = vld [vmem:[%s252 + $0x48] sm:$0xff]
        %v357 = vld [vmem:[%s252 + $0x50] sm:$0xff]
        %v358 = vld [vmem:[%s252 + $0x58] sm:$0xff]
        %v359 = vld [vmem:[%s252 + $0x60] sm:$0xff]
        %v360 = vld [vmem:[%s252 + $0x68] sm:$0xff]
        %v361 = vld [vmem:[%s252 + $0x70] sm:$0xff]
        %v362 = vld [vmem:[%s252 + $0x78] sm:$0xff]
        %v363 = vld [vmem:[%s284] sm:$0xff]
        %v364 = vld [vmem:[%s284 + $0x8] sm:$0xf]
        %v365 = vld [vmem:[%s284 + $0xc] sm:$0xff]
        %v366 = vld [vmem:[%s284 + $0x14] sm:$0xf]
        %v367 = vld [vmem:[%s284 + $0x18] sm:$0xff]
        %v368 = vld [vmem:[%s284 + $0x20] sm:$0xf]
        %v369 = vld [vmem:[%s284 + $0x24] sm:$0xff]
        %v370 = vld [vmem:[%s284 + $0x2c] sm:$0xf]
        %v371 = vld [vmem:[%s284 + $0x30] sm:$0xff]
        %v372 = vld [vmem:[%s284 + $0x38] sm:$0xf]
        %v373 = vld [vmem:[%s284 + $0x3c] sm:$0xff]
        %v374 = vld [vmem:[%s284 + $0x44] sm:$0xf]
        %v375 = vld [vmem:[%s284 + $0x48] sm:$0xff]
        %v376 = vld [vmem:[%s284 + $0x50] sm:$0xf]
        %v377 = vld [vmem:[%s284 + $0x54] sm:$0xff]
        %v378 = vld [vmem:[%s284 + $0x5c] sm:$0xf]
        %v379 = vld [vmem:[%s284 + $0x60] sm:$0xff]
        %v380 = vld [vmem:[%s284 + $0x68] sm:$0xf]
        %v381 = vld [vmem:[%s284 + $0x6c] sm:$0xff]
        %v382 = vld [vmem:[%s284 + $0x74] sm:$0xf]
        %v383 = vld [vmem:[%s284 + $0x78] sm:$0xff]
        %v384 = vld [vmem:[%s284 + $0x80] sm:$0xf]
        %v385 = vld [vmem:[%s284 + $0x84] sm:$0xff]
        %v386 = vld [vmem:[%s284 + $0x8c] sm:$0xf]
        %v387 = vld [vmem:[%s284 + $0x90] sm:$0xff]
        %v388 = vld [vmem:[%s284 + $0x98] sm:$0xf]
        %v389 = vld [vmem:[%s284 + $0x9c] sm:$0xff]
        %v390 = vld [vmem:[%s284 + $0xa4] sm:$0xf]
        %v391 = vld [vmem:[%s284 + $0xa8] sm:$0xff]
        %v392 = vld [vmem:[%s284 + $0xb0] sm:$0xf]
        %v393 = vld [vmem:[%s284 + $0xb4] sm:$0xff]
        %v394 = vld [vmem:[%s284 + $0xbc] sm:$0xf]
        %v395 = vld [vmem:[%s284 + $0xc0] sm:$0xff]
        %v396 = vld [vmem:[%s284 + $0xc8] sm:$0xf]
        %v397 = vld [vmem:[%s284 + $0xcc] sm:$0xff]
        %v398 = vld [vmem:[%s284 + $0xd4] sm:$0xf]
        %v399 = vld [vmem:[%s284 + $0xd8] sm:$0xff]
        %v400 = vld [vmem:[%s284 + $0xe0] sm:$0xf]
        %v401 = vld [vmem:[%s284 + $0xe4] sm:$0xff]
        %v402 = vld [vmem:[%s284 + $0xec] sm:$0xf]
        %v403 = vld [vmem:[%s284 + $0xf0] sm:$0xff]
        %v404 = vld [vmem:[%s284 + $0xf8] sm:$0xf]
        %v405 = vld [vmem:[%s284 + $0xfc] sm:$0xff]
        %v406 = vld [vmem:[%s284 + $0x104] sm:$0xf]
        %v407 = vld [vmem:[%s284 + $0x108] sm:$0xff]
        %v408 = vld [vmem:[%s284 + $0x110] sm:$0xf]
        %v409 = vld [vmem:[%s284 + $0x114] sm:$0xff]
        %v410 = vld [vmem:[%s284 + $0x11c] sm:$0xf]
        %v411 = vld [vmem:[%s284 + $0x120] sm:$0xff]
        %v412 = vld [vmem:[%s284 + $0x128] sm:$0xf]
        %v413 = vld [vmem:[%s284 + $0x12c] sm:$0xff]
        %v414 = vld [vmem:[%s284 + $0x134] sm:$0xf]
        %v415 = vld [vmem:[%s284 + $0x138] sm:$0xff]
        %v416 = vld [vmem:[%s284 + $0x140] sm:$0xf]
        %v417 = vld [vmem:[%s284 + $0x144] sm:$0xff]
        %v418 = vld [vmem:[%s284 + $0x14c] sm:$0xf]
        %v419 = vld [vmem:[%s284 + $0x150] sm:$0xff]
        %v420 = vld [vmem:[%s284 + $0x158] sm:$0xf]
        %v421 = vld [vmem:[%s284 + $0x15c] sm:$0xff]
        %v422 = vld [vmem:[%s284 + $0x164] sm:$0xf]
        %v423 = vld [vmem:[%s284 + $0x168] sm:$0xff]
        %v424 = vld [vmem:[%s284 + $0x170] sm:$0xf]
        %v425 = vld [vmem:[%s284 + $0x174] sm:$0xff]
        %v426 = vld [vmem:[%s284 + $0x17c] sm:$0xf]
        %v427 = vld [vmem:[%s284 + $0x180] sm:$0xff]
        %v428 = vld [vmem:[%s284 + $0x188] sm:$0xf]
        %v429 = vld [vmem:[%s284 + $0x18c] sm:$0xff]
        %v430 = vld [vmem:[%s284 + $0x194] sm:$0xf]
        %v431 = vld [vmem:[%s284 + $0x198] sm:$0xff]
        %v432 = vld [vmem:[%s284 + $0x1a0] sm:$0xf]
        %v433 = vld [vmem:[%s284 + $0x1a4] sm:$0xff]
        %v434 = vld [vmem:[%s284 + $0x1ac] sm:$0xf]
        %v435 = vld [vmem:[%s284 + $0x1b0] sm:$0xff]
        %v436 = vld [vmem:[%s284 + $0x1b8] sm:$0xf]
        %v437 = vld [vmem:[%s284 + $0x1bc] sm:$0xff]
        %v438 = vld [vmem:[%s284 + $0x1c4] sm:$0xf]
        %v439 = vld [vmem:[%s284 + $0x1c8] sm:$0xff]
        %v440 = vld [vmem:[%s284 + $0x1d0] sm:$0xf]
        %v441 = vld [vmem:[%s284 + $0x1d4] sm:$0xff]
        %v442 = vld [vmem:[%s284 + $0x1dc] sm:$0xf]
        %v443 = vld [vmem:[%s284 + $0x1e0] sm:$0xff]
        %v444 = vld [vmem:[%s284 + $0x1e8] sm:$0xf]
        %v445 = vld [vmem:[%s284 + $0x1ec] sm:$0xff]
        %v446 = vld [vmem:[%s284 + $0x1f4] sm:$0xf]
        %v447 = vld [vmem:[%s284 + $0x1f8] sm:$0xff]
        %v448 = vld [vmem:[%s284 + $0x200] sm:$0xf]
        %v449 = vld [vmem:[%s284 + $0x204] sm:$0xff]
        %v450 = vld [vmem:[%s284 + $0x20c] sm:$0xf]
        %v451 = vld [vmem:[%s284 + $0x210] sm:$0xff]
        %v452 = vld [vmem:[%s284 + $0x218] sm:$0xf]
        %v453 = vld [vmem:[%s284 + $0x21c] sm:$0xff]
        %v454 = vld [vmem:[%s284 + $0x224] sm:$0xf]
        %v455 = vld [vmem:[%s284 + $0x228] sm:$0xff]
        %v456 = vld [vmem:[%s284 + $0x230] sm:$0xf]
        %v457 = vld [vmem:[%s284 + $0x234] sm:$0xff]
        %v458 = vld [vmem:[%s284 + $0x23c] sm:$0xf]
        %v459 = vld [vmem:[%s284 + $0x240] sm:$0xff]
        %v460 = vld [vmem:[%s284 + $0x248] sm:$0xf]
        %v461 = vld [vmem:[%s284 + $0x24c] sm:$0xff]
        %v462 = vld [vmem:[%s284 + $0x254] sm:$0xf]
        %v463 = vld [vmem:[%s284 + $0x258] sm:$0xff]
        %v464 = vld [vmem:[%s284 + $0x260] sm:$0xf]
        %v465 = vld [vmem:[%s284 + $0x264] sm:$0xff]
        %v466 = vld [vmem:[%s284 + $0x26c] sm:$0xf]
        %v467 = vld [vmem:[%s284 + $0x270] sm:$0xff]
        %v468 = vld [vmem:[%s284 + $0x278] sm:$0xf]
        %v469 = vld [vmem:[%s284 + $0x27c] sm:$0xff]
        %v470 = vld [vmem:[%s284 + $0x284] sm:$0xf]
        %v471 = vld [vmem:[%s284 + $0x288] sm:$0xff]
        %v472 = vld [vmem:[%s284 + $0x290] sm:$0xf]
        %v473 = vld [vmem:[%s284 + $0x294] sm:$0xff]
        %v474 = vld [vmem:[%s284 + $0x29c] sm:$0xf]
        %v475 = vld [vmem:[%s284 + $0x2a0] sm:$0xff]
        %v476 = vld [vmem:[%s284 + $0x2a8] sm:$0xf]
        %v477 = vld [vmem:[%s284 + $0x2ac] sm:$0xff]
        %v478 = vld [vmem:[%s284 + $0x2b4] sm:$0xf]
        %v479 = vld [vmem:[%s284 + $0x2b8] sm:$0xff]
        %v480 = vld [vmem:[%s284 + $0x2c0] sm:$0xf]
        %v481 = vld [vmem:[%s284 + $0x2c4] sm:$0xff]
        %v482 = vld [vmem:[%s284 + $0x2cc] sm:$0xf]
        %v483 = vld [vmem:[%s284 + $0x2d0] sm:$0xff]
        %v484 = vld [vmem:[%s284 + $0x2d8] sm:$0xf]
        %v485 = vld [vmem:[%s284 + $0x2dc] sm:$0xff]
        %v486 = vld [vmem:[%s284 + $0x2e4] sm:$0xf]
        %v487 = vld [vmem:[%s284 + $0x2e8] sm:$0xff]
        %v488 = vld [vmem:[%s284 + $0x2f0] sm:$0xf]
        %v489 = vld [vmem:[%s284 + $0x2f4] sm:$0xff]
        %v490 = vld [vmem:[%s284 + $0x2fc] sm:$0xf]
        %v507 = vunpack.c.l.b16 %v347
        %v508 = vunpack.c.h.b16 %v347
        %v509 = vunpack.c.l.b16 %v348
        %v510 = vunpack.c.h.b16 %v348
        %v511 = vunpack.c.l.b16 %v349
        %v512 = vunpack.c.h.b16 %v349
        %v513 = vunpack.c.l.b16 %v350
        %v514 = vunpack.c.h.b16 %v350
        %v515 = vunpack.c.l.b16 %v351
        %v516 = vunpack.c.h.b16 %v351
        %v517 = vunpack.c.l.b16 %v352
        %v518 = vunpack.c.h.b16 %v352
        %v519 = vunpack.c.l.b16 %v353
        %v520 = vunpack.c.h.b16 %v353
        %v521 = vunpack.c.l.b16 %v354
        %v522 = vunpack.c.h.b16 %v354
        %v523 = vunpack.c.l.b16 %v355
        %v524 = vunpack.c.h.b16 %v355
        %v525 = vunpack.c.l.b16 %v356
        %v526 = vunpack.c.h.b16 %v356
        %v527 = vunpack.c.l.b16 %v357
        %v528 = vunpack.c.h.b16 %v357
        %v529 = vunpack.c.l.b16 %v358
        %v530 = vunpack.c.h.b16 %v358
        %v531 = vunpack.c.l.b16 %v359
        %v532 = vunpack.c.h.b16 %v359
        %v533 = vunpack.c.l.b16 %v360
        %v534 = vunpack.c.h.b16 %v360
        %v535 = vunpack.c.l.b16 %v361
        %v536 = vunpack.c.h.b16 %v361
        %v537 = vunpack.c.l.b16 %v362
        %v538 = vunpack.c.h.b16 %v362
        %v539 = vpack.c.b16 %v511, %v507
        %v540 = vpack.c.b16 %v512, %v508
        %v541 = vpack.c.b16 %v513, %v509
        %v542 = vpack.c.b16 %v514, %v510
        %v543 = vpack.c.b16 %v519, %v515
        %v544 = vpack.c.b16 %v520, %v516
        %v545 = vpack.c.b16 %v521, %v517
        %v546 = vpack.c.b16 %v522, %v518
        %v547 = vpack.c.b16 %v527, %v523
        %v548 = vpack.c.b16 %v528, %v524
        %v549 = vpack.c.b16 %v529, %v525
        %v550 = vpack.c.b16 %v530, %v526
        %v551 = vpack.c.b16 %v535, %v531
        %v552 = vpack.c.b16 %v536, %v532
        %v553 = vpack.c.b16 %v537, %v533
        %v554 = vpack.c.b16 %v538, %v534
        %v699 = vunpack.c.l.b16 %v363
        %v700 = vunpack.c.h.b16 %v363
        %v701 = vunpack.c.l.b16 %v364
        %v702 = vunpack.c.l.b16 %v365
        %v703 = vunpack.c.h.b16 %v365
        %v704 = vunpack.c.l.b16 %v366
        %v705 = vunpack.c.l.b16 %v367
        %v706 = vunpack.c.h.b16 %v367
        %v707 = vunpack.c.l.b16 %v368
        %v708 = vunpack.c.l.b16 %v369
        %v709 = vunpack.c.h.b16 %v369
        %v710 = vunpack.c.l.b16 %v370
        %v711 = vunpack.c.l.b16 %v371
        %v712 = vunpack.c.h.b16 %v371
        %v713 = vunpack.c.l.b16 %v372
        %v714 = vunpack.c.l.b16 %v373
        %v715 = vunpack.c.h.b16 %v373
        %v716 = vunpack.c.l.b16 %v374
        %v717 = vunpack.c.l.b16 %v375
        %v718 = vunpack.c.h.b16 %v375
        %v719 = vunpack.c.l.b16 %v376
        %v720 = vunpack.c.l.b16 %v377
        %v721 = vunpack.c.h.b16 %v377
        %v722 = vunpack.c.l.b16 %v378
        %v723 = vunpack.c.l.b16 %v379
        %v724 = vunpack.c.h.b16 %v379
        %v725 = vunpack.c.l.b16 %v380
        %v726 = vunpack.c.l.b16 %v381
        %v727 = vunpack.c.h.b16 %v381
        %v728 = vunpack.c.l.b16 %v382
        %v729 = vunpack.c.l.b16 %v383
        %v730 = vunpack.c.h.b16 %v383
        %v731 = vunpack.c.l.b16 %v384
        %v732 = vunpack.c.l.b16 %v385
        %v733 = vunpack.c.h.b16 %v385
        %v734 = vunpack.c.l.b16 %v386
        %v735 = vunpack.c.l.b16 %v387
        %v736 = vunpack.c.h.b16 %v387
        %v737 = vunpack.c.l.b16 %v388
        %v738 = vunpack.c.l.b16 %v389
        %v739 = vunpack.c.h.b16 %v389
        %v740 = vunpack.c.l.b16 %v390
        %v741 = vunpack.c.l.b16 %v391
        %v742 = vunpack.c.h.b16 %v391
        %v743 = vunpack.c.l.b16 %v392
        %v744 = vunpack.c.l.b16 %v393
        %v745 = vunpack.c.h.b16 %v393
        %v746 = vunpack.c.l.b16 %v394
        %v747 = vunpack.c.l.b16 %v395
        %v748 = vunpack.c.h.b16 %v395
        %v749 = vunpack.c.l.b16 %v396
        %v750 = vunpack.c.l.b16 %v397
        %v751 = vunpack.c.h.b16 %v397
        %v752 = vunpack.c.l.b16 %v398
        %v753 = vunpack.c.l.b16 %v399
        %v754 = vunpack.c.h.b16 %v399
        %v755 = vunpack.c.l.b16 %v400
        %v756 = vunpack.c.l.b16 %v401
        %v757 = vunpack.c.h.b16 %v401
        %v758 = vunpack.c.l.b16 %v402
        %v759 = vunpack.c.l.b16 %v403
        %v760 = vunpack.c.h.b16 %v403
        %v761 = vunpack.c.l.b16 %v404
        %v762 = vunpack.c.l.b16 %v405
        %v763 = vunpack.c.h.b16 %v405
        %v764 = vunpack.c.l.b16 %v406
        %v765 = vunpack.c.l.b16 %v407
        %v766 = vunpack.c.h.b16 %v407
        %v767 = vunpack.c.l.b16 %v408
        %v768 = vunpack.c.l.b16 %v409
        %v769 = vunpack.c.h.b16 %v409
        %v770 = vunpack.c.l.b16 %v410
        %v771 = vunpack.c.l.b16 %v411
        %v772 = vunpack.c.h.b16 %v411
        %v773 = vunpack.c.l.b16 %v412
        %v774 = vunpack.c.l.b16 %v413
        %v775 = vunpack.c.h.b16 %v413
        %v776 = vunpack.c.l.b16 %v414
        %v777 = vunpack.c.l.b16 %v415
        %v778 = vunpack.c.h.b16 %v415
        %v779 = vunpack.c.l.b16 %v416
        %v780 = vunpack.c.l.b16 %v417
        %v781 = vunpack.c.h.b16 %v417
        %v782 = vunpack.c.l.b16 %v418
        %v783 = vunpack.c.l.b16 %v419
        %v784 = vunpack.c.h.b16 %v419
        %v785 = vunpack.c.l.b16 %v420
        %v786 = vunpack.c.l.b16 %v421
        %v787 = vunpack.c.h.b16 %v421
        %v788 = vunpack.c.l.b16 %v422
        %v789 = vunpack.c.l.b16 %v423
        %v790 = vunpack.c.h.b16 %v423
        %v791 = vunpack.c.l.b16 %v424
        %v792 = vunpack.c.l.b16 %v425
        %v793 = vunpack.c.h.b16 %v425
        %v794 = vunpack.c.l.b16 %v426
        %v795 = vunpack.c.l.b16 %v427
        %v796 = vunpack.c.h.b16 %v427
        %v797 = vunpack.c.l.b16 %v428
        %v798 = vunpack.c.l.b16 %v429
        %v799 = vunpack.c.h.b16 %v429
        %v800 = vunpack.c.l.b16 %v430
        %v801 = vunpack.c.l.b16 %v431
        %v802 = vunpack.c.h.b16 %v431
        %v803 = vunpack.c.l.b16 %v432
        %v804 = vunpack.c.l.b16 %v433
        %v805 = vunpack.c.h.b16 %v433
        %v806 = vunpack.c.l.b16 %v434
        %v807 = vunpack.c.l.b16 %v435
        %v808 = vunpack.c.h.b16 %v435
        %v809 = vunpack.c.l.b16 %v436
        %v810 = vunpack.c.l.b16 %v437
        %v811 = vunpack.c.h.b16 %v437
        %v812 = vunpack.c.l.b16 %v438
        %v813 = vunpack.c.l.b16 %v439
        %v814 = vunpack.c.h.b16 %v439
        %v815 = vunpack.c.l.b16 %v440
        %v816 = vunpack.c.l.b16 %v441
        %v817 = vunpack.c.h.b16 %v441
        %v818 = vunpack.c.l.b16 %v442
        %v819 = vunpack.c.l.b16 %v443
        %v820 = vunpack.c.h.b16 %v443
        %v821 = vunpack.c.l.b16 %v444
        %v822 = vunpack.c.l.b16 %v445
        %v823 = vunpack.c.h.b16 %v445
        %v824 = vunpack.c.l.b16 %v446
        %v825 = vunpack.c.l.b16 %v447
        %v826 = vunpack.c.h.b16 %v447
        %v827 = vunpack.c.l.b16 %v448
        %v828 = vunpack.c.l.b16 %v449
        %v829 = vunpack.c.h.b16 %v449
        %v830 = vunpack.c.l.b16 %v450
        %v831 = vunpack.c.l.b16 %v451
        %v832 = vunpack.c.h.b16 %v451
        %v833 = vunpack.c.l.b16 %v452
        %v834 = vunpack.c.l.b16 %v453
        %v835 = vunpack.c.h.b16 %v453
        %v836 = vunpack.c.l.b16 %v454
        %v837 = vunpack.c.l.b16 %v455
        %v838 = vunpack.c.h.b16 %v455
        %v839 = vunpack.c.l.b16 %v456
        %v840 = vunpack.c.l.b16 %v457
        %v841 = vunpack.c.h.b16 %v457
        %v842 = vunpack.c.l.b16 %v458
        %v843 = vunpack.c.l.b16 %v459
        %v844 = vunpack.c.h.b16 %v459
        %v845 = vunpack.c.l.b16 %v460
        %v846 = vunpack.c.l.b16 %v461
        %v847 = vunpack.c.h.b16 %v461
        %v848 = vunpack.c.l.b16 %v462
        %v849 = vunpack.c.l.b16 %v463
        %v850 = vunpack.c.h.b16 %v463
        %v851 = vunpack.c.l.b16 %v464
        %v852 = vunpack.c.l.b16 %v465
        %v853 = vunpack.c.h.b16 %v465
        %v854 = vunpack.c.l.b16 %v466
        %v855 = vunpack.c.l.b16 %v467
        %v856 = vunpack.c.h.b16 %v467
        %v857 = vunpack.c.l.b16 %v468
        %v858 = vunpack.c.l.b16 %v469
        %v859 = vunpack.c.h.b16 %v469
        %v860 = vunpack.c.l.b16 %v470
        %v861 = vunpack.c.l.b16 %v471
        %v862 = vunpack.c.h.b16 %v471
        %v863 = vunpack.c.l.b16 %v472
        %v864 = vunpack.c.l.b16 %v473
        %v865 = vunpack.c.h.b16 %v473
        %v866 = vunpack.c.l.b16 %v474
        %v867 = vunpack.c.l.b16 %v475
        %v868 = vunpack.c.h.b16 %v475
        %v869 = vunpack.c.l.b16 %v476
        %v870 = vunpack.c.l.b16 %v477
        %v871 = vunpack.c.h.b16 %v477
        %v872 = vunpack.c.l.b16 %v478
        %v873 = vunpack.c.l.b16 %v479
        %v874 = vunpack.c.h.b16 %v479
        %v875 = vunpack.c.l.b16 %v480
        %v876 = vunpack.c.l.b16 %v481
        %v877 = vunpack.c.h.b16 %v481
        %v878 = vunpack.c.l.b16 %v482
        %v879 = vunpack.c.l.b16 %v483
        %v880 = vunpack.c.h.b16 %v483
        %v881 = vunpack.c.l.b16 %v484
        %v882 = vunpack.c.l.b16 %v485
        %v883 = vunpack.c.h.b16 %v485
        %v884 = vunpack.c.l.b16 %v486
        %v885 = vunpack.c.l.b16 %v487
        %v886 = vunpack.c.h.b16 %v487
        %v887 = vunpack.c.l.b16 %v488
        %v888 = vunpack.c.l.b16 %v489
        %v889 = vunpack.c.h.b16 %v489
        %v890 = vunpack.c.l.b16 %v490
        %v891 = vpack.c.b16 %v702, %v699
        %v892 = vpack.c.b16 %v703, %v700
        %v893 = vpack.c.b16 %v704, %v701
        %v894 = vpack.c.b16 %v708, %v705
        %v895 = vpack.c.b16 %v709, %v706
        %v896 = vpack.c.b16 %v710, %v707
        %v897 = vpack.c.b16 %v714, %v711
        %v898 = vpack.c.b16 %v715, %v712
        %v899 = vpack.c.b16 %v716, %v713
        %v900 = vpack.c.b16 %v720, %v717
        %v901 = vpack.c.b16 %v721, %v718
        %v902 = vpack.c.b16 %v722, %v719
        %v903 = vpack.c.b16 %v726, %v723
        %v904 = vpack.c.b16 %v727, %v724
        %v905 = vpack.c.b16 %v728, %v725
        %v906 = vpack.c.b16 %v732, %v729
        %v907 = vpack.c.b16 %v733, %v730
        %v908 = vpack.c.b16 %v734, %v731
        %v909 = vpack.c.b16 %v738, %v735
        %v910 = vpack.c.b16 %v739, %v736
        %v911 = vpack.c.b16 %v740, %v737
        %v912 = vpack.c.b16 %v744, %v741
        %v913 = vpack.c.b16 %v745, %v742
        %v914 = vpack.c.b16 %v746, %v743
        %v915 = vpack.c.b16 %v750, %v747
        %v916 = vpack.c.b16 %v751, %v748
        %v917 = vpack.c.b16 %v752, %v749
        %v918 = vpack.c.b16 %v756, %v753
        %v919 = vpack.c.b16 %v757, %v754
        %v920 = vpack.c.b16 %v758, %v755
        %v921 = vpack.c.b16 %v762, %v759
        %v922 = vpack.c.b16 %v763, %v760
        %v923 = vpack.c.b16 %v764, %v761
        %v924 = vpack.c.b16 %v768, %v765
        %v925 = vpack.c.b16 %v769, %v766
        %v926 = vpack.c.b16 %v770, %v767
        %v927 = vpack.c.b16 %v774, %v771
        %v928 = vpack.c.b16 %v775, %v772
        %v929 = vpack.c.b16 %v776, %v773
        %v930 = vpack.c.b16 %v780, %v777
        %v931 = vpack.c.b16 %v781, %v778
        %v932 = vpack.c.b16 %v782, %v779
        %v933 = vpack.c.b16 %v786, %v783
        %v934 = vpack.c.b16 %v787, %v784
        %v935 = vpack.c.b16 %v788, %v785
        %v936 = vpack.c.b16 %v792, %v789
        %v937 = vpack.c.b16 %v793, %v790
        %v938 = vpack.c.b16 %v794, %v791
        %v939 = vpack.c.b16 %v798, %v795
        %v940 = vpack.c.b16 %v799, %v796
        %v941 = vpack.c.b16 %v800, %v797
        %v942 = vpack.c.b16 %v804, %v801
        %v943 = vpack.c.b16 %v805, %v802
        %v944 = vpack.c.b16 %v806, %v803
        %v945 = vpack.c.b16 %v810, %v807
        %v946 = vpack.c.b16 %v811, %v808
        %v947 = vpack.c.b16 %v812, %v809
        %v948 = vpack.c.b16 %v816, %v813
        %v949 = vpack.c.b16 %v817, %v814
        %v950 = vpack.c.b16 %v818, %v815
        %v951 = vpack.c.b16 %v822, %v819
        %v952 = vpack.c.b16 %v823, %v820
        %v953 = vpack.c.b16 %v824, %v821
        %v954 = vpack.c.b16 %v828, %v825
        %v955 = vpack.c.b16 %v829, %v826
        %v956 = vpack.c.b16 %v830, %v827
        %v957 = vpack.c.b16 %v834, %v831
        %v958 = vpack.c.b16 %v835, %v832
        %v959 = vpack.c.b16 %v836, %v833
        %v960 = vpack.c.b16 %v840, %v837
        %v961 = vpack.c.b16 %v841, %v838
        %v962 = vpack.c.b16 %v842, %v839
        %v963 = vpack.c.b16 %v846, %v843
        %v964 = vpack.c.b16 %v847, %v844
        %v965 = vpack.c.b16 %v848, %v845
        %v966 = vpack.c.b16 %v852, %v849
        %v967 = vpack.c.b16 %v853, %v850
        %v968 = vpack.c.b16 %v854, %v851
        %v969 = vpack.c.b16 %v858, %v855
        %v970 = vpack.c.b16 %v859, %v856
        %v971 = vpack.c.b16 %v860, %v857
        %v972 = vpack.c.b16 %v864, %v861
        %v973 = vpack.c.b16 %v865, %v862
        %v974 = vpack.c.b16 %v866, %v863
        %v975 = vpack.c.b16 %v870, %v867
        %v976 = vpack.c.b16 %v871, %v868
        %v977 = vpack.c.b16 %v872, %v869
        %v978 = vpack.c.b16 %v876, %v873
        %v979 = vpack.c.b16 %v877, %v874
        %v980 = vpack.c.b16 %v878, %v875
        %v981 = vpack.c.b16 %v882, %v879
        %v982 = vpack.c.b16 %v883, %v880
        %v983 = vpack.c.b16 %v884, %v881
        %v984 = vpack.c.b16 %v888, %v885
        %v985 = vpack.c.b16 %v889, %v886
        %v986 = vpack.c.b16 %v890, %v887
        %1083 = vmatpush.bf16.msra.mxu0 %v912
        %1084 = vmatpush.bf16.msra.mxu0 %v909
        %1085 = vmatpush.bf16.msra.mxu0 %v906
        %1086 = vmatpush.bf16.msra.mxu0 %v903
        %1087 = vmatpush.bf16.msra.mxu0 %v900
        %1088 = vmatpush.bf16.msra.mxu0 %v897
        %1089 = vmatpush.bf16.msra.mxu0 %v894
        %1090 = vmatpush.bf16.msra.mxu0 %v891
        %1091 = vmatmul.bf16.gmra.mxu0 %v539
        %v1092 = vpop.f32.mrf.mxu0
        %v1093 = vadd.f32 0.0, %v1092
        %v1094 = vpop.f32.mrf.mxu0
        %v1095 = vadd.f32 0.0, %v1094
        %1096 = vmatmul.bf16.gmra.mxu0 %v543
        %v1097 = vpop.f32.mrf.mxu0
        %v1098 = vadd.f32 0.0, %v1097
        %v1099 = vpop.f32.mrf.mxu0
        %v1100 = vadd.f32 0.0, %v1099
        %1101 = vmatmul.bf16.gmra.mxu0 %v547
        %v1102 = vpop.f32.mrf.mxu0
        %v1103 = vadd.f32 0.0, %v1102
        %v1104 = vpop.f32.mrf.mxu0
        %v1105 = vadd.f32 0.0, %v1104
        %1106 = vmatmul.bf16.gmra.mxu0 %v551
        %v1107 = vpop.f32.mrf.mxu0
        %v1108 = vadd.f32 0.0, %v1107
        %v1109 = vpop.f32.mrf.mxu0
        %v1110 = vadd.f32 0.0, %v1109
        %1111 = vdwg.mxu0
        %1112 = vmatpush.bf16.msra.mxu0 %v936
        %1113 = vmatpush.bf16.msra.mxu0 %v933
        %1114 = vmatpush.bf16.msra.mxu0 %v930
        %1115 = vmatpush.bf16.msra.mxu0 %v927
        %1116 = vmatpush.bf16.msra.mxu0 %v924
        %1117 = vmatpush.bf16.msra.mxu0 %v921
        %1118 = vmatpush.bf16.msra.mxu0 %v918
        %1119 = vmatpush.bf16.msra.mxu0 %v915
        %1120 = vmatmul.bf16.gmra.mxu0 %v540
        %v1121 = vpop.f32.mrf.mxu0
        %v1122 = vadd.f32 %v1093, %v1121
        %v1123 = vpop.f32.mrf.mxu0
        %v1124 = vadd.f32 %v1095, %v1123
        %1125 = vmatmul.bf16.gmra.mxu0 %v544
        %v1126 = vpop.f32.mrf.mxu0
        %v1127 = vadd.f32 %v1098, %v1126
        %v1128 = vpop.f32.mrf.mxu0
        %v1129 = vadd.f32 %v1100, %v1128
        %1130 = vmatmul.bf16.gmra.mxu0 %v548
        %v1131 = vpop.f32.mrf.mxu0
        %v1132 = vadd.f32 %v1103, %v1131
        %v1133 = vpop.f32.mrf.mxu0
        %v1134 = vadd.f32 %v1105, %v1133
        %1135 = vmatmul.bf16.gmra.mxu0 %v552
        %v1136 = vpop.f32.mrf.mxu0
        %v1137 = vadd.f32 %v1108, %v1136
        %v1138 = vpop.f32.mrf.mxu0
        %v1139 = vadd.f32 %v1110, %v1138
        %1140 = vdwg.mxu0
        %1141 = vmatpush.bf16.msra.mxu0 %v960
        %1142 = vmatpush.bf16.msra.mxu0 %v957
        %1143 = vmatpush.bf16.msra.mxu0 %v954
        %1144 = vmatpush.bf16.msra.mxu0 %v951
        %1145 = vmatpush.bf16.msra.mxu0 %v948
        %1146 = vmatpush.bf16.msra.mxu0 %v945
        %1147 = vmatpush.bf16.msra.mxu0 %v942
        %1148 = vmatpush.bf16.msra.mxu0 %v939
        %1149 = vmatmul.bf16.gmra.mxu0 %v541
        %v1150 = vpop.f32.mrf.mxu0
        %v1151 = vadd.f32 %v1122, %v1150
        %v1152 = vpop.f32.mrf.mxu0
        %v1153 = vadd.f32 %v1124, %v1152
        %1154 = vmatmul.bf16.gmra.mxu0 %v545
        %v1155 = vpop.f32.mrf.mxu0
        %v1156 = vadd.f32 %v1127, %v1155
        %v1157 = vpop.f32.mrf.mxu0
        %v1158 = vadd.f32 %v1129, %v1157
        %1159 = vmatmul.bf16.gmra.mxu0 %v549
        %v1160 = vpop.f32.mrf.mxu0
        %v1161 = vadd.f32 %v1132, %v1160
        %v1162 = vpop.f32.mrf.mxu0
        %v1163 = vadd.f32 %v1134, %v1162
        %1164 = vmatmul.bf16.gmra.mxu0 %v553
        %v1165 = vpop.f32.mrf.mxu0
        %v1166 = vadd.f32 %v1137, %v1165
        %v1167 = vpop.f32.mrf.mxu0
        %v1168 = vadd.f32 %v1139, %v1167
        %1169 = vdwg.mxu0
        %1170 = vmatpush.bf16.msra.mxu0 %v984
        %1171 = vmatpush.bf16.msra.mxu0 %v981
        %1172 = vmatpush.bf16.msra.mxu0 %v978
        %1173 = vmatpush.bf16.msra.mxu0 %v975
        %1174 = vmatpush.bf16.msra.mxu0 %v972
        %1175 = vmatpush.bf16.msra.mxu0 %v969
        %1176 = vmatpush.bf16.msra.mxu0 %v966
        %1177 = vmatpush.bf16.msra.mxu0 %v963
        %1178 = vmatmul.bf16.gmra.mxu0 %v542
        %v1179 = vpop.f32.mrf.mxu0
        %v1180 = vadd.f32 %v1151, %v1179
        %v1181 = vpop.f32.mrf.mxu0
        %v1182 = vadd.f32 %v1153, %v1181
        %1183 = vmatmul.bf16.gmra.mxu0 %v546
        %v1184 = vpop.f32.mrf.mxu0
        %v1185 = vadd.f32 %v1156, %v1184
        %v1186 = vpop.f32.mrf.mxu0
        %v1187 = vadd.f32 %v1158, %v1186
        %1188 = vmatmul.bf16.gmra.mxu0 %v550
        %v1189 = vpop.f32.mrf.mxu0
        %v1190 = vadd.f32 %v1161, %v1189
        %v1191 = vpop.f32.mrf.mxu0
        %v1192 = vadd.f32 %v1163, %v1191
        %1193 = vmatmul.bf16.gmra.mxu0 %v554
        %v1194 = vpop.f32.mrf.mxu0
        %v1195 = vadd.f32 %v1166, %v1194
        %v1196 = vpop.f32.mrf.mxu0
        %v1197 = vadd.f32 %v1168, %v1196
        %1198 = vdwg.mxu0
        %1199 = vmatpush.bf16.msra.mxu0 %v913
        %1200 = vmatpush.bf16.msra.mxu0 %v910
        %1201 = vmatpush.bf16.msra.mxu0 %v907
        %1202 = vmatpush.bf16.msra.mxu0 %v904
        %1203 = vmatpush.bf16.msra.mxu0 %v901
        %1204 = vmatpush.bf16.msra.mxu0 %v898
        %1205 = vmatpush.bf16.msra.mxu0 %v895
        %1206 = vmatpush.bf16.msra.mxu0 %v892
        %1207 = vmatmul.bf16.gmra.mxu0 %v539
        %v1208 = vpop.f32.mrf.mxu0
        %v1209 = vadd.f32 0.0, %v1208
        %v1210 = vpop.f32.mrf.mxu0
        %v1211 = vadd.f32 0.0, %v1210
        %1212 = vmatmul.bf16.gmra.mxu0 %v543
        %v1213 = vpop.f32.mrf.mxu0
        %v1214 = vadd.f32 0.0, %v1213
        %v1215 = vpop.f32.mrf.mxu0
        %v1216 = vadd.f32 0.0, %v1215
        %1217 = vmatmul.bf16.gmra.mxu0 %v547
        %v1218 = vpop.f32.mrf.mxu0
        %v1219 = vadd.f32 0.0, %v1218
        %v1220 = vpop.f32.mrf.mxu0
        %v1221 = vadd.f32 0.0, %v1220
        %1222 = vmatmul.bf16.gmra.mxu0 %v551
        %v1223 = vpop.f32.mrf.mxu0
        %v1224 = vadd.f32 0.0, %v1223
        %v1225 = vpop.f32.mrf.mxu0
        %v1226 = vadd.f32 0.0, %v1225
        %1227 = vdwg.mxu0
        %1228 = vmatpush.bf16.msra.mxu0 %v937
        %1229 = vmatpush.bf16.msra.mxu0 %v934
        %1230 = vmatpush.bf16.msra.mxu0 %v931
        %1231 = vmatpush.bf16.msra.mxu0 %v928
        %1232 = vmatpush.bf16.msra.mxu0 %v925
        %1233 = vmatpush.bf16.msra.mxu0 %v922
        %1234 = vmatpush.bf16.msra.mxu0 %v919
        %1235 = vmatpush.bf16.msra.mxu0 %v916
        %1236 = vmatmul.bf16.gmra.mxu0 %v540
        %v1237 = vpop.f32.mrf.mxu0
        %v1238 = vadd.f32 %v1209, %v1237
        %v1239 = vpop.f32.mrf.mxu0
        %v1240 = vadd.f32 %v1211, %v1239
        %1241 = vmatmul.bf16.gmra.mxu0 %v544
        %v1242 = vpop.f32.mrf.mxu0
        %v1243 = vadd.f32 %v1214, %v1242
        %v1244 = vpop.f32.mrf.mxu0
        %v1245 = vadd.f32 %v1216, %v1244
        %1246 = vmatmul.bf16.gmra.mxu0 %v548
        %v1247 = vpop.f32.mrf.mxu0
        %v1248 = vadd.f32 %v1219, %v1247
        %v1249 = vpop.f32.mrf.mxu0
        %v1250 = vadd.f32 %v1221, %v1249
        %1251 = vmatmul.bf16.gmra.mxu0 %v552
        %v1252 = vpop.f32.mrf.mxu0
        %v1253 = vadd.f32 %v1224, %v1252
        %v1254 = vpop.f32.mrf.mxu0
        %v1255 = vadd.f32 %v1226, %v1254
        %1256 = vdwg.mxu0
        %1257 = vmatpush.bf16.msra.mxu0 %v961
        %1258 = vmatpush.bf16.msra.mxu0 %v958
        %1259 = vmatpush.bf16.msra.mxu0 %v955
        %1260 = vmatpush.bf16.msra.mxu0 %v952
        %1261 = vmatpush.bf16.msra.mxu0 %v949
        %1262 = vmatpush.bf16.msra.mxu0 %v946
        %1263 = vmatpush.bf16.msra.mxu0 %v943
        %1264 = vmatpush.bf16.msra.mxu0 %v940
        %1265 = vmatmul.bf16.gmra.mxu0 %v541
        %v1266 = vpop.f32.mrf.mxu0
        %v1267 = vadd.f32 %v1238, %v1266
        %v1268 = vpop.f32.mrf.mxu0
        %v1269 = vadd.f32 %v1240, %v1268
        %1270 = vmatmul.bf16.gmra.mxu0 %v545
        %v1271 = vpop.f32.mrf.mxu0
        %v1272 = vadd.f32 %v1243, %v1271
        %v1273 = vpop.f32.mrf.mxu0
        %v1274 = vadd.f32 %v1245, %v1273
        %1275 = vmatmul.bf16.gmra.mxu0 %v549
        %v1276 = vpop.f32.mrf.mxu0
        %v1277 = vadd.f32 %v1248, %v1276
        %v1278 = vpop.f32.mrf.mxu0
        %v1279 = vadd.f32 %v1250, %v1278
        %1280 = vmatmul.bf16.gmra.mxu0 %v553
        %v1281 = vpop.f32.mrf.mxu0
        %v1282 = vadd.f32 %v1253, %v1281
        %v1283 = vpop.f32.mrf.mxu0
        %v1284 = vadd.f32 %v1255, %v1283
        %1285 = vdwg.mxu0
        %1286 = vmatpush.bf16.msra.mxu0 %v985
        %1287 = vmatpush.bf16.msra.mxu0 %v982
        %1288 = vmatpush.bf16.msra.mxu0 %v979
        %1289 = vmatpush.bf16.msra.mxu0 %v976
        %1290 = vmatpush.bf16.msra.mxu0 %v973
        %1291 = vmatpush.bf16.msra.mxu0 %v970
        %1292 = vmatpush.bf16.msra.mxu0 %v967
        %1293 = vmatpush.bf16.msra.mxu0 %v964
        %1294 = vmatmul.bf16.gmra.mxu0 %v542
        %v1295 = vpop.f32.mrf.mxu0
        %v1296 = vadd.f32 %v1267, %v1295
        %v1297 = vpop.f32.mrf.mxu0
        %v1298 = vadd.f32 %v1269, %v1297
        %1299 = vmatmul.bf16.gmra.mxu0 %v546
        %v1300 = vpop.f32.mrf.mxu0
        %v1301 = vadd.f32 %v1272, %v1300
        %v1302 = vpop.f32.mrf.mxu0
        %v1303 = vadd.f32 %v1274, %v1302
        %1304 = vmatmul.bf16.gmra.mxu0 %v550
        %v1305 = vpop.f32.mrf.mxu0
        %v1306 = vadd.f32 %v1277, %v1305
        %v1307 = vpop.f32.mrf.mxu0
        %v1308 = vadd.f32 %v1279, %v1307
        %1309 = vmatmul.bf16.gmra.mxu0 %v554
        %v1310 = vpop.f32.mrf.mxu0
        %v1311 = vadd.f32 %v1282, %v1310
        %v1312 = vpop.f32.mrf.mxu0
        %v1313 = vadd.f32 %v1284, %v1312
        %1314 = vdwg.mxu0
        %1315 = vmatpush.bf16.msra.mxu0 %v914
        %1316 = vmatpush.bf16.msra.mxu0 %v911
        %1317 = vmatpush.bf16.msra.mxu0 %v908
        %1318 = vmatpush.bf16.msra.mxu0 %v905
        %1319 = vmatpush.bf16.msra.mxu0 %v902
        %1320 = vmatpush.bf16.msra.mxu0 %v899
        %1321 = vmatpush.bf16.msra.mxu0 %v896
        %1322 = vmatpush.bf16.msra.mxu0 %v893
        %1323 = vmatmul.bf16.gmra.mxu0 %v539
        %v1324 = vpop.f32.mrf.mxu0
        %v1325 = vadd.f32 0.0, %v1324
        %v1326 = vpop.f32.mrf.mxu0
        %v1327 = vadd.f32 0.0, %v1326
        %1328 = vmatmul.bf16.gmra.mxu0 %v543
        %v1329 = vpop.f32.mrf.mxu0
        %v1330 = vadd.f32 0.0, %v1329
        %v1331 = vpop.f32.mrf.mxu0
        %v1332 = vadd.f32 0.0, %v1331
        %1333 = vmatmul.bf16.gmra.mxu0 %v547
        %v1334 = vpop.f32.mrf.mxu0
        %v1335 = vadd.f32 0.0, %v1334
        %v1336 = vpop.f32.mrf.mxu0
        %v1337 = vadd.f32 0.0, %v1336
        %1338 = vmatmul.bf16.gmra.mxu0 %v551
        %v1339 = vpop.f32.mrf.mxu0
        %v1340 = vadd.f32 0.0, %v1339
        %v1341 = vpop.f32.mrf.mxu0
        %v1342 = vadd.f32 0.0, %v1341
        %1343 = vdwg.mxu0
        %1344 = vmatpush.bf16.msra.mxu0 %v938
        %1345 = vmatpush.bf16.msra.mxu0 %v935
        %1346 = vmatpush.bf16.msra.mxu0 %v932
        %1347 = vmatpush.bf16.msra.mxu0 %v929
        %1348 = vmatpush.bf16.msra.mxu0 %v926
        %1349 = vmatpush.bf16.msra.mxu0 %v923
        %1350 = vmatpush.bf16.msra.mxu0 %v920
        %1351 = vmatpush.bf16.msra.mxu0 %v917
        %1352 = vmatmul.bf16.gmra.mxu0 %v540
        %v1353 = vpop.f32.mrf.mxu0
        %v1354 = vadd.f32 %v1325, %v1353
        %v1355 = vpop.f32.mrf.mxu0
        %v1356 = vadd.f32 %v1327, %v1355
        %1357 = vmatmul.bf16.gmra.mxu0 %v544
        %v1358 = vpop.f32.mrf.mxu0
        %v1359 = vadd.f32 %v1330, %v1358
        %v1360 = vpop.f32.mrf.mxu0
        %v1361 = vadd.f32 %v1332, %v1360
        %1362 = vmatmul.bf16.gmra.mxu0 %v548
        %v1363 = vpop.f32.mrf.mxu0
        %v1364 = vadd.f32 %v1335, %v1363
        %v1365 = vpop.f32.mrf.mxu0
        %v1366 = vadd.f32 %v1337, %v1365
        %1367 = vmatmul.bf16.gmra.mxu0 %v552
        %v1368 = vpop.f32.mrf.mxu0
        %v1369 = vadd.f32 %v1340, %v1368
        %v1370 = vpop.f32.mrf.mxu0
        %v1371 = vadd.f32 %v1342, %v1370
        %1372 = vdwg.mxu0
        %1373 = vmatpush.bf16.msra.mxu0 %v962
        %1374 = vmatpush.bf16.msra.mxu0 %v959
        %1375 = vmatpush.bf16.msra.mxu0 %v956
        %1376 = vmatpush.bf16.msra.mxu0 %v953
        %1377 = vmatpush.bf16.msra.mxu0 %v950
        %1378 = vmatpush.bf16.msra.mxu0 %v947
        %1379 = vmatpush.bf16.msra.mxu0 %v944
        %1380 = vmatpush.bf16.msra.mxu0 %v941
        %1381 = vmatmul.bf16.gmra.mxu0 %v541
        %v1382 = vpop.f32.mrf.mxu0
        %v1383 = vadd.f32 %v1354, %v1382
        %v1384 = vpop.f32.mrf.mxu0
        %v1385 = vadd.f32 %v1356, %v1384
        %1386 = vmatmul.bf16.gmra.mxu0 %v545
        %v1387 = vpop.f32.mrf.mxu0
        %v1388 = vadd.f32 %v1359, %v1387
        %v1389 = vpop.f32.mrf.mxu0
        %v1390 = vadd.f32 %v1361, %v1389
        %1391 = vmatmul.bf16.gmra.mxu0 %v549
        %v1392 = vpop.f32.mrf.mxu0
        %v1393 = vadd.f32 %v1364, %v1392
        %v1394 = vpop.f32.mrf.mxu0
        %v1395 = vadd.f32 %v1366, %v1394
        %1396 = vmatmul.bf16.gmra.mxu0 %v553
        %v1397 = vpop.f32.mrf.mxu0
        %v1398 = vadd.f32 %v1369, %v1397
        %v1399 = vpop.f32.mrf.mxu0
        %v1400 = vadd.f32 %v1371, %v1399
        %1401 = vdwg.mxu0
        %1402 = vmatpush.bf16.msra.mxu0 %v986
        %1403 = vmatpush.bf16.msra.mxu0 %v983
        %1404 = vmatpush.bf16.msra.mxu0 %v980
        %1405 = vmatpush.bf16.msra.mxu0 %v977
        %1406 = vmatpush.bf16.msra.mxu0 %v974
        %1407 = vmatpush.bf16.msra.mxu0 %v971
        %1408 = vmatpush.bf16.msra.mxu0 %v968
        %1409 = vmatpush.bf16.msra.mxu0 %v965
        %1410 = vmatmul.bf16.gmra.mxu0 %v542
        %v1411 = vpop.f32.mrf.mxu0
        %v1412 = vadd.f32 %v1383, %v1411
        %v1413 = vpop.f32.mrf.mxu0
        %v1414 = vadd.f32 %v1385, %v1413
        %1415 = vmatmul.bf16.gmra.mxu0 %v546
        %v1416 = vpop.f32.mrf.mxu0
        %v1417 = vadd.f32 %v1388, %v1416
        %v1418 = vpop.f32.mrf.mxu0
        %v1419 = vadd.f32 %v1390, %v1418
        %1420 = vmatmul.bf16.gmra.mxu0 %v550
        %v1421 = vpop.f32.mrf.mxu0
        %v1422 = vadd.f32 %v1393, %v1421
        %v1423 = vpop.f32.mrf.mxu0
        %v1424 = vadd.f32 %v1395, %v1423
        %1425 = vmatmul.bf16.gmra.mxu0 %v554
        %v1426 = vpop.f32.mrf.mxu0
        %v1427 = vadd.f32 %v1398, %v1426
        %v1428 = vpop.f32.mrf.mxu0
        %v1429 = vadd.f32 %v1400, %v1428
        %1430 = vdwg.mxu0
        %v1431 = vadd.f32 %v323, %v1180
        %v1432 = vadd.f32 %v324, %v1296
        %v1433 = vadd.f32 %v325, %v1412
        %v1434 = vadd.f32 %v326, %v1182
        %v1435 = vadd.f32 %v327, %v1298
        %v1436 = vadd.f32 %v328, %v1414
        %v1437 = vadd.f32 %v329, %v1185
        %v1438 = vadd.f32 %v330, %v1301
        %v1439 = vadd.f32 %v331, %v1417
        %v1440 = vadd.f32 %v332, %v1187
        %v1441 = vadd.f32 %v333, %v1303
        %v1442 = vadd.f32 %v334, %v1419
        %v1443 = vadd.f32 %v335, %v1190
        %v1444 = vadd.f32 %v336, %v1306
        %v1445 = vadd.f32 %v337, %v1422
        %v1446 = vadd.f32 %v338, %v1192
        %v1447 = vadd.f32 %v339, %v1308
        %v1448 = vadd.f32 %v340, %v1424
        %v1449 = vadd.f32 %v341, %v1195
        %v1450 = vadd.f32 %v342, %v1311
        %v1451 = vadd.f32 %v343, %v1427
        %v1452 = vadd.f32 %v344, %v1197
        %v1453 = vadd.f32 %v345, %v1313
        %v1454 = vadd.f32 %v346, %v1429
        %1455 = vst [vmem:[#allocation2] sm:$0xff] %v1431
        %1456 = vst [vmem:[#allocation2 + $0x8] sm:$0xff] %v1432
        %vm1457 = vcmask 523264
        %1458 = vst.msk [vmem:[#allocation2 + $0x10] sm:$0xff] %vm1457, %v1433
        %1459 = vst [vmem:[#allocation2 + $0x18] sm:$0xff] %v1434
        %1460 = vst [vmem:[#allocation2 + $0x20] sm:$0xff] %v1435
        %1461 = vst.msk [vmem:[#allocation2 + $0x28] sm:$0xff] %vm1457, %v1436
        %1462 = vst [vmem:[#allocation2 + $0x30] sm:$0xff] %v1437
        %1463 = vst [vmem:[#allocation2 + $0x38] sm:$0xff] %v1438
        %1464 = vst.msk [vmem:[#allocation2 + $0x40] sm:$0xff] %vm1457, %v1439
        %1465 = vst [vmem:[#allocation2 + $0x48] sm:$0xff] %v1440
        %1466 = vst [vmem:[#allocation2 + $0x50] sm:$0xff] %v1441
        %1467 = vst.msk [vmem:[#allocation2 + $0x58] sm:$0xff] %vm1457, %v1442
        %1468 = vst [vmem:[#allocation2 + $0x60] sm:$0xff] %v1443
        %1469 = vst [vmem:[#allocation2 + $0x68] sm:$0xff] %v1444
        %1470 = vst.msk [vmem:[#allocation2 + $0x70] sm:$0xff] %vm1457, %v1445
        %1471 = vst [vmem:[#allocation2 + $0x78] sm:$0xff] %v1446
        %1472 = vst [vmem:[#allocation2 + $0x80] sm:$0xff] %v1447
        %1473 = vst.msk [vmem:[#allocation2 + $0x88] sm:$0xff] %vm1457, %v1448
        %1474 = vst [vmem:[#allocation2 + $0x90] sm:$0xff] %v1449
        %1475 = vst [vmem:[#allocation2 + $0x98] sm:$0xff] %v1450
        %1476 = vst.msk [vmem:[#allocation2 + $0xa0] sm:$0xff] %vm1457, %v1451
        %1477 = vst [vmem:[#allocation2 + $0xa8] sm:$0xff] %v1452
        %1478 = vst [vmem:[#allocation2 + $0xb0] sm:$0xff] %v1453
        %1479 = vst.msk [vmem:[#allocation2 + $0xb8] sm:$0xff] %vm1457, %v1454
        %p1480 = scmp.eq.s32.totalorder %s16, 3
        // Predicated region
        $region68: #{_lambda_.1} parent=58 // pred_check
          %p1481 = pneg %p1480
        $region69: #{_lambda_.1} parent=58 // pred_check_branch
          %1483 = sbr.rel (%p1481) target = $region71
        $region70: #{_lambda_.1} parent=58 // pred_region
          %v1484 = vld [vmem:[%s3 + $0x30] sm:$0xff]
          %v1485 = vld [vmem:[%s3 + $0x70] sm:$0xff]
          %v1486 = vld [vmem:[%s3 + $0xb0] sm:$0xff]
          %v1487 = vld [vmem:[%s3 + $0xf0] sm:$0xff]
          %v1488 = vld [vmem:[%s3 + $0x130] sm:$0xff]
          %v1489 = vld [vmem:[%s3 + $0x170] sm:$0xff]
          %v1490 = vld [vmem:[%s3 + $0x1b0] sm:$0xff]
          %v1491 = vld [vmem:[%s3 + $0x1f0] sm:$0xff]
          %v1492 = vld [vmem:[%s3 + $0x38] sm:$0xff]
          %v1493 = vld [vmem:[%s3 + $0x78] sm:$0xff]
          %v1494 = vld [vmem:[%s3 + $0xb8] sm:$0xff]
          %v1495 = vld [vmem:[%s3 + $0xf8] sm:$0xff]
          %v1496 = vld [vmem:[%s3 + $0x138] sm:$0xff]
          %v1497 = vld [vmem:[%s3 + $0x178] sm:$0xff]
          %v1498 = vld [vmem:[%s3 + $0x1b8] sm:$0xff]
          %v1499 = vld [vmem:[%s3 + $0x1f8] sm:$0xff]
          %v1500 = vld [vmem:[%s4 + $0x3] sm:$0x1]
          %v1501 = vld [vmem:[%s4 + $0x4] sm:$0x3]
          %v1502 = vld [vmem:[%s4 + $0x6] sm:$0x1]
          %v1503 = vld [vmem:[#allocation2 + $0x10] sm:$0xff]
          %v1504 = vld [vmem:[#allocation2 + $0x28] sm:$0xff]
          %v1505 = vld [vmem:[#allocation2 + $0x40] sm:$0xff]
          %v1506 = vld [vmem:[#allocation2 + $0x58] sm:$0xff]
          %v1507 = vld [vmem:[#allocation2 + $0x70] sm:$0xff]
          %v1508 = vld [vmem:[#allocation2 + $0x88] sm:$0xff]
          %v1509 = vld [vmem:[#allocation2 + $0xa0] sm:$0xff]
          %v1510 = vld [vmem:[#allocation2 + $0xb8] sm:$0xff]
          %v1511 = vmax.f32 %v1503, 0.0
          %v1512 = vmax.f32 %v1504, 0.0
          %v1513 = vmax.f32 %v1505, 0.0
          %v1514 = vmax.f32 %v1506, 0.0
          %v1515 = vmax.f32 %v1507, 0.0
          %v1516 = vmax.f32 %v1508, 0.0
          %v1517 = vmax.f32 %v1509, 0.0
          %v1518 = vmax.f32 %v1510, 0.0
          %v1520 = vperm.slane %v1500, 0
          %v1523 = vsel %vm1457, %v1511, 0
          %v1526 = vsel %vm1457, %v1512, 0
          %v1529 = vsel %vm1457, %v1513, 0
          %v1532 = vsel %vm1457, %v1514, 0
          %v1535 = vsel %vm1457, %v1515, 0
          %v1538 = vsel %vm1457, %v1516, 0
          %v1541 = vsel %vm1457, %v1517, 0
          %v1544 = vsel %vm1457, %v1518, 0
          %1546 = vmatpush.msra.mxu0 0.0
          %1547 = vmatpush.msra.mxu0 0.0
          %1548 = vmatpush.msra.mxu0 0.0
          %1549 = vmatpush.msra.mxu0 0.0
          %1550 = vmatpush.msra.mxu0 0.0
          %1551 = vmatpush.msra.mxu0 0.0
          %1552 = vmatpush.msra.mxu0 0.0
          %1553 = vmatpush.msra.mxu0 0.0
          %1554 = vmatpush.msra.mxu0 %v1491
          %1555 = vmatpush.msra.mxu0 %v1490
          %1556 = vmatpush.msra.mxu0 %v1489
          %1557 = vmatpush.msra.mxu0 %v1488
          %1558 = vmatpush.msra.mxu0 %v1487
          %1559 = vmatpush.msra.mxu0 %v1486
          %1560 = vmatpush.msra.mxu0 %v1485
          %1561 = vmatpush.msra.mxu0 %v1484
          %1562 = vmatmul.f32.gmra.mxu0 %v1523
          %v1563 = vpop.f32.mrf.mxu0
          %v1564 = vadd.f32 %v1520, %v1563
          %1565 = vmatmul.f32.gmra.mxu0 %v1526
          %v1566 = vpop.f32.mrf.mxu0
          %v1567 = vadd.f32 %v1520, %v1566
          %1568 = vmatmul.f32.gmra.mxu0 %v1529
          %v1569 = vpop.f32.mrf.mxu0
          %v1570 = vadd.f32 %v1520, %v1569
          %1571 = vmatmul.f32.gmra.mxu0 %v1532
          %v1572 = vpop.f32.mrf.mxu0
          %v1573 = vadd.f32 %v1520, %v1572
          %1574 = vmatmul.f32.gmra.mxu0 %v1535
          %v1575 = vpop.f32.mrf.mxu0
          %v1576 = vadd.f32 %v1520, %v1575
          %1577 = vmatmul.f32.gmra.mxu0 %v1538
          %v1578 = vpop.f32.mrf.mxu0
          %v1579 = vadd.f32 %v1520, %v1578
          %1580 = vmatmul.f32.gmra.mxu0 %v1541
          %v1581 = vpop.f32.mrf.mxu0
          %v1582 = vadd.f32 %v1520, %v1581
          %1583 = vmatmul.f32.gmra.mxu0 %v1544
          %v1584 = vpop.f32.mrf.mxu0
          %v1585 = vadd.f32 %v1520, %v1584
          %1586 = vdwg.mxu0
          %v1587 = vsel %vm1457, %v1564, -inf
          %1588 = vmax.xlane.f32.xlu0 %v1587
          %v1589 = vpop.xlane.xlu0 %1588
          %v1590 = vsel %vm1457, %v1567, -inf
          %1591 = vmax.xlane.f32.xlu0 %v1590
          %v1592 = vpop.xlane.xlu0 %1591
          %v1593 = vsel %vm1457, %v1570, -inf
          %1594 = vmax.xlane.f32.xlu0 %v1593
          %v1595 = vpop.xlane.xlu0 %1594
          %v1596 = vsel %vm1457, %v1573, -inf
          %1597 = vmax.xlane.f32.xlu0 %v1596
          %v1598 = vpop.xlane.xlu0 %1597
          %v1599 = vsel %vm1457, %v1576, -inf
          %1600 = vmax.xlane.f32.xlu0 %v1599
          %v1601 = vpop.xlane.xlu0 %1600
          %v1602 = vsel %vm1457, %v1579, -inf
          %1603 = vmax.xlane.f32.xlu0 %v1602
          %v1604 = vpop.xlane.xlu0 %1603
          %v1605 = vsel %vm1457, %v1582, -inf
          %1606 = vmax.xlane.f32.xlu0 %v1605
          %v1607 = vpop.xlane.xlu0 %1606
          %v1608 = vsel %vm1457, %v1585, -inf
          %1609 = vmax.xlane.f32.xlu0 %v1608
          %v1610 = vpop.xlane.xlu0 %1609
          %v1611 = vsub.f32 %v1564, %v1589
          %v1612 = vsub.f32 %v1567, %v1592
          %v1613 = vsub.f32 %v1570, %v1595
          %v1614 = vsub.f32 %v1573, %v1598
          %v1615 = vsub.f32 %v1576, %v1601
          %v1616 = vsub.f32 %v1579, %v1604
          %v1617 = vsub.f32 %v1582, %v1607
          %v1618 = vsub.f32 %v1585, %v1610
          %v1619 = vmul.f32 %v1611, 1.442695
          %v1620 = vpow.pop %v1619
          %v1621 = vmul.f32 %v1612, 1.442695
          %v1622 = vpow.pop %v1621
          %v1623 = vmul.f32 %v1613, 1.442695
          %v1624 = vpow.pop %v1623
          %v1625 = vmul.f32 %v1614, 1.442695
          %v1626 = vpow.pop %v1625
          %v1627 = vmul.f32 %v1615, 1.442695
          %v1628 = vpow.pop %v1627
          %v1629 = vmul.f32 %v1616, 1.442695
          %v1630 = vpow.pop %v1629
          %v1631 = vmul.f32 %v1617, 1.442695
          %v1632 = vpow.pop %v1631
          %v1633 = vmul.f32 %v1618, 1.442695
          %v1634 = vpow.pop %v1633
          %v1635 = vsel %vm1457, %v1620, 0.0
          %1636 = vadd.xlane.f32.xlu0 %v1635
          %v1637 = vpop.xlane.xlu0 %1636
          %v1638 = vsel %vm1457, %v1622, 0.0
          %1639 = vadd.xlane.f32.xlu0 %v1638
          %v1640 = vpop.xlane.xlu0 %1639
          %v1641 = vsel %vm1457, %v1624, 0.0
          %1642 = vadd.xlane.f32.xlu0 %v1641
          %v1643 = vpop.xlane.xlu0 %1642
          %v1644 = vsel %vm1457, %v1626, 0.0
          %1645 = vadd.xlane.f32.xlu0 %v1644
          %v1646 = vpop.xlane.xlu0 %1645
          %v1647 = vsel %vm1457, %v1628, 0.0
          %1648 = vadd.xlane.f32.xlu0 %v1647
          %v1649 = vpop.xlane.xlu0 %1648
          %v1650 = vsel %vm1457, %v1630, 0.0
          %1651 = vadd.xlane.f32.xlu0 %v1650
          %v1652 = vpop.xlane.xlu0 %1651
          %v1653 = vsel %vm1457, %v1632, 0.0
          %1654 = vadd.xlane.f32.xlu0 %v1653
          %v1655 = vpop.xlane.xlu0 %1654
          %v1656 = vsel %vm1457, %v1634, 0.0
          %1657 = vadd.xlane.f32.xlu0 %v1656
          %v1658 = vpop.xlane.xlu0 %1657
          %v1659 = vrcp.pop %v1637
          %v1660 = vrcp.pop %v1640
          %v1661 = vrcp.pop %v1643
          %v1662 = vrcp.pop %v1646
          %v1663 = vrcp.pop %v1649
          %v1664 = vrcp.pop %v1652
          %v1665 = vrcp.pop %v1655
          %v1666 = vrcp.pop %v1658
          %v1667 = vmul.f32 %v1620, %v1659
          %v1668 = vmul.f32 %v1622, %v1660
          %v1669 = vmul.f32 %v1624, %v1661
          %v1670 = vmul.f32 %v1626, %v1662
          %v1671 = vmul.f32 %v1628, %v1663
          %v1672 = vmul.f32 %v1630, %v1664
          %v1673 = vmul.f32 %v1632, %v1665
          %v1674 = vmul.f32 %v1634, %v1666
          %v1675 = vmul.f32 %v1667, %v1503
          %v1676 = vmul.f32 %v1668, %v1504
          %v1677 = vmul.f32 %v1669, %v1505
          %v1678 = vmul.f32 %v1670, %v1506
          %v1679 = vmul.f32 %v1671, %v1507
          %v1680 = vmul.f32 %v1672, %v1508
          %v1681 = vmul.f32 %v1673, %v1509
          %v1682 = vmul.f32 %v1674, %v1510
          %v1683 = vld [vmem:[%s3 + $0x10] sm:$0xff]
          %v1684 = vld [vmem:[%s3 + $0x18] sm:$0xff]
          %v1685 = vld [vmem:[%s3 + $0x50] sm:$0xff]
          %v1686 = vld [vmem:[%s3 + $0x58] sm:$0xff]
          %v1687 = vld [vmem:[%s3 + $0x90] sm:$0xff]
          %v1688 = vld [vmem:[%s3 + $0x98] sm:$0xff]
          %v1689 = vld [vmem:[%s3 + $0xd0] sm:$0xff]
          %v1690 = vld [vmem:[%s3 + $0xd8] sm:$0xff]
          %v1691 = vld [vmem:[%s3 + $0x110] sm:$0xff]
          %v1692 = vld [vmem:[%s3 + $0x118] sm:$0xff]
          %v1693 = vld [vmem:[%s3 + $0x150] sm:$0xff]
          %v1694 = vld [vmem:[%s3 + $0x158] sm:$0xff]
          %v1695 = vld [vmem:[%s3 + $0x190] sm:$0xff]
          %v1696 = vld [vmem:[%s3 + $0x198] sm:$0xff]
          %v1697 = vld [vmem:[%s3 + $0x1d0] sm:$0xff]
          %v1698 = vld [vmem:[%s3 + $0x1d8] sm:$0xff]
          %v1700 = vperm.slane %v1501, 0
          %v1701 = vperm.slane %v1501, 1
          %v1705 = vsel %vm1457, %v1675, 0
          %v1708 = vsel %vm1457, %v1676, 0
          %v1711 = vsel %vm1457, %v1677, 0
          %v1714 = vsel %vm1457, %v1678, 0
          %v1717 = vsel %vm1457, %v1679, 0
          %v1720 = vsel %vm1457, %v1680, 0
          %v1723 = vsel %vm1457, %v1681, 0
          %v1726 = vsel %vm1457, %v1682, 0
          %1728 = vmatpush.msra.mxu0 0.0
          %1729 = vmatpush.msra.mxu0 0.0
          %1730 = vmatpush.msra.mxu0 0.0
          %1731 = vmatpush.msra.mxu0 0.0
          %1732 = vmatpush.msra.mxu0 0.0
          %1733 = vmatpush.msra.mxu0 0.0
          %1734 = vmatpush.msra.mxu0 0.0
          %1735 = vmatpush.msra.mxu0 0.0
          %1736 = vmatpush.msra.mxu0 %v1697
          %1737 = vmatpush.msra.mxu0 %v1695
          %1738 = vmatpush.msra.mxu0 %v1693
          %1739 = vmatpush.msra.mxu0 %v1691
          %1740 = vmatpush.msra.mxu0 %v1689
          %1741 = vmatpush.msra.mxu0 %v1687
          %1742 = vmatpush.msra.mxu0 %v1685
          %1743 = vmatpush.msra.mxu0 %v1683
          %1744 = vmatmul.f32.gmra.mxu0 %v1705
          %v1745 = vpop.f32.mrf.mxu0
          %v1746 = vadd.f32 %v1700, %v1745
          %1747 = vmatmul.f32.gmra.mxu0 %v1708
          %v1748 = vpop.f32.mrf.mxu0
          %v1749 = vadd.f32 %v1700, %v1748
          %1750 = vmatmul.f32.gmra.mxu0 %v1711
          %v1751 = vpop.f32.mrf.mxu0
          %v1752 = vadd.f32 %v1700, %v1751
          %1753 = vmatmul.f32.gmra.mxu0 %v1714
          %v1754 = vpop.f32.mrf.mxu0
          %v1755 = vadd.f32 %v1700, %v1754
          %1756 = vmatmul.f32.gmra.mxu0 %v1717
          %v1757 = vpop.f32.mrf.mxu0
          %v1758 = vadd.f32 %v1700, %v1757
          %1759 = vmatmul.f32.gmra.mxu0 %v1720
          %v1760 = vpop.f32.mrf.mxu0
          %v1761 = vadd.f32 %v1700, %v1760
          %1762 = vmatmul.f32.gmra.mxu0 %v1723
          %v1763 = vpop.f32.mrf.mxu0
          %v1764 = vadd.f32 %v1700, %v1763
          %1765 = vmatmul.f32.gmra.mxu0 %v1726
          %v1766 = vpop.f32.mrf.mxu0
          %v1767 = vadd.f32 %v1700, %v1766
          %1768 = vdwg.mxu0
          %1769 = vmatpush.msra.mxu0 0.0
          %1770 = vmatpush.msra.mxu0 0.0
          %1771 = vmatpush.msra.mxu0 0.0
          %1772 = vmatpush.msra.mxu0 0.0
          %1773 = vmatpush.msra.mxu0 0.0
          %1774 = vmatpush.msra.mxu0 0.0
          %1775 = vmatpush.msra.mxu0 0.0
          %1776 = vmatpush.msra.mxu0 0.0
          %1777 = vmatpush.msra.mxu0 %v1698
          %1778 = vmatpush.msra.mxu0 %v1696
          %1779 = vmatpush.msra.mxu0 %v1694
          %1780 = vmatpush.msra.mxu0 %v1692
          %1781 = vmatpush.msra.mxu0 %v1690
          %1782 = vmatpush.msra.mxu0 %v1688
          %1783 = vmatpush.msra.mxu0 %v1686
          %1784 = vmatpush.msra.mxu0 %v1684
          %1785 = vmatmul.f32.gmra.mxu0 %v1705
          %v1786 = vpop.f32.mrf.mxu0
          %v1787 = vadd.f32 %v1701, %v1786
          %1788 = vmatmul.f32.gmra.mxu0 %v1708
          %v1789 = vpop.f32.mrf.mxu0
          %v1790 = vadd.f32 %v1701, %v1789
          %1791 = vmatmul.f32.gmra.mxu0 %v1711
          %v1792 = vpop.f32.mrf.mxu0
          %v1793 = vadd.f32 %v1701, %v1792
          %1794 = vmatmul.f32.gmra.mxu0 %v1714
          %v1795 = vpop.f32.mrf.mxu0
          %v1796 = vadd.f32 %v1701, %v1795
          %1797 = vmatmul.f32.gmra.mxu0 %v1717
          %v1798 = vpop.f32.mrf.mxu0
          %v1799 = vadd.f32 %v1701, %v1798
          %1800 = vmatmul.f32.gmra.mxu0 %v1720
          %v1801 = vpop.f32.mrf.mxu0
          %v1802 = vadd.f32 %v1701, %v1801
          %1803 = vmatmul.f32.gmra.mxu0 %v1723
          %v1804 = vpop.f32.mrf.mxu0
          %v1805 = vadd.f32 %v1701, %v1804
          %1806 = vmatmul.f32.gmra.mxu0 %v1726
          %v1807 = vpop.f32.mrf.mxu0
          %v1808 = vadd.f32 %v1701, %v1807
          %1809 = vdwg.mxu0
          %1810 = vst [vmem:[#allocation3] sm:$0xff] %v1746
          %1811 = vst [vmem:[#allocation3 + $0x8] sm:$0xff] %v1787
          %1812 = vst [vmem:[#allocation3 + $0x10] sm:$0xff] %v1749
          %1813 = vst [vmem:[#allocation3 + $0x18] sm:$0xff] %v1790
          %1814 = vst [vmem:[#allocation3 + $0x20] sm:$0xff] %v1752
          %1815 = vst [vmem:[#allocation3 + $0x28] sm:$0xff] %v1793
          %1816 = vst [vmem:[#allocation3 + $0x30] sm:$0xff] %v1755
          %1817 = vst [vmem:[#allocation3 + $0x38] sm:$0xff] %v1796
          %1818 = vst [vmem:[#allocation3 + $0x40] sm:$0xff] %v1758
          %1819 = vst [vmem:[#allocation3 + $0x48] sm:$0xff] %v1799
          %1820 = vst [vmem:[#allocation3 + $0x50] sm:$0xff] %v1761
          %1821 = vst [vmem:[#allocation3 + $0x58] sm:$0xff] %v1802
          %1822 = vst [vmem:[#allocation3 + $0x60] sm:$0xff] %v1764
          %1823 = vst [vmem:[#allocation3 + $0x68] sm:$0xff] %v1805
          %1824 = vst [vmem:[#allocation3 + $0x70] sm:$0xff] %v1767
          %1825 = vst [vmem:[#allocation3 + $0x78] sm:$0xff] %v1808
          %v1826 = vld [vmem:[%s0] sm:$0xff]
          %v1827 = vld [vmem:[%s3] sm:$0xff]
          %v1828 = vld [vmem:[%s3 + $0x8] sm:$0xff]
          %v1829 = vld [vmem:[%s3 + $0x40] sm:$0xff]
          %v1830 = vld [vmem:[%s3 + $0x48] sm:$0xff]
          %v1831 = vld [vmem:[%s3 + $0x80] sm:$0xff]
          %v1832 = vld [vmem:[%s3 + $0x88] sm:$0xff]
          %v1833 = vld [vmem:[%s3 + $0xc0] sm:$0xff]
          %v1834 = vld [vmem:[%s3 + $0xc8] sm:$0xff]
          %v1835 = vld [vmem:[%s3 + $0x100] sm:$0xff]
          %v1836 = vld [vmem:[%s3 + $0x108] sm:$0xff]
          %v1837 = vld [vmem:[%s3 + $0x140] sm:$0xff]
          %v1838 = vld [vmem:[%s3 + $0x148] sm:$0xff]
          %v1839 = vld [vmem:[%s3 + $0x180] sm:$0xff]
          %v1840 = vld [vmem:[%s3 + $0x188] sm:$0xff]
          %v1841 = vld [vmem:[%s3 + $0x1c0] sm:$0xff]
          %v1842 = vld [vmem:[%s3 + $0x1c8] sm:$0xff]
          %v1843 = vld [vmem:[#allocation2] sm:$0xff]
          %v1844 = vld [vmem:[#allocation2 + $0x8] sm:$0xff]
          %v1846 = vsel %vm1457, 0.0, 0
          %1848 = vmatpush.msra.mxu0 0.0
          %1849 = vmatpush.msra.mxu0 0.0
          %1850 = vmatpush.msra.mxu0 0.0
          %1851 = vmatpush.msra.mxu0 0.0
          %1852 = vmatpush.msra.mxu0 0.0
          %1853 = vmatpush.msra.mxu0 0.0
          %1854 = vmatpush.msra.mxu0 0.0
          %1855 = vmatpush.msra.mxu0 0.0
          %1856 = vmatpush.msra.mxu0 %v1841
          %1857 = vmatpush.msra.mxu0 %v1839
          %1858 = vmatpush.msra.mxu0 %v1837
          %1859 = vmatpush.msra.mxu0 %v1835
          %1860 = vmatpush.msra.mxu0 %v1833
          %1861 = vmatpush.msra.mxu0 %v1831
          %1862 = vmatpush.msra.mxu0 %v1829
          %1863 = vmatpush.msra.mxu0 %v1827
          %1864 = vmatmul.f32.gmra.mxu0 %v1846
          %v1865 = vpop.f32.mrf.mxu0
          %v1866 = vadd.f32 0.0, %v1865
          %1867 = vdwg.mxu0
          %1868 = vmatpush.msra.mxu0 0.0
          %1869 = vmatpush.msra.mxu0 0.0
          %1870 = vmatpush.msra.mxu0 0.0
          %1871 = vmatpush.msra.mxu0 0.0
          %1872 = vmatpush.msra.mxu0 0.0
          %1873 = vmatpush.msra.mxu0 0.0
          %1874 = vmatpush.msra.mxu0 0.0
          %1875 = vmatpush.msra.mxu0 0.0
          %1876 = vmatpush.msra.mxu0 %v1842
          %1877 = vmatpush.msra.mxu0 %v1840
          %1878 = vmatpush.msra.mxu0 %v1838
          %1879 = vmatpush.msra.mxu0 %v1836
          %1880 = vmatpush.msra.mxu0 %v1834
          %1881 = vmatpush.msra.mxu0 %v1832
          %1882 = vmatpush.msra.mxu0 %v1830
          %1883 = vmatpush.msra.mxu0 %v1828
          %1884 = vmatmul.f32.gmra.mxu0 %v1846
          %v1885 = vpop.f32.mrf.mxu0
          %v1886 = vadd.f32 0.0, %v1885
          %1887 = vdwg.mxu0
          %v1888 = vadd.f32 %v1843, %v1866
          %v1889 = vadd.f32 %v1844, %v1886
          %vm1890 = vcmp.gt.s32.totalorder %v1826, 0
          %v1891 = vxor.u32 %v1888, 2147483648
          %v1892 = vxor.u32 %v1889, 2147483648
          %v1893 = vmul.f32 %v1891, 1.442695
          %v1894 = vpow.pop %v1893
          %v1895 = vmul.f32 %v1892, 1.442695
          %v1896 = vpow.pop %v1895
          %v1897 = vadd.f32 %v1894, 1.0
          %v1898 = vadd.f32 %v1896, 1.0
          %v1899 = vrcp.pop %v1897
          %v1900 = vmul.f32 %v1897, %v1899
          %v1901 = vsub.f32 1.0, %v1900
          %v1902 = vmul.f32 %v1899, %v1901
          %v1903 = vadd.f32 %v1899, %v1902
          %vm1904 = vweird.f32 %v1897
          %vm1905 = vweird.f32 %v1899
          %vm1906 = vmor %vm1904, %vm1905
          %v1907 = vsel %vm1906, %v1899, %v1903
          %v1908 = vand.u32 2147483647, %v1897
          %vm1909 = vcmp.eq.f32.partialorder %v1908, 8.507059e+37
          %v1910 = vand.u32 %v1897, 2147483648
          %v1911 = vor.u32 1.1754944e-38, %v1910
          %v1912 = vsel %vm1909, %v1911, %v1907
          %v1913 = vmul.f32 1.0, %v1912
          %v1914 = vrcp.pop %v1898
          %v1915 = vmul.f32 %v1898, %v1914
          %v1916 = vsub.f32 1.0, %v1915
          %v1917 = vmul.f32 %v1914, %v1916
          %v1918 = vadd.f32 %v1914, %v1917
          %vm1919 = vweird.f32 %v1898
          %vm1920 = vweird.f32 %v1914
          %vm1921 = vmor %vm1919, %vm1920
          %v1922 = vsel %vm1921, %v1914, %v1918
          %v1923 = vand.u32 2147483647, %v1898
          %vm1924 = vcmp.eq.f32.partialorder %v1923, 8.507059e+37
          %v1925 = vand.u32 %v1898, 2147483648
          %v1926 = vor.u32 1.1754944e-38, %v1925
          %v1927 = vsel %vm1924, %v1926, %v1922
          %v1928 = vmul.f32 1.0, %v1927
          %v1929 = vtanh.pop %v1889
          %v1930 = vmul.f32 %v1913, 0.0
          %1932 = vrot.lane.b32.xlu0 %v1929, 64
          %v1933 = vpop.permute.xlu0 %1932
          %v1935 = vmul.f32 %v1913, %v1933
          %1937 = vrot.lane.b32.xlu0 %v1935, 64
          %v1938 = vpop.permute.xlu0 %1937
          %v1940 = vadd.f32 %v1930, %v1938
          %v1941 = vtanh.pop %v1940
          %1943 = vrot.lane.b32.xlu0 %v1941, 64
          %v1944 = vpop.permute.xlu0 %1943
          %v1946 = vmul.f32 %v1928, %v1944
          %v1947 = vsel %vm1890, 1, 0
          %1948 = vset.pattern.permute.xlu0 0
          %1949 = vperm.xlu0 %1948, %v1947
          %v1950 = vpop.permute.xlu0 %1949
          %vm1951 = vcmp.eq.s32.totalorder %v1950, 1
          %v1952 = vsel %vm1951, %v1946, 0.0
          %v1953 = vsel %vm1951, %v1940, 0.0
          %v1954 = vld [vmem:[#allocation2 + $0x18] sm:$0xff]
          %v1955 = vld [vmem:[#allocation2 + $0x20] sm:$0xff]
          %v1957 = vsel %vm1457, %v1952, 0
          %1959 = vmatpush.msra.mxu0 0.0
          %1960 = vmatpush.msra.mxu0 0.0
          %1961 = vmatpush.msra.mxu0 0.0
          %1962 = vmatpush.msra.mxu0 0.0
          %1963 = vmatpush.msra.mxu0 0.0
          %1964 = vmatpush.msra.mxu0 0.0
          %1965 = vmatpush.msra.mxu0 0.0
          %1966 = vmatpush.msra.mxu0 0.0
          %1967 = vmatpush.msra.mxu0 %v1841
          %1968 = vmatpush.msra.mxu0 %v1839
          %1969 = vmatpush.msra.mxu0 %v1837
          %1970 = vmatpush.msra.mxu0 %v1835
          %1971 = vmatpush.msra.mxu0 %v1833
          %1972 = vmatpush.msra.mxu0 %v1831
          %1973 = vmatpush.msra.mxu0 %v1829
          %1974 = vmatpush.msra.mxu0 %v1827
          %1975 = vmatmul.f32.gmra.mxu0 %v1957
          %v1976 = vpop.f32.mrf.mxu0
          %v1977 = vadd.f32 0.0, %v1976
          %1978 = vdwg.mxu0
          %1979 = vmatpush.msra.mxu0 0.0
          %1980 = vmatpush.msra.mxu0 0.0
          %1981 = vmatpush.msra.mxu0 0.0
          %1982 = vmatpush.msra.mxu0 0.0
          %1983 = vmatpush.msra.mxu0 0.0
          %1984 = vmatpush.msra.mxu0 0.0
          %1985 = vmatpush.msra.mxu0 0.0
          %1986 = vmatpush.msra.mxu0 0.0
          %1987 = vmatpush.msra.mxu0 %v1842
          %1988 = vmatpush.msra.mxu0 %v1840
          %1989 = vmatpush.msra.mxu0 %v1838
          %1990 = vmatpush.msra.mxu0 %v1836
          %1991 = vmatpush.msra.mxu0 %v1834
          %1992 = vmatpush.msra.mxu0 %v1832
          %1993 = vmatpush.msra.mxu0 %v1830
          %1994 = vmatpush.msra.mxu0 %v1828
          %1995 = vmatmul.f32.gmra.mxu0 %v1957
          %v1996 = vpop.f32.mrf.mxu0
          %v1997 = vadd.f32 0.0, %v1996
          %1998 = vdwg.mxu0
          %v1999 = vadd.f32 %v1954, %v1977
          %v2000 = vadd.f32 %v1955, %v1997
          %vm2001 = vcmp.gt.s32.totalorder %v1826, 1
          %v2002 = vxor.u32 %v1999, 2147483648
          %v2003 = vxor.u32 %v2000, 2147483648
          %v2004 = vmul.f32 %v2002, 1.442695
          %v2005 = vpow.pop %v2004
          %v2006 = vmul.f32 %v2003, 1.442695
          %v2007 = vpow.pop %v2006
          %v2008 = vadd.f32 %v2005, 1.0
          %v2009 = vadd.f32 %v2007, 1.0
          %v2010 = vrcp.pop %v2008
          %v2011 = vmul.f32 %v2008, %v2010
          %v2012 = vsub.f32 1.0, %v2011
          %v2013 = vmul.f32 %v2010, %v2012
          %v2014 = vadd.f32 %v2010, %v2013
          %vm2015 = vweird.f32 %v2008
          %vm2016 = vweird.f32 %v2010
          %vm2017 = vmor %vm2015, %vm2016
          %v2018 = vsel %vm2017, %v2010, %v2014
          %v2019 = vand.u32 2147483647, %v2008
          %vm2020 = vcmp.eq.f32.partialorder %v2019, 8.507059e+37
          %v2021 = vand.u32 %v2008, 2147483648
          %v2022 = vor.u32 1.1754944e-38, %v2021
          %v2023 = vsel %vm2020, %v2022, %v2018
          %v2024 = vmul.f32 1.0, %v2023
          %v2025 = vrcp.pop %v2009
          %v2026 = vmul.f32 %v2009, %v2025
          %v2027 = vsub.f32 1.0, %v2026
          %v2028 = vmul.f32 %v2025, %v2027
          %v2029 = vadd.f32 %v2025, %v2028
          %vm2030 = vweird.f32 %v2009
          %vm2031 = vweird.f32 %v2025
          %vm2032 = vmor %vm2030, %vm2031
          %v2033 = vsel %vm2032, %v2025, %v2029
          %v2034 = vand.u32 2147483647, %v2009
          %vm2035 = vcmp.eq.f32.partialorder %v2034, 8.507059e+37
          %v2036 = vand.u32 %v2009, 2147483648
          %v2037 = vor.u32 1.1754944e-38, %v2036
          %v2038 = vsel %vm2035, %v2037, %v2033
          %v2039 = vmul.f32 1.0, %v2038
          %v2040 = vtanh.pop %v2000
          %v2041 = vmul.f32 %v2024, %v1953
          %2043 = vrot.lane.b32.xlu0 %v2040, 64
          %v2044 = vpop.permute.xlu0 %2043
          %v2046 = vmul.f32 %v2024, %v2044
          %2048 = vrot.lane.b32.xlu0 %v2046, 64
          %v2049 = vpop.permute.xlu0 %2048
          %v2051 = vadd.f32 %v2041, %v2049
          %v2052 = vtanh.pop %v2051
          %2054 = vrot.lane.b32.xlu0 %v2052, 64
          %v2055 = vpop.permute.xlu0 %2054
          %v2057 = vmul.f32 %v2039, %v2055
          %v2058 = vsel %vm2001, 1, 0
          %2059 = vset.pattern.permute.xlu0 0
          %2060 = vperm.xlu0 %2059, %v2058
          %v2061 = vpop.permute.xlu0 %2060
          %vm2062 = vcmp.eq.s32.totalorder %v2061, 1
          %v2063 = vsel %vm2062, %v2057, %v1952
          %v2064 = vsel %vm2062, %v2051, %v1953
          %v2065 = vld [vmem:[#allocation2 + $0x30] sm:$0xff]
          %v2066 = vld [vmem:[#allocation2 + $0x38] sm:$0xff]
          %v2068 = vsel %vm1457, %v2063, 0
          %2070 = vmatpush.msra.mxu0 0.0
          %2071 = vmatpush.msra.mxu0 0.0
          %2072 = vmatpush.msra.mxu0 0.0
          %2073 = vmatpush.msra.mxu0 0.0
          %2074 = vmatpush.msra.mxu0 0.0
          %2075 = vmatpush.msra.mxu0 0.0
          %2076 = vmatpush.msra.mxu0 0.0
          %2077 = vmatpush.msra.mxu0 0.0
          %2078 = vmatpush.msra.mxu0 %v1841
          %2079 = vmatpush.msra.mxu0 %v1839
          %2080 = vmatpush.msra.mxu0 %v1837
          %2081 = vmatpush.msra.mxu0 %v1835
          %2082 = vmatpush.msra.mxu0 %v1833
          %2083 = vmatpush.msra.mxu0 %v1831
          %2084 = vmatpush.msra.mxu0 %v1829
          %2085 = vmatpush.msra.mxu0 %v1827
          %2086 = vmatmul.f32.gmra.mxu0 %v2068
          %v2087 = vpop.f32.mrf.mxu0
          %v2088 = vadd.f32 0.0, %v2087
          %2089 = vdwg.mxu0
          %2090 = vmatpush.msra.mxu0 0.0
          %2091 = vmatpush.msra.mxu0 0.0
          %2092 = vmatpush.msra.mxu0 0.0
          %2093 = vmatpush.msra.mxu0 0.0
          %2094 = vmatpush.msra.mxu0 0.0
          %2095 = vmatpush.msra.mxu0 0.0
          %2096 = vmatpush.msra.mxu0 0.0
          %2097 = vmatpush.msra.mxu0 0.0
          %2098 = vmatpush.msra.mxu0 %v1842
          %2099 = vmatpush.msra.mxu0 %v1840
          %2100 = vmatpush.msra.mxu0 %v1838
          %2101 = vmatpush.msra.mxu0 %v1836
          %2102 = vmatpush.msra.mxu0 %v1834
          %2103 = vmatpush.msra.mxu0 %v1832
          %2104 = vmatpush.msra.mxu0 %v1830
          %2105 = vmatpush.msra.mxu0 %v1828
          %2106 = vmatmul.f32.gmra.mxu0 %v2068
          %v2107 = vpop.f32.mrf.mxu0
          %v2108 = vadd.f32 0.0, %v2107
          %2109 = vdwg.mxu0
          %v2110 = vadd.f32 %v2065, %v2088
          %v2111 = vadd.f32 %v2066, %v2108
          %vm2112 = vcmp.gt.s32.totalorder %v1826, 2
          %v2113 = vxor.u32 %v2110, 2147483648
          %v2114 = vxor.u32 %v2111, 2147483648
          %v2115 = vmul.f32 %v2113, 1.442695
          %v2116 = vpow.pop %v2115
          %v2117 = vmul.f32 %v2114, 1.442695
          %v2118 = vpow.pop %v2117
          %v2119 = vadd.f32 %v2116, 1.0
          %v2120 = vadd.f32 %v2118, 1.0
          %v2121 = vrcp.pop %v2119
          %v2122 = vmul.f32 %v2119, %v2121
          %v2123 = vsub.f32 1.0, %v2122
          %v2124 = vmul.f32 %v2121, %v2123
          %v2125 = vadd.f32 %v2121, %v2124
          %vm2126 = vweird.f32 %v2119
          %vm2127 = vweird.f32 %v2121
          %vm2128 = vmor %vm2126, %vm2127
          %v2129 = vsel %vm2128, %v2121, %v2125
          %v2130 = vand.u32 2147483647, %v2119
          %vm2131 = vcmp.eq.f32.partialorder %v2130, 8.507059e+37
          %v2132 = vand.u32 %v2119, 2147483648
          %v2133 = vor.u32 1.1754944e-38, %v2132
          %v2134 = vsel %vm2131, %v2133, %v2129
          %v2135 = vmul.f32 1.0, %v2134
          %v2136 = vrcp.pop %v2120
          %v2137 = vmul.f32 %v2120, %v2136
          %v2138 = vsub.f32 1.0, %v2137
          %v2139 = vmul.f32 %v2136, %v2138
          %v2140 = vadd.f32 %v2136, %v2139
          %vm2141 = vweird.f32 %v2120
          %vm2142 = vweird.f32 %v2136
          %vm2143 = vmor %vm2141, %vm2142
          %v2144 = vsel %vm2143, %v2136, %v2140
          %v2145 = vand.u32 2147483647, %v2120
          %vm2146 = vcmp.eq.f32.partialorder %v2145, 8.507059e+37
          %v2147 = vand.u32 %v2120, 2147483648
          %v2148 = vor.u32 1.1754944e-38, %v2147
          %v2149 = vsel %vm2146, %v2148, %v2144
          %v2150 = vmul.f32 1.0, %v2149
          %v2151 = vtanh.pop %v2111
          %v2152 = vmul.f32 %v2135, %v2064
          %2154 = vrot.lane.b32.xlu0 %v2151, 64
          %v2155 = vpop.permute.xlu0 %2154
          %v2157 = vmul.f32 %v2135, %v2155
          %2159 = vrot.lane.b32.xlu0 %v2157, 64
          %v2160 = vpop.permute.xlu0 %2159
          %v2162 = vadd.f32 %v2152, %v2160
          %v2163 = vtanh.pop %v2162
          %2165 = vrot.lane.b32.xlu0 %v2163, 64
          %v2166 = vpop.permute.xlu0 %2165
          %v2168 = vmul.f32 %v2150, %v2166
          %v2169 = vsel %vm2112, 1, 0
          %2170 = vset.pattern.permute.xlu0 0
          %2171 = vperm.xlu0 %2170, %v2169
          %v2172 = vpop.permute.xlu0 %2171
          %vm2173 = vcmp.eq.s32.totalorder %v2172, 1
          %v2174 = vsel %vm2173, %v2168, %v2063
          %v2175 = vsel %vm2173, %v2162, %v2064
          %v2176 = vld [vmem:[#allocation2 + $0x48] sm:$0xff]
          %v2177 = vld [vmem:[#allocation2 + $0x50] sm:$0xff]
          %v2179 = vsel %vm1457, %v2174, 0
          %2181 = vmatpush.msra.mxu0 0.0
          %2182 = vmatpush.msra.mxu0 0.0
          %2183 = vmatpush.msra.mxu0 0.0
          %2184 = vmatpush.msra.mxu0 0.0
          %2185 = vmatpush.msra.mxu0 0.0
          %2186 = vmatpush.msra.mxu0 0.0
          %2187 = vmatpush.msra.mxu0 0.0
          %2188 = vmatpush.msra.mxu0 0.0
          %2189 = vmatpush.msra.mxu0 %v1841
          %2190 = vmatpush.msra.mxu0 %v1839
          %2191 = vmatpush.msra.mxu0 %v1837
          %2192 = vmatpush.msra.mxu0 %v1835
          %2193 = vmatpush.msra.mxu0 %v1833
          %2194 = vmatpush.msra.mxu0 %v1831
          %2195 = vmatpush.msra.mxu0 %v1829
          %2196 = vmatpush.msra.mxu0 %v1827
          %2197 = vmatmul.f32.gmra.mxu0 %v2179
          %v2198 = vpop.f32.mrf.mxu0
          %v2199 = vadd.f32 0.0, %v2198
          %2200 = vdwg.mxu0
          %2201 = vmatpush.msra.mxu0 0.0
          %2202 = vmatpush.msra.mxu0 0.0
          %2203 = vmatpush.msra.mxu0 0.0
          %2204 = vmatpush.msra.mxu0 0.0
          %2205 = vmatpush.msra.mxu0 0.0
          %2206 = vmatpush.msra.mxu0 0.0
          %2207 = vmatpush.msra.mxu0 0.0
          %2208 = vmatpush.msra.mxu0 0.0
          %2209 = vmatpush.msra.mxu0 %v1842
          %2210 = vmatpush.msra.mxu0 %v1840
          %2211 = vmatpush.msra.mxu0 %v1838
          %2212 = vmatpush.msra.mxu0 %v1836
          %2213 = vmatpush.msra.mxu0 %v1834
          %2214 = vmatpush.msra.mxu0 %v1832
          %2215 = vmatpush.msra.mxu0 %v1830
          %2216 = vmatpush.msra.mxu0 %v1828
          %2217 = vmatmul.f32.gmra.mxu0 %v2179
          %v2218 = vpop.f32.mrf.mxu0
          %v2219 = vadd.f32 0.0, %v2218
          %2220 = vdwg.mxu0
          %v2221 = vadd.f32 %v2176, %v2199
          %v2222 = vadd.f32 %v2177, %v2219
          %vm2223 = vcmp.gt.s32.totalorder %v1826, 3
          %v2224 = vxor.u32 %v2221, 2147483648
          %v2225 = vxor.u32 %v2222, 2147483648
          %v2226 = vmul.f32 %v2224, 1.442695
          %v2227 = vpow.pop %v2226
          %v2228 = vmul.f32 %v2225, 1.442695
          %v2229 = vpow.pop %v2228
          %v2230 = vadd.f32 %v2227, 1.0
          %v2231 = vadd.f32 %v2229, 1.0
          %v2232 = vrcp.pop %v2230
          %v2233 = vmul.f32 %v2230, %v2232
          %v2234 = vsub.f32 1.0, %v2233
          %v2235 = vmul.f32 %v2232, %v2234
          %v2236 = vadd.f32 %v2232, %v2235
          %vm2237 = vweird.f32 %v2230
          %vm2238 = vweird.f32 %v2232
          %vm2239 = vmor %vm2237, %vm2238
          %v2240 = vsel %vm2239, %v2232, %v2236
          %v2241 = vand.u32 2147483647, %v2230
          %vm2242 = vcmp.eq.f32.partialorder %v2241, 8.507059e+37
          %v2243 = vand.u32 %v2230, 2147483648
          %v2244 = vor.u32 1.1754944e-38, %v2243
          %v2245 = vsel %vm2242, %v2244, %v2240
          %v2246 = vmul.f32 1.0, %v2245
          %v2247 = vrcp.pop %v2231
          %v2248 = vmul.f32 %v2231, %v2247
          %v2249 = vsub.f32 1.0, %v2248
          %v2250 = vmul.f32 %v2247, %v2249
          %v2251 = vadd.f32 %v2247, %v2250
          %vm2252 = vweird.f32 %v2231
          %vm2253 = vweird.f32 %v2247
          %vm2254 = vmor %vm2252, %vm2253
          %v2255 = vsel %vm2254, %v2247, %v2251
          %v2256 = vand.u32 2147483647, %v2231
          %vm2257 = vcmp.eq.f32.partialorder %v2256, 8.507059e+37
          %v2258 = vand.u32 %v2231, 2147483648
          %v2259 = vor.u32 1.1754944e-38, %v2258
          %v2260 = vsel %vm2257, %v2259, %v2255
          %v2261 = vmul.f32 1.0, %v2260
          %v2262 = vtanh.pop %v2222
          %v2263 = vmul.f32 %v2246, %v2175
          %2265 = vrot.lane.b32.xlu0 %v2262, 64
          %v2266 = vpop.permute.xlu0 %2265
          %v2268 = vmul.f32 %v2246, %v2266
          %2270 = vrot.lane.b32.xlu0 %v2268, 64
          %v2271 = vpop.permute.xlu0 %2270
          %v2273 = vadd.f32 %v2263, %v2271
          %v2274 = vtanh.pop %v2273
          %2276 = vrot.lane.b32.xlu0 %v2274, 64
          %v2277 = vpop.permute.xlu0 %2276
          %v2279 = vmul.f32 %v2261, %v2277
          %v2280 = vsel %vm2223, 1, 0
          %2281 = vset.pattern.permute.xlu0 0
          %2282 = vperm.xlu0 %2281, %v2280
          %v2283 = vpop.permute.xlu0 %2282
          %vm2284 = vcmp.eq.s32.totalorder %v2283, 1
          %v2285 = vsel %vm2284, %v2279, %v2174
          %v2286 = vsel %vm2284, %v2273, %v2175
          %v2287 = vld [vmem:[#allocation2 + $0x60] sm:$0xff]
          %v2288 = vld [vmem:[#allocation2 + $0x68] sm:$0xff]
          %v2290 = vsel %vm1457, %v2285, 0
          %2292 = vmatpush.msra.mxu0 0.0
          %2293 = vmatpush.msra.mxu0 0.0
          %2294 = vmatpush.msra.mxu0 0.0
          %2295 = vmatpush.msra.mxu0 0.0
          %2296 = vmatpush.msra.mxu0 0.0
          %2297 = vmatpush.msra.mxu0 0.0
          %2298 = vmatpush.msra.mxu0 0.0
          %2299 = vmatpush.msra.mxu0 0.0
          %2300 = vmatpush.msra.mxu0 %v1841
          %2301 = vmatpush.msra.mxu0 %v1839
          %2302 = vmatpush.msra.mxu0 %v1837
          %2303 = vmatpush.msra.mxu0 %v1835
          %2304 = vmatpush.msra.mxu0 %v1833
          %2305 = vmatpush.msra.mxu0 %v1831
          %2306 = vmatpush.msra.mxu0 %v1829
          %2307 = vmatpush.msra.mxu0 %v1827
          %2308 = vmatmul.f32.gmra.mxu0 %v2290
          %v2309 = vpop.f32.mrf.mxu0
          %v2310 = vadd.f32 0.0, %v2309
          %2311 = vdwg.mxu0
          %2312 = vmatpush.msra.mxu0 0.0
          %2313 = vmatpush.msra.mxu0 0.0
          %2314 = vmatpush.msra.mxu0 0.0
          %2315 = vmatpush.msra.mxu0 0.0
          %2316 = vmatpush.msra.mxu0 0.0
          %2317 = vmatpush.msra.mxu0 0.0
          %2318 = vmatpush.msra.mxu0 0.0
          %2319 = vmatpush.msra.mxu0 0.0
          %2320 = vmatpush.msra.mxu0 %v1842
          %2321 = vmatpush.msra.mxu0 %v1840
          %2322 = vmatpush.msra.mxu0 %v1838
          %2323 = vmatpush.msra.mxu0 %v1836
          %2324 = vmatpush.msra.mxu0 %v1834
          %2325 = vmatpush.msra.mxu0 %v1832
          %2326 = vmatpush.msra.mxu0 %v1830
          %2327 = vmatpush.msra.mxu0 %v1828
          %2328 = vmatmul.f32.gmra.mxu0 %v2290
          %v2329 = vpop.f32.mrf.mxu0
          %v2330 = vadd.f32 0.0, %v2329
          %2331 = vdwg.mxu0
          %v2332 = vadd.f32 %v2287, %v2310
          %v2333 = vadd.f32 %v2288, %v2330
          %vm2334 = vcmp.gt.s32.totalorder %v1826, 4
          %v2335 = vxor.u32 %v2332, 2147483648
          %v2336 = vxor.u32 %v2333, 2147483648
          %v2337 = vmul.f32 %v2335, 1.442695
          %v2338 = vpow.pop %v2337
          %v2339 = vmul.f32 %v2336, 1.442695
          %v2340 = vpow.pop %v2339
          %v2341 = vadd.f32 %v2338, 1.0
          %v2342 = vadd.f32 %v2340, 1.0
          %v2343 = vrcp.pop %v2341
          %v2344 = vmul.f32 %v2341, %v2343
          %v2345 = vsub.f32 1.0, %v2344
          %v2346 = vmul.f32 %v2343, %v2345
          %v2347 = vadd.f32 %v2343, %v2346
          %vm2348 = vweird.f32 %v2341
          %vm2349 = vweird.f32 %v2343
          %vm2350 = vmor %vm2348, %vm2349
          %v2351 = vsel %vm2350, %v2343, %v2347
          %v2352 = vand.u32 2147483647, %v2341
          %vm2353 = vcmp.eq.f32.partialorder %v2352, 8.507059e+37
          %v2354 = vand.u32 %v2341, 2147483648
          %v2355 = vor.u32 1.1754944e-38, %v2354
          %v2356 = vsel %vm2353, %v2355, %v2351
          %v2357 = vmul.f32 1.0, %v2356
          %v2358 = vrcp.pop %v2342
          %v2359 = vmul.f32 %v2342, %v2358
          %v2360 = vsub.f32 1.0, %v2359
          %v2361 = vmul.f32 %v2358, %v2360
          %v2362 = vadd.f32 %v2358, %v2361
          %vm2363 = vweird.f32 %v2342
          %vm2364 = vweird.f32 %v2358
          %vm2365 = vmor %vm2363, %vm2364
          %v2366 = vsel %vm2365, %v2358, %v2362
          %v2367 = vand.u32 2147483647, %v2342
          %vm2368 = vcmp.eq.f32.partialorder %v2367, 8.507059e+37
          %v2369 = vand.u32 %v2342, 2147483648
          %v2370 = vor.u32 1.1754944e-38, %v2369
          %v2371 = vsel %vm2368, %v2370, %v2366
          %v2372 = vmul.f32 1.0, %v2371
          %v2373 = vtanh.pop %v2333
          %v2374 = vmul.f32 %v2357, %v2286
          %2376 = vrot.lane.b32.xlu0 %v2373, 64
          %v2377 = vpop.permute.xlu0 %2376
          %v2379 = vmul.f32 %v2357, %v2377
          %2381 = vrot.lane.b32.xlu0 %v2379, 64
          %v2382 = vpop.permute.xlu0 %2381
          %v2384 = vadd.f32 %v2374, %v2382
          %v2385 = vtanh.pop %v2384
          %2387 = vrot.lane.b32.xlu0 %v2385, 64
          %v2388 = vpop.permute.xlu0 %2387
          %v2390 = vmul.f32 %v2372, %v2388
          %v2391 = vsel %vm2334, 1, 0
          %2392 = vset.pattern.permute.xlu0 0
          %2393 = vperm.xlu0 %2392, %v2391
          %v2394 = vpop.permute.xlu0 %2393
          %vm2395 = vcmp.eq.s32.totalorder %v2394, 1
          %v2396 = vsel %vm2395, %v2390, %v2285
          %v2397 = vsel %vm2395, %v2384, %v2286
          %v2398 = vld [vmem:[#allocation2 + $0x78] sm:$0xff]
          %v2399 = vld [vmem:[#allocation2 + $0x80] sm:$0xff]
          %v2401 = vsel %vm1457, %v2396, 0
          %2403 = vmatpush.msra.mxu0 0.0
          %2404 = vmatpush.msra.mxu0 0.0
          %2405 = vmatpush.msra.mxu0 0.0
          %2406 = vmatpush.msra.mxu0 0.0
          %2407 = vmatpush.msra.mxu0 0.0
          %2408 = vmatpush.msra.mxu0 0.0
          %2409 = vmatpush.msra.mxu0 0.0
          %2410 = vmatpush.msra.mxu0 0.0
          %2411 = vmatpush.msra.mxu0 %v1841
          %2412 = vmatpush.msra.mxu0 %v1839
          %2413 = vmatpush.msra.mxu0 %v1837
          %2414 = vmatpush.msra.mxu0 %v1835
          %2415 = vmatpush.msra.mxu0 %v1833
          %2416 = vmatpush.msra.mxu0 %v1831
          %2417 = vmatpush.msra.mxu0 %v1829
          %2418 = vmatpush.msra.mxu0 %v1827
          %2419 = vmatmul.f32.gmra.mxu0 %v2401
          %v2420 = vpop.f32.mrf.mxu0
          %v2421 = vadd.f32 0.0, %v2420
          %2422 = vdwg.mxu0
          %2423 = vmatpush.msra.mxu0 0.0
          %2424 = vmatpush.msra.mxu0 0.0
          %2425 = vmatpush.msra.mxu0 0.0
          %2426 = vmatpush.msra.mxu0 0.0
          %2427 = vmatpush.msra.mxu0 0.0
          %2428 = vmatpush.msra.mxu0 0.0
          %2429 = vmatpush.msra.mxu0 0.0
          %2430 = vmatpush.msra.mxu0 0.0
          %2431 = vmatpush.msra.mxu0 %v1842
          %2432 = vmatpush.msra.mxu0 %v1840
          %2433 = vmatpush.msra.mxu0 %v1838
          %2434 = vmatpush.msra.mxu0 %v1836
          %2435 = vmatpush.msra.mxu0 %v1834
          %2436 = vmatpush.msra.mxu0 %v1832
          %2437 = vmatpush.msra.mxu0 %v1830
          %2438 = vmatpush.msra.mxu0 %v1828
          %2439 = vmatmul.f32.gmra.mxu0 %v2401
          %v2440 = vpop.f32.mrf.mxu0
          %v2441 = vadd.f32 0.0, %v2440
          %2442 = vdwg.mxu0
          %v2443 = vadd.f32 %v2398, %v2421
          %v2444 = vadd.f32 %v2399, %v2441
          %vm2445 = vcmp.gt.s32.totalorder %v1826, 5
          %v2446 = vxor.u32 %v2443, 2147483648
          %v2447 = vxor.u32 %v2444, 2147483648
          %v2448 = vmul.f32 %v2446, 1.442695
          %v2449 = vpow.pop %v2448
          %v2450 = vmul.f32 %v2447, 1.442695
          %v2451 = vpow.pop %v2450
          %v2452 = vadd.f32 %v2449, 1.0
          %v2453 = vadd.f32 %v2451, 1.0
          %v2454 = vrcp.pop %v2452
          %v2455 = vmul.f32 %v2452, %v2454
          %v2456 = vsub.f32 1.0, %v2455
          %v2457 = vmul.f32 %v2454, %v2456
          %v2458 = vadd.f32 %v2454, %v2457
          %vm2459 = vweird.f32 %v2452
          %vm2460 = vweird.f32 %v2454
          %vm2461 = vmor %vm2459, %vm2460
          %v2462 = vsel %vm2461, %v2454, %v2458
          %v2463 = vand.u32 2147483647, %v2452
          %vm2464 = vcmp.eq.f32.partialorder %v2463, 8.507059e+37
          %v2465 = vand.u32 %v2452, 2147483648
          %v2466 = vor.u32 1.1754944e-38, %v2465
          %v2467 = vsel %vm2464, %v2466, %v2462
          %v2468 = vmul.f32 1.0, %v2467
          %v2469 = vrcp.pop %v2453
          %v2470 = vmul.f32 %v2453, %v2469
          %v2471 = vsub.f32 1.0, %v2470
          %v2472 = vmul.f32 %v2469, %v2471
          %v2473 = vadd.f32 %v2469, %v2472
          %vm2474 = vweird.f32 %v2453
          %vm2475 = vweird.f32 %v2469
          %vm2476 = vmor %vm2474, %vm2475
          %v2477 = vsel %vm2476, %v2469, %v2473
          %v2478 = vand.u32 2147483647, %v2453
          %vm2479 = vcmp.eq.f32.partialorder %v2478, 8.507059e+37
          %v2480 = vand.u32 %v2453, 2147483648
          %v2481 = vor.u32 1.1754944e-38, %v2480
          %v2482 = vsel %vm2479, %v2481, %v2477
          %v2483 = vmul.f32 1.0, %v2482
          %v2484 = vtanh.pop %v2444
          %v2485 = vmul.f32 %v2468, %v2397
          %2487 = vrot.lane.b32.xlu0 %v2484, 64
          %v2488 = vpop.permute.xlu0 %2487
          %v2490 = vmul.f32 %v2468, %v2488
          %2492 = vrot.lane.b32.xlu0 %v2490, 64
          %v2493 = vpop.permute.xlu0 %2492
          %v2495 = vadd.f32 %v2485, %v2493
          %v2496 = vtanh.pop %v2495
          %2498 = vrot.lane.b32.xlu0 %v2496, 64
          %v2499 = vpop.permute.xlu0 %2498
          %v2501 = vmul.f32 %v2483, %v2499
          %v2502 = vsel %vm2445, 1, 0
          %2503 = vset.pattern.permute.xlu0 0
          %2504 = vperm.xlu0 %2503, %v2502
          %v2505 = vpop.permute.xlu0 %2504
          %vm2506 = vcmp.eq.s32.totalorder %v2505, 1
          %v2507 = vsel %vm2506, %v2501, %v2396
          %v2508 = vsel %vm2506, %v2495, %v2397
          %v2509 = vld [vmem:[#allocation2 + $0x90] sm:$0xff]
          %v2510 = vld [vmem:[#allocation2 + $0x98] sm:$0xff]
          %v2512 = vsel %vm1457, %v2507, 0
          %2514 = vmatpush.msra.mxu0 0.0
          %2515 = vmatpush.msra.mxu0 0.0
          %2516 = vmatpush.msra.mxu0 0.0
          %2517 = vmatpush.msra.mxu0 0.0
          %2518 = vmatpush.msra.mxu0 0.0
          %2519 = vmatpush.msra.mxu0 0.0
          %2520 = vmatpush.msra.mxu0 0.0
          %2521 = vmatpush.msra.mxu0 0.0
          %2522 = vmatpush.msra.mxu0 %v1841
          %2523 = vmatpush.msra.mxu0 %v1839
          %2524 = vmatpush.msra.mxu0 %v1837
          %2525 = vmatpush.msra.mxu0 %v1835
          %2526 = vmatpush.msra.mxu0 %v1833
          %2527 = vmatpush.msra.mxu0 %v1831
          %2528 = vmatpush.msra.mxu0 %v1829
          %2529 = vmatpush.msra.mxu0 %v1827
          %2530 = vmatmul.f32.gmra.mxu0 %v2512
          %v2531 = vpop.f32.mrf.mxu0
          %v2532 = vadd.f32 0.0, %v2531
          %2533 = vdwg.mxu0
          %2534 = vmatpush.msra.mxu0 0.0
          %2535 = vmatpush.msra.mxu0 0.0
          %2536 = vmatpush.msra.mxu0 0.0
          %2537 = vmatpush.msra.mxu0 0.0
          %2538 = vmatpush.msra.mxu0 0.0
          %2539 = vmatpush.msra.mxu0 0.0
          %2540 = vmatpush.msra.mxu0 0.0
          %2541 = vmatpush.msra.mxu0 0.0
          %2542 = vmatpush.msra.mxu0 %v1842
          %2543 = vmatpush.msra.mxu0 %v1840
          %2544 = vmatpush.msra.mxu0 %v1838
          %2545 = vmatpush.msra.mxu0 %v1836
          %2546 = vmatpush.msra.mxu0 %v1834
          %2547 = vmatpush.msra.mxu0 %v1832
          %2548 = vmatpush.msra.mxu0 %v1830
          %2549 = vmatpush.msra.mxu0 %v1828
          %2550 = vmatmul.f32.gmra.mxu0 %v2512
          %v2551 = vpop.f32.mrf.mxu0
          %v2552 = vadd.f32 0.0, %v2551
          %2553 = vdwg.mxu0
          %v2554 = vadd.f32 %v2509, %v2532
          %v2555 = vadd.f32 %v2510, %v2552
          %vm2556 = vcmp.gt.s32.totalorder %v1826, 6
          %v2557 = vxor.u32 %v2554, 2147483648
          %v2558 = vxor.u32 %v2555, 2147483648
          %v2559 = vmul.f32 %v2557, 1.442695
          %v2560 = vpow.pop %v2559
          %v2561 = vmul.f32 %v2558, 1.442695
          %v2562 = vpow.pop %v2561
          %v2563 = vadd.f32 %v2560, 1.0
          %v2564 = vadd.f32 %v2562, 1.0
          %v2565 = vrcp.pop %v2563
          %v2566 = vmul.f32 %v2563, %v2565
          %v2567 = vsub.f32 1.0, %v2566
          %v2568 = vmul.f32 %v2565, %v2567
          %v2569 = vadd.f32 %v2565, %v2568
          %vm2570 = vweird.f32 %v2563
          %vm2571 = vweird.f32 %v2565
          %vm2572 = vmor %vm2570, %vm2571
          %v2573 = vsel %vm2572, %v2565, %v2569
          %v2574 = vand.u32 2147483647, %v2563
          %vm2575 = vcmp.eq.f32.partialorder %v2574, 8.507059e+37
          %v2576 = vand.u32 %v2563, 2147483648
          %v2577 = vor.u32 1.1754944e-38, %v2576
          %v2578 = vsel %vm2575, %v2577, %v2573
          %v2579 = vmul.f32 1.0, %v2578
          %v2580 = vrcp.pop %v2564
          %v2581 = vmul.f32 %v2564, %v2580
          %v2582 = vsub.f32 1.0, %v2581
          %v2583 = vmul.f32 %v2580, %v2582
          %v2584 = vadd.f32 %v2580, %v2583
          %vm2585 = vweird.f32 %v2564
          %vm2586 = vweird.f32 %v2580
          %vm2587 = vmor %vm2585, %vm2586
          %v2588 = vsel %vm2587, %v2580, %v2584
          %v2589 = vand.u32 2147483647, %v2564
          %vm2590 = vcmp.eq.f32.partialorder %v2589, 8.507059e+37
          %v2591 = vand.u32 %v2564, 2147483648
          %v2592 = vor.u32 1.1754944e-38, %v2591
          %v2593 = vsel %vm2590, %v2592, %v2588
          %v2594 = vmul.f32 1.0, %v2593
          %v2595 = vtanh.pop %v2555
          %v2596 = vmul.f32 %v2579, %v2508
          %2598 = vrot.lane.b32.xlu0 %v2595, 64
          %v2599 = vpop.permute.xlu0 %2598
          %v2601 = vmul.f32 %v2579, %v2599
          %2603 = vrot.lane.b32.xlu0 %v2601, 64
          %v2604 = vpop.permute.xlu0 %2603
          %v2606 = vadd.f32 %v2596, %v2604
          %v2607 = vtanh.pop %v2606
          %2609 = vrot.lane.b32.xlu0 %v2607, 64
          %v2610 = vpop.permute.xlu0 %2609
          %v2612 = vmul.f32 %v2594, %v2610
          %v2613 = vsel %vm2556, 1, 0
          %2614 = vset.pattern.permute.xlu0 0
          %2615 = vperm.xlu0 %2614, %v2613
          %v2616 = vpop.permute.xlu0 %2615
          %vm2617 = vcmp.eq.s32.totalorder %v2616, 1
          %v2618 = vsel %vm2617, %v2612, %v2507
          %v2619 = vsel %vm2617, %v2606, %v2508
          %v2620 = vld [vmem:[#allocation2 + $0xa8] sm:$0xff]
          %v2621 = vld [vmem:[#allocation2 + $0xb0] sm:$0xff]
          %v2623 = vsel %vm1457, %v2618, 0
          %2625 = vmatpush.msra.mxu0 0.0
          %2626 = vmatpush.msra.mxu0 0.0
          %2627 = vmatpush.msra.mxu0 0.0
          %2628 = vmatpush.msra.mxu0 0.0
          %2629 = vmatpush.msra.mxu0 0.0
          %2630 = vmatpush.msra.mxu0 0.0
          %2631 = vmatpush.msra.mxu0 0.0
          %2632 = vmatpush.msra.mxu0 0.0
          %2633 = vmatpush.msra.mxu0 %v1841
          %2634 = vmatpush.msra.mxu0 %v1839
          %2635 = vmatpush.msra.mxu0 %v1837
          %2636 = vmatpush.msra.mxu0 %v1835
          %2637 = vmatpush.msra.mxu0 %v1833
          %2638 = vmatpush.msra.mxu0 %v1831
          %2639 = vmatpush.msra.mxu0 %v1829
          %2640 = vmatpush.msra.mxu0 %v1827
          %2641 = vmatmul.f32.gmra.mxu0 %v2623
          %v2642 = vpop.f32.mrf.mxu0
          %v2643 = vadd.f32 0.0, %v2642
          %2644 = vdwg.mxu0
          %2645 = vmatpush.msra.mxu0 0.0
          %2646 = vmatpush.msra.mxu0 0.0
          %2647 = vmatpush.msra.mxu0 0.0
          %2648 = vmatpush.msra.mxu0 0.0
          %2649 = vmatpush.msra.mxu0 0.0
          %2650 = vmatpush.msra.mxu0 0.0
          %2651 = vmatpush.msra.mxu0 0.0
          %2652 = vmatpush.msra.mxu0 0.0
          %2653 = vmatpush.msra.mxu0 %v1842
          %2654 = vmatpush.msra.mxu0 %v1840
          %2655 = vmatpush.msra.mxu0 %v1838
          %2656 = vmatpush.msra.mxu0 %v1836
          %2657 = vmatpush.msra.mxu0 %v1834
          %2658 = vmatpush.msra.mxu0 %v1832
          %2659 = vmatpush.msra.mxu0 %v1830
          %2660 = vmatpush.msra.mxu0 %v1828
          %2661 = vmatmul.f32.gmra.mxu0 %v2623
          %v2662 = vpop.f32.mrf.mxu0
          %v2663 = vadd.f32 0.0, %v2662
          %2664 = vdwg.mxu0
          %v2665 = vadd.f32 %v2620, %v2643
          %v2666 = vadd.f32 %v2621, %v2663
          %vm2667 = vcmp.gt.s32.totalorder %v1826, 7
          %v2668 = vxor.u32 %v2665, 2147483648
          %v2669 = vxor.u32 %v2666, 2147483648
          %v2670 = vmul.f32 %v2668, 1.442695
          %v2671 = vpow.pop %v2670
          %v2672 = vmul.f32 %v2669, 1.442695
          %v2673 = vpow.pop %v2672
          %v2674 = vadd.f32 %v2671, 1.0
          %v2675 = vadd.f32 %v2673, 1.0
          %v2676 = vrcp.pop %v2674
          %v2677 = vmul.f32 %v2674, %v2676
          %v2678 = vsub.f32 1.0, %v2677
          %v2679 = vmul.f32 %v2676, %v2678
          %v2680 = vadd.f32 %v2676, %v2679
          %vm2681 = vweird.f32 %v2674
          %vm2682 = vweird.f32 %v2676
          %vm2683 = vmor %vm2681, %vm2682
          %v2684 = vsel %vm2683, %v2676, %v2680
          %v2685 = vand.u32 2147483647, %v2674
          %vm2686 = vcmp.eq.f32.partialorder %v2685, 8.507059e+37
          %v2687 = vand.u32 %v2674, 2147483648
          %v2688 = vor.u32 1.1754944e-38, %v2687
          %v2689 = vsel %vm2686, %v2688, %v2684
          %v2690 = vmul.f32 1.0, %v2689
          %v2691 = vrcp.pop %v2675
          %v2692 = vmul.f32 %v2675, %v2691
          %v2693 = vsub.f32 1.0, %v2692
          %v2694 = vmul.f32 %v2691, %v2693
          %v2695 = vadd.f32 %v2691, %v2694
          %vm2696 = vweird.f32 %v2675
          %vm2697 = vweird.f32 %v2691
          %vm2698 = vmor %vm2696, %vm2697
          %v2699 = vsel %vm2698, %v2691, %v2695
          %v2700 = vand.u32 2147483647, %v2675
          %vm2701 = vcmp.eq.f32.partialorder %v2700, 8.507059e+37
          %v2702 = vand.u32 %v2675, 2147483648
          %v2703 = vor.u32 1.1754944e-38, %v2702
          %v2704 = vsel %vm2701, %v2703, %v2699
          %v2705 = vmul.f32 1.0, %v2704
          %v2706 = vtanh.pop %v2666
          %v2707 = vmul.f32 %v2690, %v2619
          %2709 = vrot.lane.b32.xlu0 %v2706, 64
          %v2710 = vpop.permute.xlu0 %2709
          %v2712 = vmul.f32 %v2690, %v2710
          %2714 = vrot.lane.b32.xlu0 %v2712, 64
          %v2715 = vpop.permute.xlu0 %2714
          %v2717 = vadd.f32 %v2707, %v2715
          %v2718 = vtanh.pop %v2717
          %2720 = vrot.lane.b32.xlu0 %v2718, 64
          %v2721 = vpop.permute.xlu0 %2720
          %v2723 = vmul.f32 %v2705, %v2721
          %v2724 = vsel %vm2667, 1, 0
          %2725 = vset.pattern.permute.xlu0 0
          %2726 = vperm.xlu0 %2725, %v2724
          %v2727 = vpop.permute.xlu0 %2726
          %vm2728 = vcmp.eq.s32.totalorder %v2727, 1
          %v2729 = vsel %vm2728, %v2723, %v2618
          %v2730 = vld [vmem:[%s3 + $0x10] sm:$0xff]
          %v2731 = vld [vmem:[%s3 + $0x18] sm:$0xff]
          %v2732 = vld [vmem:[%s3 + $0x50] sm:$0xff]
          %v2733 = vld [vmem:[%s3 + $0x58] sm:$0xff]
          %v2734 = vld [vmem:[%s3 + $0x90] sm:$0xff]
          %v2735 = vld [vmem:[%s3 + $0x98] sm:$0xff]
          %v2736 = vld [vmem:[%s3 + $0xd0] sm:$0xff]
          %v2737 = vld [vmem:[%s3 + $0xd8] sm:$0xff]
          %v2738 = vld [vmem:[%s3 + $0x110] sm:$0xff]
          %v2739 = vld [vmem:[%s3 + $0x118] sm:$0xff]
          %v2740 = vld [vmem:[%s3 + $0x150] sm:$0xff]
          %v2741 = vld [vmem:[%s3 + $0x158] sm:$0xff]
          %v2742 = vld [vmem:[%s3 + $0x190] sm:$0xff]
          %v2743 = vld [vmem:[%s3 + $0x198] sm:$0xff]
          %v2744 = vld [vmem:[%s3 + $0x1d0] sm:$0xff]
          %v2745 = vld [vmem:[%s3 + $0x1d8] sm:$0xff]
          %v2747 = vsel %vm1457, %v2729, 0
          %2749 = vmatpush.msra.mxu0 0.0
          %2750 = vmatpush.msra.mxu0 0.0
          %2751 = vmatpush.msra.mxu0 0.0
          %2752 = vmatpush.msra.mxu0 0.0
          %2753 = vmatpush.msra.mxu0 0.0
          %2754 = vmatpush.msra.mxu0 0.0
          %2755 = vmatpush.msra.mxu0 0.0
          %2756 = vmatpush.msra.mxu0 0.0
          %2757 = vmatpush.msra.mxu0 %v2744
          %2758 = vmatpush.msra.mxu0 %v2742
          %2759 = vmatpush.msra.mxu0 %v2740
          %2760 = vmatpush.msra.mxu0 %v2738
          %2761 = vmatpush.msra.mxu0 %v2736
          %2762 = vmatpush.msra.mxu0 %v2734
          %2763 = vmatpush.msra.mxu0 %v2732
          %2764 = vmatpush.msra.mxu0 %v2730
          %2765 = vmatmul.f32.gmra.mxu0 %v2747
          %v2766 = vpop.f32.mrf.mxu0
          %v2767 = vadd.f32 %v1700, %v2766
          %2768 = vdwg.mxu0
          %2769 = vmatpush.msra.mxu0 0.0
          %2770 = vmatpush.msra.mxu0 0.0
          %2771 = vmatpush.msra.mxu0 0.0
          %2772 = vmatpush.msra.mxu0 0.0
          %2773 = vmatpush.msra.mxu0 0.0
          %2774 = vmatpush.msra.mxu0 0.0
          %2775 = vmatpush.msra.mxu0 0.0
          %2776 = vmatpush.msra.mxu0 0.0
          %2777 = vmatpush.msra.mxu0 %v2745
          %2778 = vmatpush.msra.mxu0 %v2743
          %2779 = vmatpush.msra.mxu0 %v2741
          %2780 = vmatpush.msra.mxu0 %v2739
          %2781 = vmatpush.msra.mxu0 %v2737
          %2782 = vmatpush.msra.mxu0 %v2735
          %2783 = vmatpush.msra.mxu0 %v2733
          %2784 = vmatpush.msra.mxu0 %v2731
          %2785 = vmatmul.f32.gmra.mxu0 %v2747
          %v2786 = vpop.f32.mrf.mxu0
          %v2787 = vadd.f32 %v1701, %v2786
          %2788 = vdwg.mxu0
          %v2789 = vld [vmem:[%s3 + $0x20] sm:$0xff]
          %v2790 = vld [vmem:[%s3 + $0x28] sm:$0xff]
          %v2791 = vld [vmem:[%s3 + $0x60] sm:$0xff]
          %v2792 = vld [vmem:[%s3 + $0x68] sm:$0xff]
          %v2793 = vld [vmem:[%s3 + $0xa0] sm:$0xff]
          %v2794 = vld [vmem:[%s3 + $0xa8] sm:$0xff]
          %v2795 = vld [vmem:[%s3 + $0xe0] sm:$0xff]
          %v2796 = vld [vmem:[%s3 + $0xe8] sm:$0xff]
          %v2797 = vld [vmem:[%s3 + $0x120] sm:$0xff]
          %v2798 = vld [vmem:[%s3 + $0x128] sm:$0xff]
          %v2799 = vld [vmem:[%s3 + $0x160] sm:$0xff]
          %v2800 = vld [vmem:[%s3 + $0x168] sm:$0xff]
          %v2801 = vld [vmem:[%s3 + $0x1a0] sm:$0xff]
          %v2802 = vld [vmem:[%s3 + $0x1a8] sm:$0xff]
          %v2803 = vld [vmem:[%s3 + $0x1e0] sm:$0xff]
          %v2804 = vld [vmem:[%s3 + $0x1e8] sm:$0xff]
          %v2805 = vadd.s32 %v1826, 1
          %2806 = vmatpush.msra.mxu0 0.0
          %2807 = vmatpush.msra.mxu0 0.0
          %2808 = vmatpush.msra.mxu0 0.0
          %2809 = vmatpush.msra.mxu0 0.0
          %2810 = vmatpush.msra.mxu0 0.0
          %2811 = vmatpush.msra.mxu0 0.0
          %2812 = vmatpush.msra.mxu0 0.0
          %2813 = vmatpush.msra.mxu0 0.0
          %2814 = vmatpush.msra.mxu0 %v2803
          %2815 = vmatpush.msra.mxu0 %v2801
          %2816 = vmatpush.msra.mxu0 %v2799
          %2817 = vmatpush.msra.mxu0 %v2797
          %2818 = vmatpush.msra.mxu0 %v2795
          %2819 = vmatpush.msra.mxu0 %v2793
          %2820 = vmatpush.msra.mxu0 %v2791
          %2821 = vmatpush.msra.mxu0 %v2789
          %2822 = vmatmul.f32.gmra.mxu0 %v1846
          %v2823 = vpop.f32.mrf.mxu0
          %v2824 = vadd.f32 0.0, %v2823
          %2825 = vdwg.mxu0
          %2826 = vmatpush.msra.mxu0 0.0
          %2827 = vmatpush.msra.mxu0 0.0
          %2828 = vmatpush.msra.mxu0 0.0
          %2829 = vmatpush.msra.mxu0 0.0
          %2830 = vmatpush.msra.mxu0 0.0
          %2831 = vmatpush.msra.mxu0 0.0
          %2832 = vmatpush.msra.mxu0 0.0
          %2833 = vmatpush.msra.mxu0 0.0
          %2834 = vmatpush.msra.mxu0 %v2804
          %2835 = vmatpush.msra.mxu0 %v2802
          %2836 = vmatpush.msra.mxu0 %v2800
          %2837 = vmatpush.msra.mxu0 %v2798
          %2838 = vmatpush.msra.mxu0 %v2796
          %2839 = vmatpush.msra.mxu0 %v2794
          %2840 = vmatpush.msra.mxu0 %v2792
          %2841 = vmatpush.msra.mxu0 %v2790
          %2842 = vmatmul.f32.gmra.mxu0 %v1846
          %v2843 = vpop.f32.mrf.mxu0
          %v2844 = vadd.f32 0.0, %v2843
          %2845 = vdwg.mxu0
          %v2846 = vadd.f32 %v2767, %v2824
          %v2847 = vadd.f32 %v2787, %v2844
          %vm2848 = vcmp.gt.s32.totalorder %v2805, 0
          %v2849 = vxor.u32 %v2846, 2147483648
          %v2850 = vxor.u32 %v2847, 2147483648
          %v2851 = vmul.f32 %v2849, 1.442695
          %v2852 = vpow.pop %v2851
          %v2853 = vmul.f32 %v2850, 1.442695
          %v2854 = vpow.pop %v2853
          %v2855 = vadd.f32 %v2852, 1.0
          %v2856 = vadd.f32 %v2854, 1.0
          %v2857 = vrcp.pop %v2855
          %v2858 = vmul.f32 %v2855, %v2857
          %v2859 = vsub.f32 1.0, %v2858
          %v2860 = vmul.f32 %v2857, %v2859
          %v2861 = vadd.f32 %v2857, %v2860
          %vm2862 = vweird.f32 %v2855
          %vm2863 = vweird.f32 %v2857
          %vm2864 = vmor %vm2862, %vm2863
          %v2865 = vsel %vm2864, %v2857, %v2861
          %v2866 = vand.u32 2147483647, %v2855
          %vm2867 = vcmp.eq.f32.partialorder %v2866, 8.507059e+37
          %v2868 = vand.u32 %v2855, 2147483648
          %v2869 = vor.u32 1.1754944e-38, %v2868
          %v2870 = vsel %vm2867, %v2869, %v2865
          %v2871 = vmul.f32 1.0, %v2870
          %v2872 = vrcp.pop %v2856
          %v2873 = vmul.f32 %v2856, %v2872
          %v2874 = vsub.f32 1.0, %v2873
          %v2875 = vmul.f32 %v2872, %v2874
          %v2876 = vadd.f32 %v2872, %v2875
          %vm2877 = vweird.f32 %v2856
          %vm2878 = vweird.f32 %v2872
          %vm2879 = vmor %vm2877, %vm2878
          %v2880 = vsel %vm2879, %v2872, %v2876
          %v2881 = vand.u32 2147483647, %v2856
          %vm2882 = vcmp.eq.f32.partialorder %v2881, 8.507059e+37
          %v2883 = vand.u32 %v2856, 2147483648
          %v2884 = vor.u32 1.1754944e-38, %v2883
          %v2885 = vsel %vm2882, %v2884, %v2880
          %v2886 = vmul.f32 1.0, %v2885
          %v2887 = vtanh.pop %v2847
          %v2888 = vmul.f32 %v2871, 0.0
          %2890 = vrot.lane.b32.xlu0 %v2887, 64
          %v2891 = vpop.permute.xlu0 %2890
          %v2893 = vmul.f32 %v2871, %v2891
          %2895 = vrot.lane.b32.xlu0 %v2893, 64
          %v2896 = vpop.permute.xlu0 %2895
          %v2898 = vadd.f32 %v2888, %v2896
          %v2899 = vtanh.pop %v2898
          %2901 = vrot.lane.b32.xlu0 %v2899, 64
          %v2902 = vpop.permute.xlu0 %2901
          %v2904 = vmul.f32 %v2886, %v2902
          %v2905 = vsel %vm2848, 1, 0
          %2906 = vset.pattern.permute.xlu0 0
          %2907 = vperm.xlu0 %2906, %v2905
          %v2908 = vpop.permute.xlu0 %2907
          %vm2909 = vcmp.eq.s32.totalorder %v2908, 1
          %v2910 = vsel %vm2909, %v2904, 0.0
          %v2911 = vsel %vm2909, %v2898, 0.0
          %v2912 = vld [vmem:[#allocation3] sm:$0xff]
          %v2913 = vld [vmem:[#allocation3 + $0x8] sm:$0xff]
          %v2915 = vsel %vm1457, %v2910, 0
          %2917 = vmatpush.msra.mxu0 0.0
          %2918 = vmatpush.msra.mxu0 0.0
          %2919 = vmatpush.msra.mxu0 0.0
          %2920 = vmatpush.msra.mxu0 0.0
          %2921 = vmatpush.msra.mxu0 0.0
          %2922 = vmatpush.msra.mxu0 0.0
          %2923 = vmatpush.msra.mxu0 0.0
          %2924 = vmatpush.msra.mxu0 0.0
          %2925 = vmatpush.msra.mxu0 %v2803
          %2926 = vmatpush.msra.mxu0 %v2801
          %2927 = vmatpush.msra.mxu0 %v2799
          %2928 = vmatpush.msra.mxu0 %v2797
          %2929 = vmatpush.msra.mxu0 %v2795
          %2930 = vmatpush.msra.mxu0 %v2793
          %2931 = vmatpush.msra.mxu0 %v2791
          %2932 = vmatpush.msra.mxu0 %v2789
          %2933 = vmatmul.f32.gmra.mxu0 %v2915
          %v2934 = vpop.f32.mrf.mxu0
          %v2935 = vadd.f32 0.0, %v2934
          %2936 = vdwg.mxu0
          %2937 = vmatpush.msra.mxu0 0.0
          %2938 = vmatpush.msra.mxu0 0.0
          %2939 = vmatpush.msra.mxu0 0.0
          %2940 = vmatpush.msra.mxu0 0.0
          %2941 = vmatpush.msra.mxu0 0.0
          %2942 = vmatpush.msra.mxu0 0.0
          %2943 = vmatpush.msra.mxu0 0.0
          %2944 = vmatpush.msra.mxu0 0.0
          %2945 = vmatpush.msra.mxu0 %v2804
          %2946 = vmatpush.msra.mxu0 %v2802
          %2947 = vmatpush.msra.mxu0 %v2800
          %2948 = vmatpush.msra.mxu0 %v2798
          %2949 = vmatpush.msra.mxu0 %v2796
          %2950 = vmatpush.msra.mxu0 %v2794
          %2951 = vmatpush.msra.mxu0 %v2792
          %2952 = vmatpush.msra.mxu0 %v2790
          %2953 = vmatmul.f32.gmra.mxu0 %v2915
          %v2954 = vpop.f32.mrf.mxu0
          %v2955 = vadd.f32 0.0, %v2954
          %2956 = vdwg.mxu0
          %v2957 = vadd.f32 %v2912, %v2935
          %v2958 = vadd.f32 %v2913, %v2955
          %vm2959 = vcmp.gt.s32.totalorder %v2805, 1
          %v2960 = vxor.u32 %v2957, 2147483648
          %v2961 = vxor.u32 %v2958, 2147483648
          %v2962 = vmul.f32 %v2960, 1.442695
          %v2963 = vpow.pop %v2962
          %v2964 = vmul.f32 %v2961, 1.442695
          %v2965 = vpow.pop %v2964
          %v2966 = vadd.f32 %v2963, 1.0
          %v2967 = vadd.f32 %v2965, 1.0
          %v2968 = vrcp.pop %v2966
          %v2969 = vmul.f32 %v2966, %v2968
          %v2970 = vsub.f32 1.0, %v2969
          %v2971 = vmul.f32 %v2968, %v2970
          %v2972 = vadd.f32 %v2968, %v2971
          %vm2973 = vweird.f32 %v2966
          %vm2974 = vweird.f32 %v2968
          %vm2975 = vmor %vm2973, %vm2974
          %v2976 = vsel %vm2975, %v2968, %v2972
          %v2977 = vand.u32 2147483647, %v2966
          %vm2978 = vcmp.eq.f32.partialorder %v2977, 8.507059e+37
          %v2979 = vand.u32 %v2966, 2147483648
          %v2980 = vor.u32 1.1754944e-38, %v2979
          %v2981 = vsel %vm2978, %v2980, %v2976
          %v2982 = vmul.f32 1.0, %v2981
          %v2983 = vrcp.pop %v2967
          %v2984 = vmul.f32 %v2967, %v2983
          %v2985 = vsub.f32 1.0, %v2984
          %v2986 = vmul.f32 %v2983, %v2985
          %v2987 = vadd.f32 %v2983, %v2986
          %vm2988 = vweird.f32 %v2967
          %vm2989 = vweird.f32 %v2983
          %vm2990 = vmor %vm2988, %vm2989
          %v2991 = vsel %vm2990, %v2983, %v2987
          %v2992 = vand.u32 2147483647, %v2967
          %vm2993 = vcmp.eq.f32.partialorder %v2992, 8.507059e+37
          %v2994 = vand.u32 %v2967, 2147483648
          %v2995 = vor.u32 1.1754944e-38, %v2994
          %v2996 = vsel %vm2993, %v2995, %v2991
          %v2997 = vmul.f32 1.0, %v2996
          %v2998 = vtanh.pop %v2958
          %v2999 = vmul.f32 %v2982, %v2911
          %3001 = vrot.lane.b32.xlu0 %v2998, 64
          %v3002 = vpop.permute.xlu0 %3001
          %v3004 = vmul.f32 %v2982, %v3002
          %3006 = vrot.lane.b32.xlu0 %v3004, 64
          %v3007 = vpop.permute.xlu0 %3006
          %v3009 = vadd.f32 %v2999, %v3007
          %v3010 = vtanh.pop %v3009
          %3012 = vrot.lane.b32.xlu0 %v3010, 64
          %v3013 = vpop.permute.xlu0 %3012
          %v3015 = vmul.f32 %v2997, %v3013
          %v3016 = vsel %vm2959, 1, 0
          %3017 = vset.pattern.permute.xlu0 0
          %3018 = vperm.xlu0 %3017, %v3016
          %v3019 = vpop.permute.xlu0 %3018
          %vm3020 = vcmp.eq.s32.totalorder %v3019, 1
          %v3021 = vsel %vm3020, %v3015, %v2910
          %v3022 = vsel %vm3020, %v3009, %v2911
          %v3023 = vld [vmem:[#allocation3 + $0x10] sm:$0xff]
          %v3024 = vld [vmem:[#allocation3 + $0x18] sm:$0xff]
          %v3026 = vsel %vm1457, %v3021, 0
          %3028 = vmatpush.msra.mxu0 0.0
          %3029 = vmatpush.msra.mxu0 0.0
          %3030 = vmatpush.msra.mxu0 0.0
          %3031 = vmatpush.msra.mxu0 0.0
          %3032 = vmatpush.msra.mxu0 0.0
          %3033 = vmatpush.msra.mxu0 0.0
          %3034 = vmatpush.msra.mxu0 0.0
          %3035 = vmatpush.msra.mxu0 0.0
          %3036 = vmatpush.msra.mxu0 %v2803
          %3037 = vmatpush.msra.mxu0 %v2801
          %3038 = vmatpush.msra.mxu0 %v2799
          %3039 = vmatpush.msra.mxu0 %v2797
          %3040 = vmatpush.msra.mxu0 %v2795
          %3041 = vmatpush.msra.mxu0 %v2793
          %3042 = vmatpush.msra.mxu0 %v2791
          %3043 = vmatpush.msra.mxu0 %v2789
          %3044 = vmatmul.f32.gmra.mxu0 %v3026
          %v3045 = vpop.f32.mrf.mxu0
          %v3046 = vadd.f32 0.0, %v3045
          %3047 = vdwg.mxu0
          %3048 = vmatpush.msra.mxu0 0.0
          %3049 = vmatpush.msra.mxu0 0.0
          %3050 = vmatpush.msra.mxu0 0.0
          %3051 = vmatpush.msra.mxu0 0.0
          %3052 = vmatpush.msra.mxu0 0.0
          %3053 = vmatpush.msra.mxu0 0.0
          %3054 = vmatpush.msra.mxu0 0.0
          %3055 = vmatpush.msra.mxu0 0.0
          %3056 = vmatpush.msra.mxu0 %v2804
          %3057 = vmatpush.msra.mxu0 %v2802
          %3058 = vmatpush.msra.mxu0 %v2800
          %3059 = vmatpush.msra.mxu0 %v2798
          %3060 = vmatpush.msra.mxu0 %v2796
          %3061 = vmatpush.msra.mxu0 %v2794
          %3062 = vmatpush.msra.mxu0 %v2792
          %3063 = vmatpush.msra.mxu0 %v2790
          %3064 = vmatmul.f32.gmra.mxu0 %v3026
          %v3065 = vpop.f32.mrf.mxu0
          %v3066 = vadd.f32 0.0, %v3065
          %3067 = vdwg.mxu0
          %v3068 = vadd.f32 %v3023, %v3046
          %v3069 = vadd.f32 %v3024, %v3066
          %vm3070 = vcmp.gt.s32.totalorder %v2805, 2
          %v3071 = vxor.u32 %v3068, 2147483648
          %v3072 = vxor.u32 %v3069, 2147483648
          %v3073 = vmul.f32 %v3071, 1.442695
          %v3074 = vpow.pop %v3073
          %v3075 = vmul.f32 %v3072, 1.442695
          %v3076 = vpow.pop %v3075
          %v3077 = vadd.f32 %v3074, 1.0
          %v3078 = vadd.f32 %v3076, 1.0
          %v3079 = vrcp.pop %v3077
          %v3080 = vmul.f32 %v3077, %v3079
          %v3081 = vsub.f32 1.0, %v3080
          %v3082 = vmul.f32 %v3079, %v3081
          %v3083 = vadd.f32 %v3079, %v3082
          %vm3084 = vweird.f32 %v3077
          %vm3085 = vweird.f32 %v3079
          %vm3086 = vmor %vm3084, %vm3085
          %v3087 = vsel %vm3086, %v3079, %v3083
          %v3088 = vand.u32 2147483647, %v3077
          %vm3089 = vcmp.eq.f32.partialorder %v3088, 8.507059e+37
          %v3090 = vand.u32 %v3077, 2147483648
          %v3091 = vor.u32 1.1754944e-38, %v3090
          %v3092 = vsel %vm3089, %v3091, %v3087
          %v3093 = vmul.f32 1.0, %v3092
          %v3094 = vrcp.pop %v3078
          %v3095 = vmul.f32 %v3078, %v3094
          %v3096 = vsub.f32 1.0, %v3095
          %v3097 = vmul.f32 %v3094, %v3096
          %v3098 = vadd.f32 %v3094, %v3097
          %vm3099 = vweird.f32 %v3078
          %vm3100 = vweird.f32 %v3094
          %vm3101 = vmor %vm3099, %vm3100
          %v3102 = vsel %vm3101, %v3094, %v3098
          %v3103 = vand.u32 2147483647, %v3078
          %vm3104 = vcmp.eq.f32.partialorder %v3103, 8.507059e+37
          %v3105 = vand.u32 %v3078, 2147483648
          %v3106 = vor.u32 1.1754944e-38, %v3105
          %v3107 = vsel %vm3104, %v3106, %v3102
          %v3108 = vmul.f32 1.0, %v3107
          %v3109 = vtanh.pop %v3069
          %v3110 = vmul.f32 %v3093, %v3022
          %3112 = vrot.lane.b32.xlu0 %v3109, 64
          %v3113 = vpop.permute.xlu0 %3112
          %v3115 = vmul.f32 %v3093, %v3113
          %3117 = vrot.lane.b32.xlu0 %v3115, 64
          %v3118 = vpop.permute.xlu0 %3117
          %v3120 = vadd.f32 %v3110, %v3118
          %v3121 = vtanh.pop %v3120
          %3123 = vrot.lane.b32.xlu0 %v3121, 64
          %v3124 = vpop.permute.xlu0 %3123
          %v3126 = vmul.f32 %v3108, %v3124
          %v3127 = vsel %vm3070, 1, 0
          %3128 = vset.pattern.permute.xlu0 0
          %3129 = vperm.xlu0 %3128, %v3127
          %v3130 = vpop.permute.xlu0 %3129
          %vm3131 = vcmp.eq.s32.totalorder %v3130, 1
          %v3132 = vsel %vm3131, %v3126, %v3021
          %v3133 = vsel %vm3131, %v3120, %v3022
          %v3134 = vld [vmem:[#allocation3 + $0x20] sm:$0xff]
          %v3135 = vld [vmem:[#allocation3 + $0x28] sm:$0xff]
          %v3137 = vsel %vm1457, %v3132, 0
          %3139 = vmatpush.msra.mxu0 0.0
          %3140 = vmatpush.msra.mxu0 0.0
          %3141 = vmatpush.msra.mxu0 0.0
          %3142 = vmatpush.msra.mxu0 0.0
          %3143 = vmatpush.msra.mxu0 0.0
          %3144 = vmatpush.msra.mxu0 0.0
          %3145 = vmatpush.msra.mxu0 0.0
          %3146 = vmatpush.msra.mxu0 0.0
          %3147 = vmatpush.msra.mxu0 %v2803
          %3148 = vmatpush.msra.mxu0 %v2801
          %3149 = vmatpush.msra.mxu0 %v2799
          %3150 = vmatpush.msra.mxu0 %v2797
          %3151 = vmatpush.msra.mxu0 %v2795
          %3152 = vmatpush.msra.mxu0 %v2793
          %3153 = vmatpush.msra.mxu0 %v2791
          %3154 = vmatpush.msra.mxu0 %v2789
          %3155 = vmatmul.f32.gmra.mxu0 %v3137
          %v3156 = vpop.f32.mrf.mxu0
          %v3157 = vadd.f32 0.0, %v3156
          %3158 = vdwg.mxu0
          %3159 = vmatpush.msra.mxu0 0.0
          %3160 = vmatpush.msra.mxu0 0.0
          %3161 = vmatpush.msra.mxu0 0.0
          %3162 = vmatpush.msra.mxu0 0.0
          %3163 = vmatpush.msra.mxu0 0.0
          %3164 = vmatpush.msra.mxu0 0.0
          %3165 = vmatpush.msra.mxu0 0.0
          %3166 = vmatpush.msra.mxu0 0.0
          %3167 = vmatpush.msra.mxu0 %v2804
          %3168 = vmatpush.msra.mxu0 %v2802
          %3169 = vmatpush.msra.mxu0 %v2800
          %3170 = vmatpush.msra.mxu0 %v2798
          %3171 = vmatpush.msra.mxu0 %v2796
          %3172 = vmatpush.msra.mxu0 %v2794
          %3173 = vmatpush.msra.mxu0 %v2792
          %3174 = vmatpush.msra.mxu0 %v2790
          %3175 = vmatmul.f32.gmra.mxu0 %v3137
          %v3176 = vpop.f32.mrf.mxu0
          %v3177 = vadd.f32 0.0, %v3176
          %3178 = vdwg.mxu0
          %v3179 = vadd.f32 %v3134, %v3157
          %v3180 = vadd.f32 %v3135, %v3177
          %vm3181 = vcmp.gt.s32.totalorder %v2805, 3
          %v3182 = vxor.u32 %v3179, 2147483648
          %v3183 = vxor.u32 %v3180, 2147483648
          %v3184 = vmul.f32 %v3182, 1.442695
          %v3185 = vpow.pop %v3184
          %v3186 = vmul.f32 %v3183, 1.442695
          %v3187 = vpow.pop %v3186
          %v3188 = vadd.f32 %v3185, 1.0
          %v3189 = vadd.f32 %v3187, 1.0
          %v3190 = vrcp.pop %v3188
          %v3191 = vmul.f32 %v3188, %v3190
          %v3192 = vsub.f32 1.0, %v3191
          %v3193 = vmul.f32 %v3190, %v3192
          %v3194 = vadd.f32 %v3190, %v3193
          %vm3195 = vweird.f32 %v3188
          %vm3196 = vweird.f32 %v3190
          %vm3197 = vmor %vm3195, %vm3196
          %v3198 = vsel %vm3197, %v3190, %v3194
          %v3199 = vand.u32 2147483647, %v3188
          %vm3200 = vcmp.eq.f32.partialorder %v3199, 8.507059e+37
          %v3201 = vand.u32 %v3188, 2147483648
          %v3202 = vor.u32 1.1754944e-38, %v3201
          %v3203 = vsel %vm3200, %v3202, %v3198
          %v3204 = vmul.f32 1.0, %v3203
          %v3205 = vrcp.pop %v3189
          %v3206 = vmul.f32 %v3189, %v3205
          %v3207 = vsub.f32 1.0, %v3206
          %v3208 = vmul.f32 %v3205, %v3207
          %v3209 = vadd.f32 %v3205, %v3208
          %vm3210 = vweird.f32 %v3189
          %vm3211 = vweird.f32 %v3205
          %vm3212 = vmor %vm3210, %vm3211
          %v3213 = vsel %vm3212, %v3205, %v3209
          %v3214 = vand.u32 2147483647, %v3189
          %vm3215 = vcmp.eq.f32.partialorder %v3214, 8.507059e+37
          %v3216 = vand.u32 %v3189, 2147483648
          %v3217 = vor.u32 1.1754944e-38, %v3216
          %v3218 = vsel %vm3215, %v3217, %v3213
          %v3219 = vmul.f32 1.0, %v3218
          %v3220 = vtanh.pop %v3180
          %v3221 = vmul.f32 %v3204, %v3133
          %3223 = vrot.lane.b32.xlu0 %v3220, 64
          %v3224 = vpop.permute.xlu0 %3223
          %v3226 = vmul.f32 %v3204, %v3224
          %3228 = vrot.lane.b32.xlu0 %v3226, 64
          %v3229 = vpop.permute.xlu0 %3228
          %v3231 = vadd.f32 %v3221, %v3229
          %v3232 = vtanh.pop %v3231
          %3234 = vrot.lane.b32.xlu0 %v3232, 64
          %v3235 = vpop.permute.xlu0 %3234
          %v3237 = vmul.f32 %v3219, %v3235
          %v3238 = vsel %vm3181, 1, 0
          %3239 = vset.pattern.permute.xlu0 0
          %3240 = vperm.xlu0 %3239, %v3238
          %v3241 = vpop.permute.xlu0 %3240
          %vm3242 = vcmp.eq.s32.totalorder %v3241, 1
          %v3243 = vsel %vm3242, %v3237, %v3132
          %v3244 = vsel %vm3242, %v3231, %v3133
          %v3245 = vld [vmem:[#allocation3 + $0x30] sm:$0xff]
          %v3246 = vld [vmem:[#allocation3 + $0x38] sm:$0xff]
          %v3248 = vsel %vm1457, %v3243, 0
          %3250 = vmatpush.msra.mxu0 0.0
          %3251 = vmatpush.msra.mxu0 0.0
          %3252 = vmatpush.msra.mxu0 0.0
          %3253 = vmatpush.msra.mxu0 0.0
          %3254 = vmatpush.msra.mxu0 0.0
          %3255 = vmatpush.msra.mxu0 0.0
          %3256 = vmatpush.msra.mxu0 0.0
          %3257 = vmatpush.msra.mxu0 0.0
          %3258 = vmatpush.msra.mxu0 %v2803
          %3259 = vmatpush.msra.mxu0 %v2801
          %3260 = vmatpush.msra.mxu0 %v2799
          %3261 = vmatpush.msra.mxu0 %v2797
          %3262 = vmatpush.msra.mxu0 %v2795
          %3263 = vmatpush.msra.mxu0 %v2793
          %3264 = vmatpush.msra.mxu0 %v2791
          %3265 = vmatpush.msra.mxu0 %v2789
          %3266 = vmatmul.f32.gmra.mxu0 %v3248
          %v3267 = vpop.f32.mrf.mxu0
          %v3268 = vadd.f32 0.0, %v3267
          %3269 = vdwg.mxu0
          %3270 = vmatpush.msra.mxu0 0.0
          %3271 = vmatpush.msra.mxu0 0.0
          %3272 = vmatpush.msra.mxu0 0.0
          %3273 = vmatpush.msra.mxu0 0.0
          %3274 = vmatpush.msra.mxu0 0.0
          %3275 = vmatpush.msra.mxu0 0.0
          %3276 = vmatpush.msra.mxu0 0.0
          %3277 = vmatpush.msra.mxu0 0.0
          %3278 = vmatpush.msra.mxu0 %v2804
          %3279 = vmatpush.msra.mxu0 %v2802
          %3280 = vmatpush.msra.mxu0 %v2800
          %3281 = vmatpush.msra.mxu0 %v2798
          %3282 = vmatpush.msra.mxu0 %v2796
          %3283 = vmatpush.msra.mxu0 %v2794
          %3284 = vmatpush.msra.mxu0 %v2792
          %3285 = vmatpush.msra.mxu0 %v2790
          %3286 = vmatmul.f32.gmra.mxu0 %v3248
          %v3287 = vpop.f32.mrf.mxu0
          %v3288 = vadd.f32 0.0, %v3287
          %3289 = vdwg.mxu0
          %v3290 = vadd.f32 %v3245, %v3268
          %v3291 = vadd.f32 %v3246, %v3288
          %vm3292 = vcmp.gt.s32.totalorder %v2805, 4
          %v3293 = vxor.u32 %v3290, 2147483648
          %v3294 = vxor.u32 %v3291, 2147483648
          %v3295 = vmul.f32 %v3293, 1.442695
          %v3296 = vpow.pop %v3295
          %v3297 = vmul.f32 %v3294, 1.442695
          %v3298 = vpow.pop %v3297
          %v3299 = vadd.f32 %v3296, 1.0
          %v3300 = vadd.f32 %v3298, 1.0
          %v3301 = vrcp.pop %v3299
          %v3302 = vmul.f32 %v3299, %v3301
          %v3303 = vsub.f32 1.0, %v3302
          %v3304 = vmul.f32 %v3301, %v3303
          %v3305 = vadd.f32 %v3301, %v3304
          %vm3306 = vweird.f32 %v3299
          %vm3307 = vweird.f32 %v3301
          %vm3308 = vmor %vm3306, %vm3307
          %v3309 = vsel %vm3308, %v3301, %v3305
          %v3310 = vand.u32 2147483647, %v3299
          %vm3311 = vcmp.eq.f32.partialorder %v3310, 8.507059e+37
          %v3312 = vand.u32 %v3299, 2147483648
          %v3313 = vor.u32 1.1754944e-38, %v3312
          %v3314 = vsel %vm3311, %v3313, %v3309
          %v3315 = vmul.f32 1.0, %v3314
          %v3316 = vrcp.pop %v3300
          %v3317 = vmul.f32 %v3300, %v3316
          %v3318 = vsub.f32 1.0, %v3317
          %v3319 = vmul.f32 %v3316, %v3318
          %v3320 = vadd.f32 %v3316, %v3319
          %vm3321 = vweird.f32 %v3300
          %vm3322 = vweird.f32 %v3316
          %vm3323 = vmor %vm3321, %vm3322
          %v3324 = vsel %vm3323, %v3316, %v3320
          %v3325 = vand.u32 2147483647, %v3300
          %vm3326 = vcmp.eq.f32.partialorder %v3325, 8.507059e+37
          %v3327 = vand.u32 %v3300, 2147483648
          %v3328 = vor.u32 1.1754944e-38, %v3327
          %v3329 = vsel %vm3326, %v3328, %v3324
          %v3330 = vmul.f32 1.0, %v3329
          %v3331 = vtanh.pop %v3291
          %v3332 = vmul.f32 %v3315, %v3244
          %3334 = vrot.lane.b32.xlu0 %v3331, 64
          %v3335 = vpop.permute.xlu0 %3334
          %v3337 = vmul.f32 %v3315, %v3335
          %3339 = vrot.lane.b32.xlu0 %v3337, 64
          %v3340 = vpop.permute.xlu0 %3339
          %v3342 = vadd.f32 %v3332, %v3340
          %v3343 = vtanh.pop %v3342
          %3345 = vrot.lane.b32.xlu0 %v3343, 64
          %v3346 = vpop.permute.xlu0 %3345
          %v3348 = vmul.f32 %v3330, %v3346
          %v3349 = vsel %vm3292, 1, 0
          %3350 = vset.pattern.permute.xlu0 0
          %3351 = vperm.xlu0 %3350, %v3349
          %v3352 = vpop.permute.xlu0 %3351
          %vm3353 = vcmp.eq.s32.totalorder %v3352, 1
          %v3354 = vsel %vm3353, %v3348, %v3243
          %v3355 = vsel %vm3353, %v3342, %v3244
          %v3356 = vld [vmem:[#allocation3 + $0x40] sm:$0xff]
          %v3357 = vld [vmem:[#allocation3 + $0x48] sm:$0xff]
          %v3359 = vsel %vm1457, %v3354, 0
          %3361 = vmatpush.msra.mxu0 0.0
          %3362 = vmatpush.msra.mxu0 0.0
          %3363 = vmatpush.msra.mxu0 0.0
          %3364 = vmatpush.msra.mxu0 0.0
          %3365 = vmatpush.msra.mxu0 0.0
          %3366 = vmatpush.msra.mxu0 0.0
          %3367 = vmatpush.msra.mxu0 0.0
          %3368 = vmatpush.msra.mxu0 0.0
          %3369 = vmatpush.msra.mxu0 %v2803
          %3370 = vmatpush.msra.mxu0 %v2801
          %3371 = vmatpush.msra.mxu0 %v2799
          %3372 = vmatpush.msra.mxu0 %v2797
          %3373 = vmatpush.msra.mxu0 %v2795
          %3374 = vmatpush.msra.mxu0 %v2793
          %3375 = vmatpush.msra.mxu0 %v2791
          %3376 = vmatpush.msra.mxu0 %v2789
          %3377 = vmatmul.f32.gmra.mxu0 %v3359
          %v3378 = vpop.f32.mrf.mxu0
          %v3379 = vadd.f32 0.0, %v3378
          %3380 = vdwg.mxu0
          %3381 = vmatpush.msra.mxu0 0.0
          %3382 = vmatpush.msra.mxu0 0.0
          %3383 = vmatpush.msra.mxu0 0.0
          %3384 = vmatpush.msra.mxu0 0.0
          %3385 = vmatpush.msra.mxu0 0.0
          %3386 = vmatpush.msra.mxu0 0.0
          %3387 = vmatpush.msra.mxu0 0.0
          %3388 = vmatpush.msra.mxu0 0.0
          %3389 = vmatpush.msra.mxu0 %v2804
          %3390 = vmatpush.msra.mxu0 %v2802
          %3391 = vmatpush.msra.mxu0 %v2800
          %3392 = vmatpush.msra.mxu0 %v2798
          %3393 = vmatpush.msra.mxu0 %v2796
          %3394 = vmatpush.msra.mxu0 %v2794
          %3395 = vmatpush.msra.mxu0 %v2792
          %3396 = vmatpush.msra.mxu0 %v2790
          %3397 = vmatmul.f32.gmra.mxu0 %v3359
          %v3398 = vpop.f32.mrf.mxu0
          %v3399 = vadd.f32 0.0, %v3398
          %3400 = vdwg.mxu0
          %v3401 = vadd.f32 %v3356, %v3379
          %v3402 = vadd.f32 %v3357, %v3399
          %vm3403 = vcmp.gt.s32.totalorder %v2805, 5
          %v3404 = vxor.u32 %v3401, 2147483648
          %v3405 = vxor.u32 %v3402, 2147483648
          %v3406 = vmul.f32 %v3404, 1.442695
          %v3407 = vpow.pop %v3406
          %v3408 = vmul.f32 %v3405, 1.442695
          %v3409 = vpow.pop %v3408
          %v3410 = vadd.f32 %v3407, 1.0
          %v3411 = vadd.f32 %v3409, 1.0
          %v3412 = vrcp.pop %v3410
          %v3413 = vmul.f32 %v3410, %v3412
          %v3414 = vsub.f32 1.0, %v3413
          %v3415 = vmul.f32 %v3412, %v3414
          %v3416 = vadd.f32 %v3412, %v3415
          %vm3417 = vweird.f32 %v3410
          %vm3418 = vweird.f32 %v3412
          %vm3419 = vmor %vm3417, %vm3418
          %v3420 = vsel %vm3419, %v3412, %v3416
          %v3421 = vand.u32 2147483647, %v3410
          %vm3422 = vcmp.eq.f32.partialorder %v3421, 8.507059e+37
          %v3423 = vand.u32 %v3410, 2147483648
          %v3424 = vor.u32 1.1754944e-38, %v3423
          %v3425 = vsel %vm3422, %v3424, %v3420
          %v3426 = vmul.f32 1.0, %v3425
          %v3427 = vrcp.pop %v3411
          %v3428 = vmul.f32 %v3411, %v3427
          %v3429 = vsub.f32 1.0, %v3428
          %v3430 = vmul.f32 %v3427, %v3429
          %v3431 = vadd.f32 %v3427, %v3430
          %vm3432 = vweird.f32 %v3411
          %vm3433 = vweird.f32 %v3427
          %vm3434 = vmor %vm3432, %vm3433
          %v3435 = vsel %vm3434, %v3427, %v3431
          %v3436 = vand.u32 2147483647, %v3411
          %vm3437 = vcmp.eq.f32.partialorder %v3436, 8.507059e+37
          %v3438 = vand.u32 %v3411, 2147483648
          %v3439 = vor.u32 1.1754944e-38, %v3438
          %v3440 = vsel %vm3437, %v3439, %v3435
          %v3441 = vmul.f32 1.0, %v3440
          %v3442 = vtanh.pop %v3402
          %v3443 = vmul.f32 %v3426, %v3355
          %3445 = vrot.lane.b32.xlu0 %v3442, 64
          %v3446 = vpop.permute.xlu0 %3445
          %v3448 = vmul.f32 %v3426, %v3446
          %3450 = vrot.lane.b32.xlu0 %v3448, 64
          %v3451 = vpop.permute.xlu0 %3450
          %v3453 = vadd.f32 %v3443, %v3451
          %v3454 = vtanh.pop %v3453
          %3456 = vrot.lane.b32.xlu0 %v3454, 64
          %v3457 = vpop.permute.xlu0 %3456
          %v3459 = vmul.f32 %v3441, %v3457
          %v3460 = vsel %vm3403, 1, 0
          %3461 = vset.pattern.permute.xlu0 0
          %3462 = vperm.xlu0 %3461, %v3460
          %v3463 = vpop.permute.xlu0 %3462
          %vm3464 = vcmp.eq.s32.totalorder %v3463, 1
          %v3465 = vsel %vm3464, %v3459, %v3354
          %v3466 = vsel %vm3464, %v3453, %v3355
          %v3467 = vld [vmem:[#allocation3 + $0x50] sm:$0xff]
          %v3468 = vld [vmem:[#allocation3 + $0x58] sm:$0xff]
          %v3470 = vsel %vm1457, %v3465, 0
          %3472 = vmatpush.msra.mxu0 0.0
          %3473 = vmatpush.msra.mxu0 0.0
          %3474 = vmatpush.msra.mxu0 0.0
          %3475 = vmatpush.msra.mxu0 0.0
          %3476 = vmatpush.msra.mxu0 0.0
          %3477 = vmatpush.msra.mxu0 0.0
          %3478 = vmatpush.msra.mxu0 0.0
          %3479 = vmatpush.msra.mxu0 0.0
          %3480 = vmatpush.msra.mxu0 %v2803
          %3481 = vmatpush.msra.mxu0 %v2801
          %3482 = vmatpush.msra.mxu0 %v2799
          %3483 = vmatpush.msra.mxu0 %v2797
          %3484 = vmatpush.msra.mxu0 %v2795
          %3485 = vmatpush.msra.mxu0 %v2793
          %3486 = vmatpush.msra.mxu0 %v2791
          %3487 = vmatpush.msra.mxu0 %v2789
          %3488 = vmatmul.f32.gmra.mxu0 %v3470
          %v3489 = vpop.f32.mrf.mxu0
          %v3490 = vadd.f32 0.0, %v3489
          %3491 = vdwg.mxu0
          %3492 = vmatpush.msra.mxu0 0.0
          %3493 = vmatpush.msra.mxu0 0.0
          %3494 = vmatpush.msra.mxu0 0.0
          %3495 = vmatpush.msra.mxu0 0.0
          %3496 = vmatpush.msra.mxu0 0.0
          %3497 = vmatpush.msra.mxu0 0.0
          %3498 = vmatpush.msra.mxu0 0.0
          %3499 = vmatpush.msra.mxu0 0.0
          %3500 = vmatpush.msra.mxu0 %v2804
          %3501 = vmatpush.msra.mxu0 %v2802
          %3502 = vmatpush.msra.mxu0 %v2800
          %3503 = vmatpush.msra.mxu0 %v2798
          %3504 = vmatpush.msra.mxu0 %v2796
          %3505 = vmatpush.msra.mxu0 %v2794
          %3506 = vmatpush.msra.mxu0 %v2792
          %3507 = vmatpush.msra.mxu0 %v2790
          %3508 = vmatmul.f32.gmra.mxu0 %v3470
          %v3509 = vpop.f32.mrf.mxu0
          %v3510 = vadd.f32 0.0, %v3509
          %3511 = vdwg.mxu0
          %v3512 = vadd.f32 %v3467, %v3490
          %v3513 = vadd.f32 %v3468, %v3510
          %vm3514 = vcmp.gt.s32.totalorder %v2805, 6
          %v3515 = vxor.u32 %v3512, 2147483648
          %v3516 = vxor.u32 %v3513, 2147483648
          %v3517 = vmul.f32 %v3515, 1.442695
          %v3518 = vpow.pop %v3517
          %v3519 = vmul.f32 %v3516, 1.442695
          %v3520 = vpow.pop %v3519
          %v3521 = vadd.f32 %v3518, 1.0
          %v3522 = vadd.f32 %v3520, 1.0
          %v3523 = vrcp.pop %v3521
          %v3524 = vmul.f32 %v3521, %v3523
          %v3525 = vsub.f32 1.0, %v3524
          %v3526 = vmul.f32 %v3523, %v3525
          %v3527 = vadd.f32 %v3523, %v3526
          %vm3528 = vweird.f32 %v3521
          %vm3529 = vweird.f32 %v3523
          %vm3530 = vmor %vm3528, %vm3529
          %v3531 = vsel %vm3530, %v3523, %v3527
          %v3532 = vand.u32 2147483647, %v3521
          %vm3533 = vcmp.eq.f32.partialorder %v3532, 8.507059e+37
          %v3534 = vand.u32 %v3521, 2147483648
          %v3535 = vor.u32 1.1754944e-38, %v3534
          %v3536 = vsel %vm3533, %v3535, %v3531
          %v3537 = vmul.f32 1.0, %v3536
          %v3538 = vrcp.pop %v3522
          %v3539 = vmul.f32 %v3522, %v3538
          %v3540 = vsub.f32 1.0, %v3539
          %v3541 = vmul.f32 %v3538, %v3540
          %v3542 = vadd.f32 %v3538, %v3541
          %vm3543 = vweird.f32 %v3522
          %vm3544 = vweird.f32 %v3538
          %vm3545 = vmor %vm3543, %vm3544
          %v3546 = vsel %vm3545, %v3538, %v3542
          %v3547 = vand.u32 2147483647, %v3522
          %vm3548 = vcmp.eq.f32.partialorder %v3547, 8.507059e+37
          %v3549 = vand.u32 %v3522, 2147483648
          %v3550 = vor.u32 1.1754944e-38, %v3549
          %v3551 = vsel %vm3548, %v3550, %v3546
          %v3552 = vmul.f32 1.0, %v3551
          %v3553 = vtanh.pop %v3513
          %v3554 = vmul.f32 %v3537, %v3466
          %3556 = vrot.lane.b32.xlu0 %v3553, 64
          %v3557 = vpop.permute.xlu0 %3556
          %v3559 = vmul.f32 %v3537, %v3557
          %3561 = vrot.lane.b32.xlu0 %v3559, 64
          %v3562 = vpop.permute.xlu0 %3561
          %v3564 = vadd.f32 %v3554, %v3562
          %v3565 = vtanh.pop %v3564
          %3567 = vrot.lane.b32.xlu0 %v3565, 64
          %v3568 = vpop.permute.xlu0 %3567
          %v3570 = vmul.f32 %v3552, %v3568
          %v3571 = vsel %vm3514, 1, 0
          %3572 = vset.pattern.permute.xlu0 0
          %3573 = vperm.xlu0 %3572, %v3571
          %v3574 = vpop.permute.xlu0 %3573
          %vm3575 = vcmp.eq.s32.totalorder %v3574, 1
          %v3576 = vsel %vm3575, %v3570, %v3465
          %v3577 = vsel %vm3575, %v3564, %v3466
          %v3578 = vld [vmem:[#allocation3 + $0x60] sm:$0xff]
          %v3579 = vld [vmem:[#allocation3 + $0x68] sm:$0xff]
          %v3581 = vsel %vm1457, %v3576, 0
          %3583 = vmatpush.msra.mxu0 0.0
          %3584 = vmatpush.msra.mxu0 0.0
          %3585 = vmatpush.msra.mxu0 0.0
          %3586 = vmatpush.msra.mxu0 0.0
          %3587 = vmatpush.msra.mxu0 0.0
          %3588 = vmatpush.msra.mxu0 0.0
          %3589 = vmatpush.msra.mxu0 0.0
          %3590 = vmatpush.msra.mxu0 0.0
          %3591 = vmatpush.msra.mxu0 %v2803
          %3592 = vmatpush.msra.mxu0 %v2801
          %3593 = vmatpush.msra.mxu0 %v2799
          %3594 = vmatpush.msra.mxu0 %v2797
          %3595 = vmatpush.msra.mxu0 %v2795
          %3596 = vmatpush.msra.mxu0 %v2793
          %3597 = vmatpush.msra.mxu0 %v2791
          %3598 = vmatpush.msra.mxu0 %v2789
          %3599 = vmatmul.f32.gmra.mxu0 %v3581
          %v3600 = vpop.f32.mrf.mxu0
          %v3601 = vadd.f32 0.0, %v3600
          %3602 = vdwg.mxu0
          %3603 = vmatpush.msra.mxu0 0.0
          %3604 = vmatpush.msra.mxu0 0.0
          %3605 = vmatpush.msra.mxu0 0.0
          %3606 = vmatpush.msra.mxu0 0.0
          %3607 = vmatpush.msra.mxu0 0.0
          %3608 = vmatpush.msra.mxu0 0.0
          %3609 = vmatpush.msra.mxu0 0.0
          %3610 = vmatpush.msra.mxu0 0.0
          %3611 = vmatpush.msra.mxu0 %v2804
          %3612 = vmatpush.msra.mxu0 %v2802
          %3613 = vmatpush.msra.mxu0 %v2800
          %3614 = vmatpush.msra.mxu0 %v2798
          %3615 = vmatpush.msra.mxu0 %v2796
          %3616 = vmatpush.msra.mxu0 %v2794
          %3617 = vmatpush.msra.mxu0 %v2792
          %3618 = vmatpush.msra.mxu0 %v2790
          %3619 = vmatmul.f32.gmra.mxu0 %v3581
          %v3620 = vpop.f32.mrf.mxu0
          %v3621 = vadd.f32 0.0, %v3620
          %3622 = vdwg.mxu0
          %v3623 = vadd.f32 %v3578, %v3601
          %v3624 = vadd.f32 %v3579, %v3621
          %vm3625 = vcmp.gt.s32.totalorder %v2805, 7
          %v3626 = vxor.u32 %v3623, 2147483648
          %v3627 = vxor.u32 %v3624, 2147483648
          %v3628 = vmul.f32 %v3626, 1.442695
          %v3629 = vpow.pop %v3628
          %v3630 = vmul.f32 %v3627, 1.442695
          %v3631 = vpow.pop %v3630
          %v3632 = vadd.f32 %v3629, 1.0
          %v3633 = vadd.f32 %v3631, 1.0
          %v3634 = vrcp.pop %v3632
          %v3635 = vmul.f32 %v3632, %v3634
          %v3636 = vsub.f32 1.0, %v3635
          %v3637 = vmul.f32 %v3634, %v3636
          %v3638 = vadd.f32 %v3634, %v3637
          %vm3639 = vweird.f32 %v3632
          %vm3640 = vweird.f32 %v3634
          %vm3641 = vmor %vm3639, %vm3640
          %v3642 = vsel %vm3641, %v3634, %v3638
          %v3643 = vand.u32 2147483647, %v3632
          %vm3644 = vcmp.eq.f32.partialorder %v3643, 8.507059e+37
          %v3645 = vand.u32 %v3632, 2147483648
          %v3646 = vor.u32 1.1754944e-38, %v3645
          %v3647 = vsel %vm3644, %v3646, %v3642
          %v3648 = vmul.f32 1.0, %v3647
          %v3649 = vrcp.pop %v3633
          %v3650 = vmul.f32 %v3633, %v3649
          %v3651 = vsub.f32 1.0, %v3650
          %v3652 = vmul.f32 %v3649, %v3651
          %v3653 = vadd.f32 %v3649, %v3652
          %vm3654 = vweird.f32 %v3633
          %vm3655 = vweird.f32 %v3649
          %vm3656 = vmor %vm3654, %vm3655
          %v3657 = vsel %vm3656, %v3649, %v3653
          %v3658 = vand.u32 2147483647, %v3633
          %vm3659 = vcmp.eq.f32.partialorder %v3658, 8.507059e+37
          %v3660 = vand.u32 %v3633, 2147483648
          %v3661 = vor.u32 1.1754944e-38, %v3660
          %v3662 = vsel %vm3659, %v3661, %v3657
          %v3663 = vmul.f32 1.0, %v3662
          %v3664 = vtanh.pop %v3624
          %v3665 = vmul.f32 %v3648, %v3577
          %3667 = vrot.lane.b32.xlu0 %v3664, 64
          %v3668 = vpop.permute.xlu0 %3667
          %v3670 = vmul.f32 %v3648, %v3668
          %3672 = vrot.lane.b32.xlu0 %v3670, 64
          %v3673 = vpop.permute.xlu0 %3672
          %v3675 = vadd.f32 %v3665, %v3673
          %v3676 = vtanh.pop %v3675
          %3678 = vrot.lane.b32.xlu0 %v3676, 64
          %v3679 = vpop.permute.xlu0 %3678
          %v3681 = vmul.f32 %v3663, %v3679
          %v3682 = vsel %vm3625, 1, 0
          %3683 = vset.pattern.permute.xlu0 0
          %3684 = vperm.xlu0 %3683, %v3682
          %v3685 = vpop.permute.xlu0 %3684
          %vm3686 = vcmp.eq.s32.totalorder %v3685, 1
          %v3687 = vsel %vm3686, %v3681, %v3576
          %v3688 = vsel %vm3686, %v3675, %v3577
          %v3689 = vld [vmem:[#allocation3 + $0x70] sm:$0xff]
          %v3690 = vld [vmem:[#allocation3 + $0x78] sm:$0xff]
          %v3692 = vsel %vm1457, %v3687, 0
          %3694 = vmatpush.msra.mxu0 0.0
          %3695 = vmatpush.msra.mxu0 0.0
          %3696 = vmatpush.msra.mxu0 0.0
          %3697 = vmatpush.msra.mxu0 0.0
          %3698 = vmatpush.msra.mxu0 0.0
          %3699 = vmatpush.msra.mxu0 0.0
          %3700 = vmatpush.msra.mxu0 0.0
          %3701 = vmatpush.msra.mxu0 0.0
          %3702 = vmatpush.msra.mxu0 %v2803
          %3703 = vmatpush.msra.mxu0 %v2801
          %3704 = vmatpush.msra.mxu0 %v2799
          %3705 = vmatpush.msra.mxu0 %v2797
          %3706 = vmatpush.msra.mxu0 %v2795
          %3707 = vmatpush.msra.mxu0 %v2793
          %3708 = vmatpush.msra.mxu0 %v2791
          %3709 = vmatpush.msra.mxu0 %v2789
          %3710 = vmatmul.f32.gmra.mxu0 %v3692
          %v3711 = vpop.f32.mrf.mxu0
          %v3712 = vadd.f32 0.0, %v3711
          %3713 = vdwg.mxu0
          %3714 = vmatpush.msra.mxu0 0.0
          %3715 = vmatpush.msra.mxu0 0.0
          %3716 = vmatpush.msra.mxu0 0.0
          %3717 = vmatpush.msra.mxu0 0.0
          %3718 = vmatpush.msra.mxu0 0.0
          %3719 = vmatpush.msra.mxu0 0.0
          %3720 = vmatpush.msra.mxu0 0.0
          %3721 = vmatpush.msra.mxu0 0.0
          %3722 = vmatpush.msra.mxu0 %v2804
          %3723 = vmatpush.msra.mxu0 %v2802
          %3724 = vmatpush.msra.mxu0 %v2800
          %3725 = vmatpush.msra.mxu0 %v2798
          %3726 = vmatpush.msra.mxu0 %v2796
          %3727 = vmatpush.msra.mxu0 %v2794
          %3728 = vmatpush.msra.mxu0 %v2792
          %3729 = vmatpush.msra.mxu0 %v2790
          %3730 = vmatmul.f32.gmra.mxu0 %v3692
          %v3731 = vpop.f32.mrf.mxu0
          %v3732 = vadd.f32 0.0, %v3731
          %3733 = vdwg.mxu0
          %v3734 = vadd.f32 %v3689, %v3712
          %v3735 = vadd.f32 %v3690, %v3732
          %vm3736 = vcmp.gt.s32.totalorder %v2805, 8
          %v3737 = vxor.u32 %v3734, 2147483648
          %v3738 = vxor.u32 %v3735, 2147483648
          %v3739 = vmul.f32 %v3737, 1.442695
          %v3740 = vpow.pop %v3739
          %v3741 = vmul.f32 %v3738, 1.442695
          %v3742 = vpow.pop %v3741
          %v3743 = vadd.f32 %v3740, 1.0
          %v3744 = vadd.f32 %v3742, 1.0
          %v3745 = vrcp.pop %v3743
          %v3746 = vmul.f32 %v3743, %v3745
          %v3747 = vsub.f32 1.0, %v3746
          %v3748 = vmul.f32 %v3745, %v3747
          %v3749 = vadd.f32 %v3745, %v3748
          %vm3750 = vweird.f32 %v3743
          %vm3751 = vweird.f32 %v3745
          %vm3752 = vmor %vm3750, %vm3751
          %v3753 = vsel %vm3752, %v3745, %v3749
          %v3754 = vand.u32 2147483647, %v3743
          %vm3755 = vcmp.eq.f32.partialorder %v3754, 8.507059e+37
          %v3756 = vand.u32 %v3743, 2147483648
          %v3757 = vor.u32 1.1754944e-38, %v3756
          %v3758 = vsel %vm3755, %v3757, %v3753
          %v3759 = vmul.f32 1.0, %v3758
          %v3760 = vrcp.pop %v3744
          %v3761 = vmul.f32 %v3744, %v3760
          %v3762 = vsub.f32 1.0, %v3761
          %v3763 = vmul.f32 %v3760, %v3762
          %v3764 = vadd.f32 %v3760, %v3763
          %vm3765 = vweird.f32 %v3744
          %vm3766 = vweird.f32 %v3760
          %vm3767 = vmor %vm3765, %vm3766
          %v3768 = vsel %vm3767, %v3760, %v3764
          %v3769 = vand.u32 2147483647, %v3744
          %vm3770 = vcmp.eq.f32.partialorder %v3769, 8.507059e+37
          %v3771 = vand.u32 %v3744, 2147483648
          %v3772 = vor.u32 1.1754944e-38, %v3771
          %v3773 = vsel %vm3770, %v3772, %v3768
          %v3774 = vmul.f32 1.0, %v3773
          %v3775 = vtanh.pop %v3735
          %v3776 = vmul.f32 %v3759, %v3688
          %3778 = vrot.lane.b32.xlu0 %v3775, 64
          %v3779 = vpop.permute.xlu0 %3778
          %v3781 = vmul.f32 %v3759, %v3779
          %3783 = vrot.lane.b32.xlu0 %v3781, 64
          %v3784 = vpop.permute.xlu0 %3783
          %v3786 = vadd.f32 %v3776, %v3784
          %v3787 = vtanh.pop %v3786
          %3789 = vrot.lane.b32.xlu0 %v3787, 64
          %v3790 = vpop.permute.xlu0 %3789
          %v3792 = vmul.f32 %v3774, %v3790
          %v3793 = vsel %vm3736, 1, 0
          %3794 = vset.pattern.permute.xlu0 0
          %3795 = vperm.xlu0 %3794, %v3793
          %v3796 = vpop.permute.xlu0 %3795
          %vm3797 = vcmp.eq.s32.totalorder %v3796, 1
          %v3798 = vsel %vm3797, %v3792, %v3687
          %v3799 = vadd.f32 %v3798, %v2729
          %v3801 = vperm.slane %v1502, 0
          %v3804 = vsel %vm1457, %v3799, 0
          %3806 = vmatpush.msra.mxu0 0.0
          %3807 = vmatpush.msra.mxu0 0.0
          %3808 = vmatpush.msra.mxu0 0.0
          %3809 = vmatpush.msra.mxu0 0.0
          %3810 = vmatpush.msra.mxu0 0.0
          %3811 = vmatpush.msra.mxu0 0.0
          %3812 = vmatpush.msra.mxu0 0.0
          %3813 = vmatpush.msra.mxu0 0.0
          %3814 = vmatpush.msra.mxu0 %v1499
          %3815 = vmatpush.msra.mxu0 %v1498
          %3816 = vmatpush.msra.mxu0 %v1497
          %3817 = vmatpush.msra.mxu0 %v1496
          %3818 = vmatpush.msra.mxu0 %v1495
          %3819 = vmatpush.msra.mxu0 %v1494
          %3820 = vmatpush.msra.mxu0 %v1493
          %3821 = vmatpush.msra.mxu0 %v1492
          %3822 = vmatmul.f32.gmra.mxu0 %v3804
          %v3823 = vpop.f32.mrf.mxu0
          %v3824 = vadd.f32 %v3801, %v3823
          %3825 = vdwg.mxu0
          %vm3826 = vcmask 261120
          %3827 = vst.msk [vmem:[%s5] sm:$0xff] %vm3826, %v3824
        $region71: #{_lambda_.1} parent=58 // pred_fallthru
          _
        // Predicated region
        $region72: #{_lambda_.1} parent=58 // pred_check
          %p3828 = pneg %p144
        $region73: #{_lambda_.1} parent=58 // pred_check_branch
          %3830 = sbr.rel (%p3828) target = $region75
        $region74: #{_lambda_.1} parent=58 // pred_region
          _
        $region75: #{_lambda_.1} parent=58 // pred_fallthru
          _
        // Predicated region
        $region76: #{_lambda_.1} parent=58 // pred_check
          %p3831 = pneg %p144
        $region77: #{_lambda_.1} parent=58 // pred_check_branch
          %3833 = sbr.rel (%p3831) target = $region79
        $region78: #{_lambda_.1} parent=58 // pred_region
          _
        $region79: #{_lambda_.1} parent=58 // pred_fallthru
          _
      $region59: #{_lambda_.1} parent=5 // pred_fallthru
        _
      %p3834 = scmp.le.s32.totalorder 2, %s11
      // Predicated region
      $region80: #{_lambda_.1} parent=5 // pred_check
        %p3835 = pneg %p3834
      $region81: #{_lambda_.1} parent=5 // pred_check_branch
        %3837 = sbr.rel (%p3835) target = $region83
      $region82: #{_lambda_.1} parent=5 // pred_region
        %s3838 = ssub.s32 %s11, 2
      $region83: #{_lambda_.1} parent=5 // pred_fallthru
        _
    $region6: #{_lambda_.1} parent=1 // loop_footer
      %s15 = sadd.s32 1, %s11
    $region7: #{_lambda_.1} parent=1 // loop_footer_branch
      %10 = sbr.rel target = $region3
    $region8: #{_lambda_.1} parent=1 // loop_exit
      _

</llo_original>
